<compile_context>
chip_gen: v7x
topology: tpu7x:2x2x1
jax: 0.10.0
libtpu: 0.0.40
codegen_flags: <defaults>
</compile_context>

<pallas_src>
import jax
import jax.numpy as jnp
from jax.experimental import pallas as pl
from jax.experimental.pallas import tpu as pltpu


# ----------------------------------------------------------------------------
# Fused encoder + decoder + FC kernel
# ----------------------------------------------------------------------------
def make_fused_kernel(T_src, T_tgt, B, H, in_size, out_size, num_fc, mxu_dtype):
    """All static config closed over; time loops fully unrolled in-trace."""

    RANK1_MAX = 16  # below this input width, do the input projection on the VPU

    def kernel(*refs):
        (x_ref, x0_ref, enc_wih_ref, enc_whh_ref, enc_b_ref,
         dec_wih_ref, dec_whh_ref, dec_b_ref) = refs[:8]
        fc_refs = refs[8:8 + 2 * num_fc]
        y_ref = refs[8 + 2 * num_fc]

        def cell(gates, c):
            # gate order (i, f, o, g).  Full-width activations: one sigmoid and
            # one tanh EUP push over the whole (B, 4H) vreg, slices afterwards.
            s = jax.nn.sigmoid(gates)
            th = jnp.tanh(gates)
            i = s[:, :H]
            f = s[:, H:2 * H]
            o = s[:, 2 * H:3 * H]
            g = th[:, 3 * H:]
            c_new = f * c + i * g
            h_new = o * jnp.tanh(c_new)
            return h_new, c_new
            # TODO(synk): if the bundle dump shows lane relayouts on these
            # H-wide slices, switch to full-width state + pltpu.roll alignment.

        # ---- hoisted weight / bias loads (once, outside the serial loops) ---
        enc_whh = enc_whh_ref[...]            # (H, 4H)  mxu_dtype
        dec_whh = dec_whh_ref[...]            # (H, 4H)  mxu_dtype
        enc_b = enc_b_ref[...]                # (1, 4H)  f32 (implicit broadcast)
        dec_b = dec_b_ref[...]                # (1, 4H)  f32
        fc_w = [fc_refs[2 * li][...] for li in range(num_fc)]       # mxu_dtype
        fc_b = [fc_refs[2 * li + 1][...] for li in range(num_fc)]   # f32

        use_rank1_enc = in_size <= RANK1_MAX
        use_rank1_dec = out_size <= RANK1_MAX
        if use_rank1_enc:
            enc_wih_rows = [enc_wih_ref[k:k + 1, :] for k in range(in_size)]
        else:
            enc_wih = enc_wih_ref[...].astype(mxu_dtype)
        if use_rank1_dec:
            dec_wih_rows = [dec_wih_ref[k:k + 1, :] for k in range(out_size)]
        else:
            dec_wih = dec_wih_ref[...].astype(mxu_dtype)

        def rank1_proj(xblk, rows):
            # (B, n) @ (n, 4H) as n broadcast FMAs on the VPU: keeps the thin-K
            # matmul off the MXU; independent of h, so off the serial chain.
            acc = xblk[:, 0:1] * rows[0]
            for k in range(1, len(rows)):
                acc = acc + xblk[:, k:k + 1] * rows[k]
            return acc

        def rec_mm(h, whh):
            # bf16 (configurable) MXU inputs, f32 accumulation; h/c stay f32.
            return jnp.dot(h.astype(mxu_dtype), whh,
                           preferred_element_type=jnp.float32)

        # ----------------------------- encoder ------------------------------
        h = jnp.zeros((B, H), jnp.float32)
        c = jnp.zeros((B, H), jnp.float32)
        for t in range(T_src):
            if use_rank1_enc:
                xg = rank1_proj(x_ref[:, t * in_size:(t + 1) * in_size],
                                enc_wih_rows)
            else:
                xg = jnp.dot(
                    x_ref[:, t * in_size:(t + 1) * in_size].astype(mxu_dtype),
                    enc_wih, preferred_element_type=jnp.float32)
            gates = xg + enc_b + rec_mm(h, enc_whh)
            h, c = cell(gates, c)

        # ---------------------- decoder (autoregressive) --------------------
        x = x0_ref[...]                                   # (B, out_size) f32
        for t in range(T_tgt):
            if use_rank1_dec:
                xg = rank1_proj(x, dec_wih_rows)
            else:
                xg = jnp.dot(x.astype(mxu_dtype), dec_wih,
                             preferred_element_type=jnp.float32)
            gates = xg + dec_b + rec_mm(h, dec_whh)
            h, c = cell(gates, c)

            o = jnp.maximum(h, 0.0)           # ReLU (dropout = identity, eval)
            for li in range(num_fc):
                o = jnp.dot(o.astype(mxu_dtype), fc_w[li],
                            preferred_element_type=jnp.float32) + fc_b[li]
                if li != num_fc - 1:
                    o = jnp.maximum(o, 0.0)
            # Per-step store into the resident output block: frees vregs
            # instead of keeping all T_tgt outputs live until a final concat.
            y_ref[:, t * out_size:(t + 1) * out_size] = o
            x = o                             # autoregressive feedback

    return kernel


# ----------------------------------------------------------------------------
# One-time parameter prep (outside the per-call path)
# ----------------------------------------------------------------------------
def prepare_params(params, mxu_dtype=jnp.bfloat16):
    """Gate reorder torch (i,f,g,o) -> (i,f,o,g) and MXU-dtype cast of the
    recurrent / FC weights, done once per parameter set (not per forward)."""
    H = params["enc_whh"].shape[0]

    def reorder(a):
        return jnp.concatenate(
            [a[..., :2 * H], a[..., 3 * H:4 * H], a[..., 2 * H:3 * H]], axis=-1)

    return {
        "H": H,
        "in_size": params["enc_wih"].shape[0],
        "out_size": params["fc"][-1][0].shape[1],
        "mxu_dtype": mxu_dtype,
        # input-projection weights stay f32 (used as VPU rank-1 FMAs)
        "enc_wih": reorder(params["enc_wih"]),
        "dec_wih": reorder(params["dec_wih"]),
        "enc_b": reorder(params["enc_b"]),
        "dec_b": reorder(params["dec_b"]),
        # recurrent weights feed the MXU every serial step -> cast once here
        "enc_whh": reorder(params["enc_whh"]).astype(mxu_dtype),
        "dec_whh": reorder(params["dec_whh"]).astype(mxu_dtype),
        "fc_w": [w.astype(mxu_dtype) for (w, _) in params["fc"]],
        "fc_b": [b for (_, b) in params["fc"]],
    }


# ----------------------------------------------------------------------------
# Model wrapper
# ----------------------------------------------------------------------------
def simple_lstm_forward(prepped, src, tgt):
    """src: (B, T_src, input_size), tgt: (B, T_tgt).
    Returns (B, T_tgt*output_size), matching the PyTorch module (eval mode)."""
    B, T_src, in_size = src.shape
    T_tgt = tgt.shape[1]
    H = prepped["H"]
    out_size = prepped["out_size"]
    num_fc = len(prepped["fc_w"])
    assert in_size == prepped["in_size"]

    # Pad batch to the f32 sublane width (8); padded rows are discarded.
    Bp = max(8, ((B + 7) // 8) * 8)
    pad = Bp - B

    # Lane-compact encoder input: (B, T_src*in_size) is a free, contiguous
    # reshape of the batch-first src (no time-major transpose per call, no
    # 32x lane-padded (T*B, in_size) buffer).
    x2d = src.reshape(B, T_src * in_size).astype(jnp.float32)
    x0 = tgt[:, 0].reshape(B, 1).astype(jnp.float32)   # tgt[:, 0].view(-1,1,1)
    if out_size != 1:
        x0 = jnp.broadcast_to(x0, (B, out_size))       # module only sane at 1
    if pad:
        x2d = jnp.pad(x2d, ((0, pad), (0, 0)))
        x0 = jnp.pad(x0, ((0, pad), (0, 0)))

    # Megacore split over batch blocks (v7x: 2 TCs). Each batch block runs the
    # full recurrence independently; at Bp=8 this stays grid=(1,).
    nb = 2 if (Bp >= 16 and Bp % 16 == 0) else 1
    B_BLK = Bp // nb

    fc_flat = []
    for w, b in zip(prepped["fc_w"], prepped["fc_b"]):
        fc_flat += [w, b]

    inputs = [x2d, x0, prepped["enc_wih"], prepped["enc_whh"], prepped["enc_b"],
              prepped["dec_wih"], prepped["dec_whh"], prepped["dec_b"]] + fc_flat

    def rep_spec(a):                       # replicated weights / biases (2-D)
        return pl.BlockSpec(a.shape, lambda b: (0, 0))

    in_specs = ([pl.BlockSpec((B_BLK, T_src * in_size), lambda b: (b, 0)),
                 pl.BlockSpec((B_BLK, out_size), lambda b: (b, 0))]
                + [rep_spec(a) for a in inputs[2:]])
    out_specs = pl.BlockSpec((B_BLK, T_tgt * out_size), lambda b: (b, 0))

    # --- compiler hints: explicit scoped-VMEM budget + cost estimate --------
    out_bytes = Bp * T_tgt * out_size * 4
    in_bytes = sum(int(a.size) * a.dtype.itemsize for a in inputs)
    vmem_limit = int(min(48 * 1024 * 1024,
                         max(4 * 1024 * 1024, 4 * (in_bytes + out_bytes))))

    steps = T_src + T_tgt
    flops = 2 * Bp * H * 4 * H * steps                      # h @ W_hh
    flops += 2 * Bp * in_size * 4 * H * T_src               # encoder in-proj
    flops += 2 * Bp * out_size * 4 * H * T_tgt              # decoder in-proj
    for w in prepped["fc_w"]:
        flops += 2 * Bp * w.shape[0] * w.shape[1] * T_tgt   # FC head
    transcendentals = steps * Bp * (4 * H + 4 * H + H)      # sigmoid+tanh+tanh
    cost = pl.CostEstimate(flops=int(flops),
                           transcendentals=int(transcendentals),
                           bytes_accessed=int(in_bytes + out_bytes))

    y = pl.pallas_call(
        make_fused_kernel(T_src, T_tgt, B_BLK, H, in_size, out_size, num_fc,
                          prepped["mxu_dtype"]),
        out_shape=jax.ShapeDtypeStruct((Bp, T_tgt * out_size), jnp.float32),
        grid_spec=pltpu.PrefetchScalarGridSpec(
            num_scalar_prefetch=0,
            grid=(nb,),
            in_specs=in_specs,
            out_specs=out_specs),
        compiler_params=pltpu.CompilerParams(
            dimension_semantics=("parallel",),
            vmem_limit_bytes=vmem_limit),
        cost_estimate=cost,
    )(*inputs)
    return y[:B]


# ----------------------------------------------------------------------------
# Deterministic parameter init (PyTorch-style uniform(-1/sqrt(fan), 1/sqrt(fan)))
# Weights stored transposed (in_features, out_features); gate order = torch (i,f,g,o).
# ----------------------------------------------------------------------------
def init_params(key, input_size, hidden_size, output_size, num_fc_layers):
    H = hidden_size
    kH = 1.0 / jnp.sqrt(H)

    def u(k, shape, bound):
        return jax.random.uniform(k, shape, jnp.float32, -bound, bound)

    keys = jax.random.split(key, 8 + 2 * num_fc_layers)
    enc_wih = u(keys[0], (input_size, 4 * H), kH)
    enc_whh = u(keys[1], (H, 4 * H), kH)
    enc_b = (u(keys[2], (1, 4 * H), kH) + u(keys[3], (1, 4 * H), kH))  # b_ih+b_hh
    dec_wih = u(keys[4], (output_size, 4 * H), kH)
    dec_whh = u(keys[5], (H, 4 * H), kH)
    dec_b = (u(keys[6], (1, 4 * H), kH) + u(keys[7], (1, 4 * H), kH))
    fc = []
    for i in range(num_fc_layers):
        fin = H
        fout = output_size if i == num_fc_layers - 1 else H
        kb = 1.0 / jnp.sqrt(fin)
        w = u(keys[8 + 2 * i], (fin, fout), kb)
        b = u(keys[9 + 2 * i], (1, fout), kb)
        fc.append((w, b))
    return {"enc_wih": enc_wih, "enc_whh": enc_whh, "enc_b": enc_b,
            "dec_wih": dec_wih, "dec_whh": dec_whh, "dec_b": dec_b, "fc": fc}


# ----------------------------------------------------------------------------
# Pure-JAX f32 reference (correctness check, torch gate order)
# ----------------------------------------------------------------------------
def _cell_ref(x, h, c, wih, whh, b):
    gates = x @ wih + h @ whh + b
    i, f, g, o = jnp.split(gates, 4, axis=-1)
    c = jax.nn.sigmoid(f) * c + jax.nn.sigmoid(i) * jnp.tanh(g)
    h = jax.nn.sigmoid(o) * jnp.tanh(c)
    return h, c


def reference_forward(params, src, tgt):
    B, T_src, _ = src.shape
    T_tgt = tgt.shape[1]
    H = params["enc_whh"].shape[0]
    h = jnp.zeros((B, H))
    c = jnp.zeros((B, H))
    for t in range(T_src):
        h, c = _cell_ref(src[:, t, :], h, c,
                         params["enc_wih"], params["enc_whh"], params["enc_b"])
    x = tgt[:, 0].reshape(B, 1)
    outs = []
    for _ in range(T_tgt):
        h, c = _cell_ref(x, h, c,
                         params["dec_wih"], params["dec_whh"], params["dec_b"])
        o = jnp.maximum(h, 0.0)
        for li, (w, b) in enumerate(params["fc"]):
            o = o @ w + b
            if li != len(params["fc"]) - 1:
                o = jnp.maximum(o, 0.0)
        outs.append(o)
        x = o
    return jnp.concatenate(outs, axis=1)


# ----------------------------------------------------------------------------
if __name__ == "__main__":
    key = jax.random.PRNGKey(0)
    B, T_src, T_tgt = 2, 8, 8
    input_size, hidden_size, output_size = 4, 32, 1
    num_fc_layers = 2

    kp, ks, kt = jax.random.split(key, 3)
    params = init_params(kp, input_size, hidden_size, output_size, num_fc_layers)
    src = jax.random.normal(ks, (B, T_src, input_size), jnp.float32)
    tgt = jax.random.normal(kt, (B, T_tgt), jnp.float32)

    prepped = prepare_params(params, mxu_dtype=jnp.bfloat16)  # one-time prep
    out = simple_lstm_forward(prepped, src, tgt)
    out = jax.block_until_ready(out)

    ref = reference_forward(params, src, tgt)
    assert out.shape == (B, T_tgt * output_size), out.shape
    err = float(jnp.max(jnp.abs(out - ref)))
    # bf16 MXU inputs (f32 state + accumulation): loosened vs pure-f32 1e-4.
    assert jnp.allclose(out, ref, atol=5e-2, rtol=5e-2), f"max abs err {err}"
    print("KERNEL_OK")
</pallas_src>

<mosaic_0001>
module attributes {stable_mosaic.version = 11 : i64} {
  func.func @kernel(%arg0: i32, %arg1: memref<8x32xf32, #tpu.memory_space<vmem>>, %arg2: memref<8x1xf32, #tpu.memory_space<vmem>>, %arg3: memref<4x128xf32, #tpu.memory_space<vmem>>, %arg4: memref<32x128xbf16, #tpu.memory_space<vmem>>, %arg5: memref<1x128xf32, #tpu.memory_space<vmem>>, %arg6: memref<1x128xf32, #tpu.memory_space<vmem>>, %arg7: memref<32x128xbf16, #tpu.memory_space<vmem>>, %arg8: memref<1x128xf32, #tpu.memory_space<vmem>>, %arg9: memref<32x32xbf16, #tpu.memory_space<vmem>>, %arg10: memref<1x32xf32, #tpu.memory_space<vmem>>, %arg11: memref<32x1xbf16, #tpu.memory_space<vmem>>, %arg12: memref<1x1xf32, #tpu.memory_space<vmem>>, %arg13: memref<8x8xf32, #tpu.memory_space<vmem>>) attributes {dimension_semantics = [#tpu.dimension_semantics<parallel>], iteration_bounds = array<i64: 1>, scalar_prefetch = 0 : i64, scratch_operands = 0 : i64, tpu.core_type = #tpu.core_type<tc>, window_params = [{transform_indices = @transform_0, window_bounds = array<i64: 8, 32>}, {transform_indices = @transform_1, window_bounds = array<i64: 8, 1>}, {pipeline_mode = #tpu.pipeline_mode<synchronous>, transform_indices = @transform_2, window_bounds = array<i64: 4, 128>}, {pipeline_mode = #tpu.pipeline_mode<synchronous>, transform_indices = @transform_3, window_bounds = array<i64: 32, 128>}, {pipeline_mode = #tpu.pipeline_mode<synchronous>, transform_indices = @transform_4, window_bounds = array<i64: 1, 128>}, {pipeline_mode = #tpu.pipeline_mode<synchronous>, transform_indices = @transform_5, window_bounds = array<i64: 1, 128>}, {pipeline_mode = #tpu.pipeline_mode<synchronous>, transform_indices = @transform_6, window_bounds = array<i64: 32, 128>}, {pipeline_mode = #tpu.pipeline_mode<synchronous>, transform_indices = @transform_7, window_bounds = array<i64: 1, 128>}, {pipeline_mode = #tpu.pipeline_mode<synchronous>, transform_indices = @transform_8, window_bounds = array<i64: 32, 32>}, {pipeline_mode = #tpu.pipeline_mode<synchronous>, transform_indices = @transform_9, window_bounds = array<i64: 1, 32>}, {pipeline_mode = #tpu.pipeline_mode<synchronous>, transform_indices = @transform_10, window_bounds = array<i64: 32, 1>}, {pipeline_mode = #tpu.pipeline_mode<synchronous>, transform_indices = @transform_11, window_bounds = array<i64: 1, 1>}, {transform_indices = @transform_12, window_bounds = array<i64: 8, 8>}]} {
    %c0 = arith.constant 0 : index
    %c0_0 = arith.constant 0 : index
    %0 = vector.load %arg4[%c0, %c0_0] : memref<32x128xbf16, #tpu.memory_space<vmem>>, vector<32x128xbf16>
    %c0_1 = arith.constant 0 : index
    %c0_2 = arith.constant 0 : index
    %1 = vector.load %arg7[%c0_1, %c0_2] : memref<32x128xbf16, #tpu.memory_space<vmem>>, vector<32x128xbf16>
    %c0_3 = arith.constant 0 : index
    %c0_4 = arith.constant 0 : index
    %2 = vector.load %arg5[%c0_3, %c0_4] : memref<1x128xf32, #tpu.memory_space<vmem>>, vector<1x128xf32>
    %c0_5 = arith.constant 0 : index
    %c0_6 = arith.constant 0 : index
    %3 = vector.load %arg8[%c0_5, %c0_6] : memref<1x128xf32, #tpu.memory_space<vmem>>, vector<1x128xf32>
    %c0_7 = arith.constant 0 : index
    %c0_8 = arith.constant 0 : index
    %4 = vector.load %arg9[%c0_7, %c0_8] : memref<32x32xbf16, #tpu.memory_space<vmem>>, vector<32x32xbf16>
    %c0_9 = arith.constant 0 : index
    %c0_10 = arith.constant 0 : index
    %5 = vector.load %arg11[%c0_9, %c0_10] : memref<32x1xbf16, #tpu.memory_space<vmem>>, vector<32x1xbf16>
    %c0_11 = arith.constant 0 : index
    %c0_12 = arith.constant 0 : index
    %6 = vector.load %arg10[%c0_11, %c0_12] : memref<1x32xf32, #tpu.memory_space<vmem>>, vector<1x32xf32>
    %c0_13 = arith.constant 0 : index
    %c0_14 = arith.constant 0 : index
    %7 = vector.load %arg12[%c0_13, %c0_14] : memref<1x1xf32, #tpu.memory_space<vmem>>, vector<1x1xf32>
    %c0_15 = arith.constant 0 : index
    %c0_16 = arith.constant 0 : index
    %8 = vector.load %arg3[%c0_15, %c0_16] : memref<4x128xf32, #tpu.memory_space<vmem>>, vector<1x128xf32>
    %c1 = arith.constant 1 : index
    %c0_17 = arith.constant 0 : index
    %9 = vector.load %arg3[%c1, %c0_17] : memref<4x128xf32, #tpu.memory_space<vmem>>, vector<1x128xf32>
    %c2 = arith.constant 2 : index
    %c0_18 = arith.constant 0 : index
    %10 = vector.load %arg3[%c2, %c0_18] : memref<4x128xf32, #tpu.memory_space<vmem>>, vector<1x128xf32>
    %c3 = arith.constant 3 : index
    %c0_19 = arith.constant 0 : index
    %11 = vector.load %arg3[%c3, %c0_19] : memref<4x128xf32, #tpu.memory_space<vmem>>, vector<1x128xf32>
    %c0_20 = arith.constant 0 : index
    %c0_21 = arith.constant 0 : index
    %12 = vector.load %arg6[%c0_20, %c0_21] : memref<1x128xf32, #tpu.memory_space<vmem>>, vector<1x128xf32>
    %cst = arith.constant 0.000000e+00 : f32
    %13 = vector.broadcast %cst : f32 to vector<8x32xf32>
    %cst_22 = arith.constant 0.000000e+00 : f32
    %14 = vector.broadcast %cst_22 : f32 to vector<8x32xf32>
    %c0_23 = arith.constant 0 : index
    %c0_24 = arith.constant 0 : index
    %15 = vector.load %arg1[%c0_23, %c0_24] : memref<8x32xf32, #tpu.memory_space<vmem>>, vector<8x4xf32>
    %16 = vector.extract_strided_slice %15 {offsets = [0, 0], sizes = [8, 1], strides = [1, 1]} : vector<8x4xf32> to vector<8x1xf32>
    %17 = vector.broadcast %16 : vector<8x1xf32> to vector<8x128xf32>
    %18 = vector.broadcast %8 : vector<1x128xf32> to vector<8x128xf32>
    %19 = arith.mulf %17, %18 : vector<8x128xf32>
    %20 = vector.extract_strided_slice %15 {offsets = [0, 1], sizes = [8, 1], strides = [1, 1]} : vector<8x4xf32> to vector<8x1xf32>
    %21 = vector.broadcast %20 : vector<8x1xf32> to vector<8x128xf32>
    %22 = vector.broadcast %9 : vector<1x128xf32> to vector<8x128xf32>
    %23 = arith.mulf %21, %22 : vector<8x128xf32>
    %24 = arith.addf %19, %23 : vector<8x128xf32>
    %25 = vector.extract_strided_slice %15 {offsets = [0, 2], sizes = [8, 1], strides = [1, 1]} : vector<8x4xf32> to vector<8x1xf32>
    %26 = vector.broadcast %25 : vector<8x1xf32> to vector<8x128xf32>
    %27 = vector.broadcast %10 : vector<1x128xf32> to vector<8x128xf32>
    %28 = arith.mulf %26, %27 : vector<8x128xf32>
    %29 = arith.addf %24, %28 : vector<8x128xf32>
    %30 = vector.extract_strided_slice %15 {offsets = [0, 3], sizes = [8, 1], strides = [1, 1]} : vector<8x4xf32> to vector<8x1xf32>
    %31 = vector.broadcast %30 : vector<8x1xf32> to vector<8x128xf32>
    %32 = vector.broadcast %11 : vector<1x128xf32> to vector<8x128xf32>
    %33 = arith.mulf %31, %32 : vector<8x128xf32>
    %34 = arith.addf %29, %33 : vector<8x128xf32>
    %35 = vector.broadcast %2 : vector<1x128xf32> to vector<8x128xf32>
    %36 = arith.addf %34, %35 : vector<8x128xf32>
    %37 = arith.truncf %13 : vector<8x32xf32> to vector<8x32xbf16>
    %cst_25 = arith.constant dense<0.000000e+00> : vector<8x128xf32>
    %38 = tpu.matmul %37, %0, %cst_25 {dimension_numbers = #tpu.dot_dimension_numbers<[1], [0], [0], [1], [0, 0, 1, 1], [], []>} : vector<8x32xbf16>, vector<32x128xbf16>, vector<8x128xf32> -> vector<8x128xf32>
    %39 = arith.addf %36, %38 : vector<8x128xf32>
    %40 = arith.negf %39 : vector<8x128xf32>
    %41 = math.exp %40 : vector<8x128xf32>
    %cst_26 = arith.constant 1.000000e+00 : f32
    %42 = vector.broadcast %cst_26 : f32 to vector<8x128xf32>
    %43 = arith.addf %42, %41 : vector<8x128xf32>
    %44 = arith.divf %42, %43 : vector<8x128xf32>
    %45 = math.tanh %39 : vector<8x128xf32>
    %46 = vector.extract_strided_slice %44 {offsets = [0, 0], sizes = [8, 32], strides = [1, 1]} : vector<8x128xf32> to vector<8x32xf32>
    %47 = vector.extract_strided_slice %44 {offsets = [0, 32], sizes = [8, 32], strides = [1, 1]} : vector<8x128xf32> to vector<8x32xf32>
    %48 = vector.extract_strided_slice %44 {offsets = [0, 64], sizes = [8, 32], strides = [1, 1]} : vector<8x128xf32> to vector<8x32xf32>
    %49 = vector.extract_strided_slice %45 {offsets = [0, 96], sizes = [8, 32], strides = [1, 1]} : vector<8x128xf32> to vector<8x32xf32>
    %50 = arith.mulf %47, %14 : vector<8x32xf32>
    %51 = arith.mulf %46, %49 : vector<8x32xf32>
    %52 = arith.addf %50, %51 : vector<8x32xf32>
    %53 = math.tanh %52 : vector<8x32xf32>
    %54 = arith.mulf %48, %53 : vector<8x32xf32>
    %c0_27 = arith.constant 0 : index
    %c4 = arith.constant 4 : index
    %55 = vector.load %arg1[%c0_27, %c4] : memref<8x32xf32, #tpu.memory_space<vmem>>, vector<8x4xf32>
    %56 = vector.extract_strided_slice %55 {offsets = [0, 0], sizes = [8, 1], strides = [1, 1]} : vector<8x4xf32> to vector<8x1xf32>
    %57 = vector.broadcast %56 : vector<8x1xf32> to vector<8x128xf32>
    %58 = vector.broadcast %8 : vector<1x128xf32> to vector<8x128xf32>
    %59 = arith.mulf %57, %58 : vector<8x128xf32>
    %60 = vector.extract_strided_slice %55 {offsets = [0, 1], sizes = [8, 1], strides = [1, 1]} : vector<8x4xf32> to vector<8x1xf32>
    %61 = vector.broadcast %60 : vector<8x1xf32> to vector<8x128xf32>
    %62 = vector.broadcast %9 : vector<1x128xf32> to vector<8x128xf32>
    %63 = arith.mulf %61, %62 : vector<8x128xf32>
    %64 = arith.addf %59, %63 : vector<8x128xf32>
    %65 = vector.extract_strided_slice %55 {offsets = [0, 2], sizes = [8, 1], strides = [1, 1]} : vector<8x4xf32> to vector<8x1xf32>
    %66 = vector.broadcast %65 : vector<8x1xf32> to vector<8x128xf32>
    %67 = vector.broadcast %10 : vector<1x128xf32> to vector<8x128xf32>
    %68 = arith.mulf %66, %67 : vector<8x128xf32>
    %69 = arith.addf %64, %68 : vector<8x128xf32>
    %70 = vector.extract_strided_slice %55 {offsets = [0, 3], sizes = [8, 1], strides = [1, 1]} : vector<8x4xf32> to vector<8x1xf32>
    %71 = vector.broadcast %70 : vector<8x1xf32> to vector<8x128xf32>
    %72 = vector.broadcast %11 : vector<1x128xf32> to vector<8x128xf32>
    %73 = arith.mulf %71, %72 : vector<8x128xf32>
    %74 = arith.addf %69, %73 : vector<8x128xf32>
    %75 = vector.broadcast %2 : vector<1x128xf32> to vector<8x128xf32>
    %76 = arith.addf %74, %75 : vector<8x128xf32>
    %77 = arith.truncf %54 : vector<8x32xf32> to vector<8x32xbf16>
    %cst_28 = arith.constant dense<0.000000e+00> : vector<8x128xf32>
    %78 = tpu.matmul %77, %0, %cst_28 {dimension_numbers = #tpu.dot_dimension_numbers<[1], [0], [0], [1], [0, 0, 1, 1], [], []>} : vector<8x32xbf16>, vector<32x128xbf16>, vector<8x128xf32> -> vector<8x128xf32>
    %79 = arith.addf %76, %78 : vector<8x128xf32>
    %80 = arith.negf %79 : vector<8x128xf32>
    %81 = math.exp %80 : vector<8x128xf32>
    %cst_29 = arith.constant 1.000000e+00 : f32
    %82 = vector.broadcast %cst_29 : f32 to vector<8x128xf32>
    %83 = arith.addf %82, %81 : vector<8x128xf32>
    %84 = arith.divf %82, %83 : vector<8x128xf32>
    %85 = math.tanh %79 : vector<8x128xf32>
    %86 = vector.extract_strided_slice %84 {offsets = [0, 0], sizes = [8, 32], strides = [1, 1]} : vector<8x128xf32> to vector<8x32xf32>
    %87 = vector.extract_strided_slice %84 {offsets = [0, 32], sizes = [8, 32], strides = [1, 1]} : vector<8x128xf32> to vector<8x32xf32>
    %88 = vector.extract_strided_slice %84 {offsets = [0, 64], sizes = [8, 32], strides = [1, 1]} : vector<8x128xf32> to vector<8x32xf32>
    %89 = vector.extract_strided_slice %85 {offsets = [0, 96], sizes = [8, 32], strides = [1, 1]} : vector<8x128xf32> to vector<8x32xf32>
    %90 = arith.mulf %87, %52 : vector<8x32xf32>
    %91 = arith.mulf %86, %89 : vector<8x32xf32>
    %92 = arith.addf %90, %91 : vector<8x32xf32>
    %93 = math.tanh %92 : vector<8x32xf32>
    %94 = arith.mulf %88, %93 : vector<8x32xf32>
    %c0_30 = arith.constant 0 : index
    %c8 = arith.constant 8 : index
    %95 = vector.load %arg1[%c0_30, %c8] : memref<8x32xf32, #tpu.memory_space<vmem>>, vector<8x4xf32>
    %96 = vector.extract_strided_slice %95 {offsets = [0, 0], sizes = [8, 1], strides = [1, 1]} : vector<8x4xf32> to vector<8x1xf32>
    %97 = vector.broadcast %96 : vector<8x1xf32> to vector<8x128xf32>
    %98 = vector.broadcast %8 : vector<1x128xf32> to vector<8x128xf32>
    %99 = arith.mulf %97, %98 : vector<8x128xf32>
    %100 = vector.extract_strided_slice %95 {offsets = [0, 1], sizes = [8, 1], strides = [1, 1]} : vector<8x4xf32> to vector<8x1xf32>
    %101 = vector.broadcast %100 : vector<8x1xf32> to vector<8x128xf32>
    %102 = vector.broadcast %9 : vector<1x128xf32> to vector<8x128xf32>
    %103 = arith.mulf %101, %102 : vector<8x128xf32>
    %104 = arith.addf %99, %103 : vector<8x128xf32>
    %105 = vector.extract_strided_slice %95 {offsets = [0, 2], sizes = [8, 1], strides = [1, 1]} : vector<8x4xf32> to vector<8x1xf32>
    %106 = vector.broadcast %105 : vector<8x1xf32> to vector<8x128xf32>
    %107 = vector.broadcast %10 : vector<1x128xf32> to vector<8x128xf32>
    %108 = arith.mulf %106, %107 : vector<8x128xf32>
    %109 = arith.addf %104, %108 : vector<8x128xf32>
    %110 = vector.extract_strided_slice %95 {offsets = [0, 3], sizes = [8, 1], strides = [1, 1]} : vector<8x4xf32> to vector<8x1xf32>
    %111 = vector.broadcast %110 : vector<8x1xf32> to vector<8x128xf32>
    %112 = vector.broadcast %11 : vector<1x128xf32> to vector<8x128xf32>
    %113 = arith.mulf %111, %112 : vector<8x128xf32>
    %114 = arith.addf %109, %113 : vector<8x128xf32>
    %115 = vector.broadcast %2 : vector<1x128xf32> to vector<8x128xf32>
    %116 = arith.addf %114, %115 : vector<8x128xf32>
    %117 = arith.truncf %94 : vector<8x32xf32> to vector<8x32xbf16>
    %cst_31 = arith.constant dense<0.000000e+00> : vector<8x128xf32>
    %118 = tpu.matmul %117, %0, %cst_31 {dimension_numbers = #tpu.dot_dimension_numbers<[1], [0], [0], [1], [0, 0, 1, 1], [], []>} : vector<8x32xbf16>, vector<32x128xbf16>, vector<8x128xf32> -> vector<8x128xf32>
    %119 = arith.addf %116, %118 : vector<8x128xf32>
    %120 = arith.negf %119 : vector<8x128xf32>
    %121 = math.exp %120 : vector<8x128xf32>
    %cst_32 = arith.constant 1.000000e+00 : f32
    %122 = vector.broadcast %cst_32 : f32 to vector<8x128xf32>
    %123 = arith.addf %122, %121 : vector<8x128xf32>
    %124 = arith.divf %122, %123 : vector<8x128xf32>
    %125 = math.tanh %119 : vector<8x128xf32>
    %126 = vector.extract_strided_slice %124 {offsets = [0, 0], sizes = [8, 32], strides = [1, 1]} : vector<8x128xf32> to vector<8x32xf32>
    %127 = vector.extract_strided_slice %124 {offsets = [0, 32], sizes = [8, 32], strides = [1, 1]} : vector<8x128xf32> to vector<8x32xf32>
    %128 = vector.extract_strided_slice %124 {offsets = [0, 64], sizes = [8, 32], strides = [1, 1]} : vector<8x128xf32> to vector<8x32xf32>
    %129 = vector.extract_strided_slice %125 {offsets = [0, 96], sizes = [8, 32], strides = [1, 1]} : vector<8x128xf32> to vector<8x32xf32>
    %130 = arith.mulf %127, %92 : vector<8x32xf32>
    %131 = arith.mulf %126, %129 : vector<8x32xf32>
    %132 = arith.addf %130, %131 : vector<8x32xf32>
    %133 = math.tanh %132 : vector<8x32xf32>
    %134 = arith.mulf %128, %133 : vector<8x32xf32>
    %c0_33 = arith.constant 0 : index
    %c12 = arith.constant 12 : index
    %135 = vector.load %arg1[%c0_33, %c12] : memref<8x32xf32, #tpu.memory_space<vmem>>, vector<8x4xf32>
    %136 = vector.extract_strided_slice %135 {offsets = [0, 0], sizes = [8, 1], strides = [1, 1]} : vector<8x4xf32> to vector<8x1xf32>
    %137 = vector.broadcast %136 : vector<8x1xf32> to vector<8x128xf32>
    %138 = vector.broadcast %8 : vector<1x128xf32> to vector<8x128xf32>
    %139 = arith.mulf %137, %138 : vector<8x128xf32>
    %140 = vector.extract_strided_slice %135 {offsets = [0, 1], sizes = [8, 1], strides = [1, 1]} : vector<8x4xf32> to vector<8x1xf32>
    %141 = vector.broadcast %140 : vector<8x1xf32> to vector<8x128xf32>
    %142 = vector.broadcast %9 : vector<1x128xf32> to vector<8x128xf32>
    %143 = arith.mulf %141, %142 : vector<8x128xf32>
    %144 = arith.addf %139, %143 : vector<8x128xf32>
    %145 = vector.extract_strided_slice %135 {offsets = [0, 2], sizes = [8, 1], strides = [1, 1]} : vector<8x4xf32> to vector<8x1xf32>
    %146 = vector.broadcast %145 : vector<8x1xf32> to vector<8x128xf32>
    %147 = vector.broadcast %10 : vector<1x128xf32> to vector<8x128xf32>
    %148 = arith.mulf %146, %147 : vector<8x128xf32>
    %149 = arith.addf %144, %148 : vector<8x128xf32>
    %150 = vector.extract_strided_slice %135 {offsets = [0, 3], sizes = [8, 1], strides = [1, 1]} : vector<8x4xf32> to vector<8x1xf32>
    %151 = vector.broadcast %150 : vector<8x1xf32> to vector<8x128xf32>
    %152 = vector.broadcast %11 : vector<1x128xf32> to vector<8x128xf32>
    %153 = arith.mulf %151, %152 : vector<8x128xf32>
    %154 = arith.addf %149, %153 : vector<8x128xf32>
    %155 = vector.broadcast %2 : vector<1x128xf32> to vector<8x128xf32>
    %156 = arith.addf %154, %155 : vector<8x128xf32>
    %157 = arith.truncf %134 : vector<8x32xf32> to vector<8x32xbf16>
    %cst_34 = arith.constant dense<0.000000e+00> : vector<8x128xf32>
    %158 = tpu.matmul %157, %0, %cst_34 {dimension_numbers = #tpu.dot_dimension_numbers<[1], [0], [0], [1], [0, 0, 1, 1], [], []>} : vector<8x32xbf16>, vector<32x128xbf16>, vector<8x128xf32> -> vector<8x128xf32>
    %159 = arith.addf %156, %158 : vector<8x128xf32>
    %160 = arith.negf %159 : vector<8x128xf32>
    %161 = math.exp %160 : vector<8x128xf32>
    %cst_35 = arith.constant 1.000000e+00 : f32
    %162 = vector.broadcast %cst_35 : f32 to vector<8x128xf32>
    %163 = arith.addf %162, %161 : vector<8x128xf32>
    %164 = arith.divf %162, %163 : vector<8x128xf32>
    %165 = math.tanh %159 : vector<8x128xf32>
    %166 = vector.extract_strided_slice %164 {offsets = [0, 0], sizes = [8, 32], strides = [1, 1]} : vector<8x128xf32> to vector<8x32xf32>
    %167 = vector.extract_strided_slice %164 {offsets = [0, 32], sizes = [8, 32], strides = [1, 1]} : vector<8x128xf32> to vector<8x32xf32>
    %168 = vector.extract_strided_slice %164 {offsets = [0, 64], sizes = [8, 32], strides = [1, 1]} : vector<8x128xf32> to vector<8x32xf32>
    %169 = vector.extract_strided_slice %165 {offsets = [0, 96], sizes = [8, 32], strides = [1, 1]} : vector<8x128xf32> to vector<8x32xf32>
    %170 = arith.mulf %167, %132 : vector<8x32xf32>
    %171 = arith.mulf %166, %169 : vector<8x32xf32>
    %172 = arith.addf %170, %171 : vector<8x32xf32>
    %173 = math.tanh %172 : vector<8x32xf32>
    %174 = arith.mulf %168, %173 : vector<8x32xf32>
    %c0_36 = arith.constant 0 : index
    %c16 = arith.constant 16 : index
    %175 = vector.load %arg1[%c0_36, %c16] : memref<8x32xf32, #tpu.memory_space<vmem>>, vector<8x4xf32>
    %176 = vector.extract_strided_slice %175 {offsets = [0, 0], sizes = [8, 1], strides = [1, 1]} : vector<8x4xf32> to vector<8x1xf32>
    %177 = vector.broadcast %176 : vector<8x1xf32> to vector<8x128xf32>
    %178 = vector.broadcast %8 : vector<1x128xf32> to vector<8x128xf32>
    %179 = arith.mulf %177, %178 : vector<8x128xf32>
    %180 = vector.extract_strided_slice %175 {offsets = [0, 1], sizes = [8, 1], strides = [1, 1]} : vector<8x4xf32> to vector<8x1xf32>
    %181 = vector.broadcast %180 : vector<8x1xf32> to vector<8x128xf32>
    %182 = vector.broadcast %9 : vector<1x128xf32> to vector<8x128xf32>
    %183 = arith.mulf %181, %182 : vector<8x128xf32>
    %184 = arith.addf %179, %183 : vector<8x128xf32>
    %185 = vector.extract_strided_slice %175 {offsets = [0, 2], sizes = [8, 1], strides = [1, 1]} : vector<8x4xf32> to vector<8x1xf32>
    %186 = vector.broadcast %185 : vector<8x1xf32> to vector<8x128xf32>
    %187 = vector.broadcast %10 : vector<1x128xf32> to vector<8x128xf32>
    %188 = arith.mulf %186, %187 : vector<8x128xf32>
    %189 = arith.addf %184, %188 : vector<8x128xf32>
    %190 = vector.extract_strided_slice %175 {offsets = [0, 3], sizes = [8, 1], strides = [1, 1]} : vector<8x4xf32> to vector<8x1xf32>
    %191 = vector.broadcast %190 : vector<8x1xf32> to vector<8x128xf32>
    %192 = vector.broadcast %11 : vector<1x128xf32> to vector<8x128xf32>
    %193 = arith.mulf %191, %192 : vector<8x128xf32>
    %194 = arith.addf %189, %193 : vector<8x128xf32>
    %195 = vector.broadcast %2 : vector<1x128xf32> to vector<8x128xf32>
    %196 = arith.addf %194, %195 : vector<8x128xf32>
    %197 = arith.truncf %174 : vector<8x32xf32> to vector<8x32xbf16>
    %cst_37 = arith.constant dense<0.000000e+00> : vector<8x128xf32>
    %198 = tpu.matmul %197, %0, %cst_37 {dimension_numbers = #tpu.dot_dimension_numbers<[1], [0], [0], [1], [0, 0, 1, 1], [], []>} : vector<8x32xbf16>, vector<32x128xbf16>, vector<8x128xf32> -> vector<8x128xf32>
    %199 = arith.addf %196, %198 : vector<8x128xf32>
    %200 = arith.negf %199 : vector<8x128xf32>
    %201 = math.exp %200 : vector<8x128xf32>
    %cst_38 = arith.constant 1.000000e+00 : f32
    %202 = vector.broadcast %cst_38 : f32 to vector<8x128xf32>
    %203 = arith.addf %202, %201 : vector<8x128xf32>
    %204 = arith.divf %202, %203 : vector<8x128xf32>
    %205 = math.tanh %199 : vector<8x128xf32>
    %206 = vector.extract_strided_slice %204 {offsets = [0, 0], sizes = [8, 32], strides = [1, 1]} : vector<8x128xf32> to vector<8x32xf32>
    %207 = vector.extract_strided_slice %204 {offsets = [0, 32], sizes = [8, 32], strides = [1, 1]} : vector<8x128xf32> to vector<8x32xf32>
    %208 = vector.extract_strided_slice %204 {offsets = [0, 64], sizes = [8, 32], strides = [1, 1]} : vector<8x128xf32> to vector<8x32xf32>
    %209 = vector.extract_strided_slice %205 {offsets = [0, 96], sizes = [8, 32], strides = [1, 1]} : vector<8x128xf32> to vector<8x32xf32>
    %210 = arith.mulf %207, %172 : vector<8x32xf32>
    %211 = arith.mulf %206, %209 : vector<8x32xf32>
    %212 = arith.addf %210, %211 : vector<8x32xf32>
    %213 = math.tanh %212 : vector<8x32xf32>
    %214 = arith.mulf %208, %213 : vector<8x32xf32>
    %c0_39 = arith.constant 0 : index
    %c20 = arith.constant 20 : index
    %215 = vector.load %arg1[%c0_39, %c20] : memref<8x32xf32, #tpu.memory_space<vmem>>, vector<8x4xf32>
    %216 = vector.extract_strided_slice %215 {offsets = [0, 0], sizes = [8, 1], strides = [1, 1]} : vector<8x4xf32> to vector<8x1xf32>
    %217 = vector.broadcast %216 : vector<8x1xf32> to vector<8x128xf32>
    %218 = vector.broadcast %8 : vector<1x128xf32> to vector<8x128xf32>
    %219 = arith.mulf %217, %218 : vector<8x128xf32>
    %220 = vector.extract_strided_slice %215 {offsets = [0, 1], sizes = [8, 1], strides = [1, 1]} : vector<8x4xf32> to vector<8x1xf32>
    %221 = vector.broadcast %220 : vector<8x1xf32> to vector<8x128xf32>
    %222 = vector.broadcast %9 : vector<1x128xf32> to vector<8x128xf32>
    %223 = arith.mulf %221, %222 : vector<8x128xf32>
    %224 = arith.addf %219, %223 : vector<8x128xf32>
    %225 = vector.extract_strided_slice %215 {offsets = [0, 2], sizes = [8, 1], strides = [1, 1]} : vector<8x4xf32> to vector<8x1xf32>
    %226 = vector.broadcast %225 : vector<8x1xf32> to vector<8x128xf32>
    %227 = vector.broadcast %10 : vector<1x128xf32> to vector<8x128xf32>
    %228 = arith.mulf %226, %227 : vector<8x128xf32>
    %229 = arith.addf %224, %228 : vector<8x128xf32>
    %230 = vector.extract_strided_slice %215 {offsets = [0, 3], sizes = [8, 1], strides = [1, 1]} : vector<8x4xf32> to vector<8x1xf32>
    %231 = vector.broadcast %230 : vector<8x1xf32> to vector<8x128xf32>
    %232 = vector.broadcast %11 : vector<1x128xf32> to vector<8x128xf32>
    %233 = arith.mulf %231, %232 : vector<8x128xf32>
    %234 = arith.addf %229, %233 : vector<8x128xf32>
    %235 = vector.broadcast %2 : vector<1x128xf32> to vector<8x128xf32>
    %236 = arith.addf %234, %235 : vector<8x128xf32>
    %237 = arith.truncf %214 : vector<8x32xf32> to vector<8x32xbf16>
    %cst_40 = arith.constant dense<0.000000e+00> : vector<8x128xf32>
    %238 = tpu.matmul %237, %0, %cst_40 {dimension_numbers = #tpu.dot_dimension_numbers<[1], [0], [0], [1], [0, 0, 1, 1], [], []>} : vector<8x32xbf16>, vector<32x128xbf16>, vector<8x128xf32> -> vector<8x128xf32>
    %239 = arith.addf %236, %238 : vector<8x128xf32>
    %240 = arith.negf %239 : vector<8x128xf32>
    %241 = math.exp %240 : vector<8x128xf32>
    %cst_41 = arith.constant 1.000000e+00 : f32
    %242 = vector.broadcast %cst_41 : f32 to vector<8x128xf32>
    %243 = arith.addf %242, %241 : vector<8x128xf32>
    %244 = arith.divf %242, %243 : vector<8x128xf32>
    %245 = math.tanh %239 : vector<8x128xf32>
    %246 = vector.extract_strided_slice %244 {offsets = [0, 0], sizes = [8, 32], strides = [1, 1]} : vector<8x128xf32> to vector<8x32xf32>
    %247 = vector.extract_strided_slice %244 {offsets = [0, 32], sizes = [8, 32], strides = [1, 1]} : vector<8x128xf32> to vector<8x32xf32>
    %248 = vector.extract_strided_slice %244 {offsets = [0, 64], sizes = [8, 32], strides = [1, 1]} : vector<8x128xf32> to vector<8x32xf32>
    %249 = vector.extract_strided_slice %245 {offsets = [0, 96], sizes = [8, 32], strides = [1, 1]} : vector<8x128xf32> to vector<8x32xf32>
    %250 = arith.mulf %247, %212 : vector<8x32xf32>
    %251 = arith.mulf %246, %249 : vector<8x32xf32>
    %252 = arith.addf %250, %251 : vector<8x32xf32>
    %253 = math.tanh %252 : vector<8x32xf32>
    %254 = arith.mulf %248, %253 : vector<8x32xf32>
    %c0_42 = arith.constant 0 : index
    %c24 = arith.constant 24 : index
    %255 = vector.load %arg1[%c0_42, %c24] : memref<8x32xf32, #tpu.memory_space<vmem>>, vector<8x4xf32>
    %256 = vector.extract_strided_slice %255 {offsets = [0, 0], sizes = [8, 1], strides = [1, 1]} : vector<8x4xf32> to vector<8x1xf32>
    %257 = vector.broadcast %256 : vector<8x1xf32> to vector<8x128xf32>
    %258 = vector.broadcast %8 : vector<1x128xf32> to vector<8x128xf32>
    %259 = arith.mulf %257, %258 : vector<8x128xf32>
    %260 = vector.extract_strided_slice %255 {offsets = [0, 1], sizes = [8, 1], strides = [1, 1]} : vector<8x4xf32> to vector<8x1xf32>
    %261 = vector.broadcast %260 : vector<8x1xf32> to vector<8x128xf32>
    %262 = vector.broadcast %9 : vector<1x128xf32> to vector<8x128xf32>
    %263 = arith.mulf %261, %262 : vector<8x128xf32>
    %264 = arith.addf %259, %263 : vector<8x128xf32>
    %265 = vector.extract_strided_slice %255 {offsets = [0, 2], sizes = [8, 1], strides = [1, 1]} : vector<8x4xf32> to vector<8x1xf32>
    %266 = vector.broadcast %265 : vector<8x1xf32> to vector<8x128xf32>
    %267 = vector.broadcast %10 : vector<1x128xf32> to vector<8x128xf32>
    %268 = arith.mulf %266, %267 : vector<8x128xf32>
    %269 = arith.addf %264, %268 : vector<8x128xf32>
    %270 = vector.extract_strided_slice %255 {offsets = [0, 3], sizes = [8, 1], strides = [1, 1]} : vector<8x4xf32> to vector<8x1xf32>
    %271 = vector.broadcast %270 : vector<8x1xf32> to vector<8x128xf32>
    %272 = vector.broadcast %11 : vector<1x128xf32> to vector<8x128xf32>
    %273 = arith.mulf %271, %272 : vector<8x128xf32>
    %274 = arith.addf %269, %273 : vector<8x128xf32>
    %275 = vector.broadcast %2 : vector<1x128xf32> to vector<8x128xf32>
    %276 = arith.addf %274, %275 : vector<8x128xf32>
    %277 = arith.truncf %254 : vector<8x32xf32> to vector<8x32xbf16>
    %cst_43 = arith.constant dense<0.000000e+00> : vector<8x128xf32>
    %278 = tpu.matmul %277, %0, %cst_43 {dimension_numbers = #tpu.dot_dimension_numbers<[1], [0], [0], [1], [0, 0, 1, 1], [], []>} : vector<8x32xbf16>, vector<32x128xbf16>, vector<8x128xf32> -> vector<8x128xf32>
    %279 = arith.addf %276, %278 : vector<8x128xf32>
    %280 = arith.negf %279 : vector<8x128xf32>
    %281 = math.exp %280 : vector<8x128xf32>
    %cst_44 = arith.constant 1.000000e+00 : f32
    %282 = vector.broadcast %cst_44 : f32 to vector<8x128xf32>
    %283 = arith.addf %282, %281 : vector<8x128xf32>
    %284 = arith.divf %282, %283 : vector<8x128xf32>
    %285 = math.tanh %279 : vector<8x128xf32>
    %286 = vector.extract_strided_slice %284 {offsets = [0, 0], sizes = [8, 32], strides = [1, 1]} : vector<8x128xf32> to vector<8x32xf32>
    %287 = vector.extract_strided_slice %284 {offsets = [0, 32], sizes = [8, 32], strides = [1, 1]} : vector<8x128xf32> to vector<8x32xf32>
    %288 = vector.extract_strided_slice %284 {offsets = [0, 64], sizes = [8, 32], strides = [1, 1]} : vector<8x128xf32> to vector<8x32xf32>
    %289 = vector.extract_strided_slice %285 {offsets = [0, 96], sizes = [8, 32], strides = [1, 1]} : vector<8x128xf32> to vector<8x32xf32>
    %290 = arith.mulf %287, %252 : vector<8x32xf32>
    %291 = arith.mulf %286, %289 : vector<8x32xf32>
    %292 = arith.addf %290, %291 : vector<8x32xf32>
    %293 = math.tanh %292 : vector<8x32xf32>
    %294 = arith.mulf %288, %293 : vector<8x32xf32>
    %c0_45 = arith.constant 0 : index
    %c28 = arith.constant 28 : index
    %295 = vector.load %arg1[%c0_45, %c28] : memref<8x32xf32, #tpu.memory_space<vmem>>, vector<8x4xf32>
    %296 = vector.extract_strided_slice %295 {offsets = [0, 0], sizes = [8, 1], strides = [1, 1]} : vector<8x4xf32> to vector<8x1xf32>
    %297 = vector.broadcast %296 : vector<8x1xf32> to vector<8x128xf32>
    %298 = vector.broadcast %8 : vector<1x128xf32> to vector<8x128xf32>
    %299 = arith.mulf %297, %298 : vector<8x128xf32>
    %300 = vector.extract_strided_slice %295 {offsets = [0, 1], sizes = [8, 1], strides = [1, 1]} : vector<8x4xf32> to vector<8x1xf32>
    %301 = vector.broadcast %300 : vector<8x1xf32> to vector<8x128xf32>
    %302 = vector.broadcast %9 : vector<1x128xf32> to vector<8x128xf32>
    %303 = arith.mulf %301, %302 : vector<8x128xf32>
    %304 = arith.addf %299, %303 : vector<8x128xf32>
    %305 = vector.extract_strided_slice %295 {offsets = [0, 2], sizes = [8, 1], strides = [1, 1]} : vector<8x4xf32> to vector<8x1xf32>
    %306 = vector.broadcast %305 : vector<8x1xf32> to vector<8x128xf32>
    %307 = vector.broadcast %10 : vector<1x128xf32> to vector<8x128xf32>
    %308 = arith.mulf %306, %307 : vector<8x128xf32>
    %309 = arith.addf %304, %308 : vector<8x128xf32>
    %310 = vector.extract_strided_slice %295 {offsets = [0, 3], sizes = [8, 1], strides = [1, 1]} : vector<8x4xf32> to vector<8x1xf32>
    %311 = vector.broadcast %310 : vector<8x1xf32> to vector<8x128xf32>
    %312 = vector.broadcast %11 : vector<1x128xf32> to vector<8x128xf32>
    %313 = arith.mulf %311, %312 : vector<8x128xf32>
    %314 = arith.addf %309, %313 : vector<8x128xf32>
    %315 = vector.broadcast %2 : vector<1x128xf32> to vector<8x128xf32>
    %316 = arith.addf %314, %315 : vector<8x128xf32>
    %317 = arith.truncf %294 : vector<8x32xf32> to vector<8x32xbf16>
    %cst_46 = arith.constant dense<0.000000e+00> : vector<8x128xf32>
    %318 = tpu.matmul %317, %0, %cst_46 {dimension_numbers = #tpu.dot_dimension_numbers<[1], [0], [0], [1], [0, 0, 1, 1], [], []>} : vector<8x32xbf16>, vector<32x128xbf16>, vector<8x128xf32> -> vector<8x128xf32>
    %319 = arith.addf %316, %318 : vector<8x128xf32>
    %320 = arith.negf %319 : vector<8x128xf32>
    %321 = math.exp %320 : vector<8x128xf32>
    %cst_47 = arith.constant 1.000000e+00 : f32
    %322 = vector.broadcast %cst_47 : f32 to vector<8x128xf32>
    %323 = arith.addf %322, %321 : vector<8x128xf32>
    %324 = arith.divf %322, %323 : vector<8x128xf32>
    %325 = math.tanh %319 : vector<8x128xf32>
    %326 = vector.extract_strided_slice %324 {offsets = [0, 0], sizes = [8, 32], strides = [1, 1]} : vector<8x128xf32> to vector<8x32xf32>
    %327 = vector.extract_strided_slice %324 {offsets = [0, 32], sizes = [8, 32], strides = [1, 1]} : vector<8x128xf32> to vector<8x32xf32>
    %328 = vector.extract_strided_slice %324 {offsets = [0, 64], sizes = [8, 32], strides = [1, 1]} : vector<8x128xf32> to vector<8x32xf32>
    %329 = vector.extract_strided_slice %325 {offsets = [0, 96], sizes = [8, 32], strides = [1, 1]} : vector<8x128xf32> to vector<8x32xf32>
    %330 = arith.mulf %327, %292 : vector<8x32xf32>
    %331 = arith.mulf %326, %329 : vector<8x32xf32>
    %332 = arith.addf %330, %331 : vector<8x32xf32>
    %333 = math.tanh %332 : vector<8x32xf32>
    %334 = arith.mulf %328, %333 : vector<8x32xf32>
    %c0_48 = arith.constant 0 : index
    %c0_49 = arith.constant 0 : index
    %335 = vector.load %arg2[%c0_48, %c0_49] : memref<8x1xf32, #tpu.memory_space<vmem>>, vector<8x1xf32>
    %336 = vector.broadcast %335 : vector<8x1xf32> to vector<8x128xf32>
    %337 = vector.broadcast %12 : vector<1x128xf32> to vector<8x128xf32>
    %338 = arith.mulf %336, %337 : vector<8x128xf32>
    %339 = vector.broadcast %3 : vector<1x128xf32> to vector<8x128xf32>
    %340 = arith.addf %338, %339 : vector<8x128xf32>
    %341 = arith.truncf %334 : vector<8x32xf32> to vector<8x32xbf16>
    %cst_50 = arith.constant dense<0.000000e+00> : vector<8x128xf32>
    %342 = tpu.matmul %341, %1, %cst_50 {dimension_numbers = #tpu.dot_dimension_numbers<[1], [0], [0], [1], [0, 0, 1, 1], [], []>} : vector<8x32xbf16>, vector<32x128xbf16>, vector<8x128xf32> -> vector<8x128xf32>
    %343 = arith.addf %340, %342 : vector<8x128xf32>
    %344 = arith.negf %343 : vector<8x128xf32>
    %345 = math.exp %344 : vector<8x128xf32>
    %cst_51 = arith.constant 1.000000e+00 : f32
    %346 = vector.broadcast %cst_51 : f32 to vector<8x128xf32>
    %347 = arith.addf %346, %345 : vector<8x128xf32>
    %348 = arith.divf %346, %347 : vector<8x128xf32>
    %349 = math.tanh %343 : vector<8x128xf32>
    %350 = vector.extract_strided_slice %348 {offsets = [0, 0], sizes = [8, 32], strides = [1, 1]} : vector<8x128xf32> to vector<8x32xf32>
    %351 = vector.extract_strided_slice %348 {offsets = [0, 32], sizes = [8, 32], strides = [1, 1]} : vector<8x128xf32> to vector<8x32xf32>
    %352 = vector.extract_strided_slice %348 {offsets = [0, 64], sizes = [8, 32], strides = [1, 1]} : vector<8x128xf32> to vector<8x32xf32>
    %353 = vector.extract_strided_slice %349 {offsets = [0, 96], sizes = [8, 32], strides = [1, 1]} : vector<8x128xf32> to vector<8x32xf32>
    %354 = arith.mulf %351, %332 : vector<8x32xf32>
    %355 = arith.mulf %350, %353 : vector<8x32xf32>
    %356 = arith.addf %354, %355 : vector<8x32xf32>
    %357 = math.tanh %356 : vector<8x32xf32>
    %358 = arith.mulf %352, %357 : vector<8x32xf32>
    %cst_52 = arith.constant 0.000000e+00 : f32
    %359 = vector.broadcast %cst_52 : f32 to vector<8x32xf32>
    %360 = arith.maximumf %358, %359 : vector<8x32xf32>
    %361 = arith.truncf %360 : vector<8x32xf32> to vector<8x32xbf16>
    %cst_53 = arith.constant dense<0.000000e+00> : vector<8x32xf32>
    %362 = tpu.matmul %361, %4, %cst_53 {dimension_numbers = #tpu.dot_dimension_numbers<[1], [0], [0], [1], [0, 0, 1, 1], [], []>} : vector<8x32xbf16>, vector<32x32xbf16>, vector<8x32xf32> -> vector<8x32xf32>
    %363 = vector.broadcast %6 : vector<1x32xf32> to vector<8x32xf32>
    %364 = arith.addf %362, %363 : vector<8x32xf32>
    %cst_54 = arith.constant 0.000000e+00 : f32
    %365 = vector.broadcast %cst_54 : f32 to vector<8x32xf32>
    %366 = arith.maximumf %364, %365 : vector<8x32xf32>
    %367 = arith.truncf %366 : vector<8x32xf32> to vector<8x32xbf16>
    %cst_55 = arith.constant dense<0.000000e+00> : vector<8x1xf32>
    %368 = tpu.matmul %367, %5, %cst_55 {dimension_numbers = #tpu.dot_dimension_numbers<[1], [0], [0], [1], [0, 0, 1, 1], [], []>} : vector<8x32xbf16>, vector<32x1xbf16>, vector<8x1xf32> -> vector<8x1xf32>
    %369 = vector.broadcast %7 : vector<1x1xf32> to vector<8x1xf32>
    %370 = arith.addf %368, %369 : vector<8x1xf32>
    %c0_56 = arith.constant 0 : index
    %c0_57 = arith.constant 0 : index
    %371 = vector.load %arg13[%c0_56, %c0_57] : memref<8x8xf32, #tpu.memory_space<vmem>>, vector<8x1xf32>
    tpu.vector_store %arg13[%c0_56, %c0_57], %370 {strides = array<i32>} : memref<8x8xf32, #tpu.memory_space<vmem>>, vector<8x1xf32>,
    %372 = vector.broadcast %370 : vector<8x1xf32> to vector<8x128xf32>
    %373 = vector.broadcast %12 : vector<1x128xf32> to vector<8x128xf32>
    %374 = arith.mulf %372, %373 : vector<8x128xf32>
    %375 = vector.broadcast %3 : vector<1x128xf32> to vector<8x128xf32>
    %376 = arith.addf %374, %375 : vector<8x128xf32>
    %377 = arith.truncf %358 : vector<8x32xf32> to vector<8x32xbf16>
    %cst_58 = arith.constant dense<0.000000e+00> : vector<8x128xf32>
    %378 = tpu.matmul %377, %1, %cst_58 {dimension_numbers = #tpu.dot_dimension_numbers<[1], [0], [0], [1], [0, 0, 1, 1], [], []>} : vector<8x32xbf16>, vector<32x128xbf16>, vector<8x128xf32> -> vector<8x128xf32>
    %379 = arith.addf %376, %378 : vector<8x128xf32>
    %380 = arith.negf %379 : vector<8x128xf32>
    %381 = math.exp %380 : vector<8x128xf32>
    %cst_59 = arith.constant 1.000000e+00 : f32
    %382 = vector.broadcast %cst_59 : f32 to vector<8x128xf32>
    %383 = arith.addf %382, %381 : vector<8x128xf32>
    %384 = arith.divf %382, %383 : vector<8x128xf32>
    %385 = math.tanh %379 : vector<8x128xf32>
    %386 = vector.extract_strided_slice %384 {offsets = [0, 0], sizes = [8, 32], strides = [1, 1]} : vector<8x128xf32> to vector<8x32xf32>
    %387 = vector.extract_strided_slice %384 {offsets = [0, 32], sizes = [8, 32], strides = [1, 1]} : vector<8x128xf32> to vector<8x32xf32>
    %388 = vector.extract_strided_slice %384 {offsets = [0, 64], sizes = [8, 32], strides = [1, 1]} : vector<8x128xf32> to vector<8x32xf32>
    %389 = vector.extract_strided_slice %385 {offsets = [0, 96], sizes = [8, 32], strides = [1, 1]} : vector<8x128xf32> to vector<8x32xf32>
    %390 = arith.mulf %387, %356 : vector<8x32xf32>
    %391 = arith.mulf %386, %389 : vector<8x32xf32>
    %392 = arith.addf %390, %391 : vector<8x32xf32>
    %393 = math.tanh %392 : vector<8x32xf32>
    %394 = arith.mulf %388, %393 : vector<8x32xf32>
    %cst_60 = arith.constant 0.000000e+00 : f32
    %395 = vector.broadcast %cst_60 : f32 to vector<8x32xf32>
    %396 = arith.maximumf %394, %395 : vector<8x32xf32>
    %397 = arith.truncf %396 : vector<8x32xf32> to vector<8x32xbf16>
    %cst_61 = arith.constant dense<0.000000e+00> : vector<8x32xf32>
    %398 = tpu.matmul %397, %4, %cst_61 {dimension_numbers = #tpu.dot_dimension_numbers<[1], [0], [0], [1], [0, 0, 1, 1], [], []>} : vector<8x32xbf16>, vector<32x32xbf16>, vector<8x32xf32> -> vector<8x32xf32>
    %399 = vector.broadcast %6 : vector<1x32xf32> to vector<8x32xf32>
    %400 = arith.addf %398, %399 : vector<8x32xf32>
    %cst_62 = arith.constant 0.000000e+00 : f32
    %401 = vector.broadcast %cst_62 : f32 to vector<8x32xf32>
    %402 = arith.maximumf %400, %401 : vector<8x32xf32>
    %403 = arith.truncf %402 : vector<8x32xf32> to vector<8x32xbf16>
    %cst_63 = arith.constant dense<0.000000e+00> : vector<8x1xf32>
    %404 = tpu.matmul %403, %5, %cst_63 {dimension_numbers = #tpu.dot_dimension_numbers<[1], [0], [0], [1], [0, 0, 1, 1], [], []>} : vector<8x32xbf16>, vector<32x1xbf16>, vector<8x1xf32> -> vector<8x1xf32>
    %405 = vector.broadcast %7 : vector<1x1xf32> to vector<8x1xf32>
    %406 = arith.addf %404, %405 : vector<8x1xf32>
    %c0_64 = arith.constant 0 : index
    %c1_65 = arith.constant 1 : index
    %407 = vector.load %arg13[%c0_64, %c1_65] : memref<8x8xf32, #tpu.memory_space<vmem>>, vector<8x1xf32>
    tpu.vector_store %arg13[%c0_64, %c1_65], %406 {strides = array<i32>} : memref<8x8xf32, #tpu.memory_space<vmem>>, vector<8x1xf32>,
    %408 = vector.broadcast %406 : vector<8x1xf32> to vector<8x128xf32>
    %409 = vector.broadcast %12 : vector<1x128xf32> to vector<8x128xf32>
    %410 = arith.mulf %408, %409 : vector<8x128xf32>
    %411 = vector.broadcast %3 : vector<1x128xf32> to vector<8x128xf32>
    %412 = arith.addf %410, %411 : vector<8x128xf32>
    %413 = arith.truncf %394 : vector<8x32xf32> to vector<8x32xbf16>
    %cst_66 = arith.constant dense<0.000000e+00> : vector<8x128xf32>
    %414 = tpu.matmul %413, %1, %cst_66 {dimension_numbers = #tpu.dot_dimension_numbers<[1], [0], [0], [1], [0, 0, 1, 1], [], []>} : vector<8x32xbf16>, vector<32x128xbf16>, vector<8x128xf32> -> vector<8x128xf32>
    %415 = arith.addf %412, %414 : vector<8x128xf32>
    %416 = arith.negf %415 : vector<8x128xf32>
    %417 = math.exp %416 : vector<8x128xf32>
    %cst_67 = arith.constant 1.000000e+00 : f32
    %418 = vector.broadcast %cst_67 : f32 to vector<8x128xf32>
    %419 = arith.addf %418, %417 : vector<8x128xf32>
    %420 = arith.divf %418, %419 : vector<8x128xf32>
    %421 = math.tanh %415 : vector<8x128xf32>
    %422 = vector.extract_strided_slice %420 {offsets = [0, 0], sizes = [8, 32], strides = [1, 1]} : vector<8x128xf32> to vector<8x32xf32>
    %423 = vector.extract_strided_slice %420 {offsets = [0, 32], sizes = [8, 32], strides = [1, 1]} : vector<8x128xf32> to vector<8x32xf32>
    %424 = vector.extract_strided_slice %420 {offsets = [0, 64], sizes = [8, 32], strides = [1, 1]} : vector<8x128xf32> to vector<8x32xf32>
    %425 = vector.extract_strided_slice %421 {offsets = [0, 96], sizes = [8, 32], strides = [1, 1]} : vector<8x128xf32> to vector<8x32xf32>
    %426 = arith.mulf %423, %392 : vector<8x32xf32>
    %427 = arith.mulf %422, %425 : vector<8x32xf32>
    %428 = arith.addf %426, %427 : vector<8x32xf32>
    %429 = math.tanh %428 : vector<8x32xf32>
    %430 = arith.mulf %424, %429 : vector<8x32xf32>
    %cst_68 = arith.constant 0.000000e+00 : f32
    %431 = vector.broadcast %cst_68 : f32 to vector<8x32xf32>
    %432 = arith.maximumf %430, %431 : vector<8x32xf32>
    %433 = arith.truncf %432 : vector<8x32xf32> to vector<8x32xbf16>
    %cst_69 = arith.constant dense<0.000000e+00> : vector<8x32xf32>
    %434 = tpu.matmul %433, %4, %cst_69 {dimension_numbers = #tpu.dot_dimension_numbers<[1], [0], [0], [1], [0, 0, 1, 1], [], []>} : vector<8x32xbf16>, vector<32x32xbf16>, vector<8x32xf32> -> vector<8x32xf32>
    %435 = vector.broadcast %6 : vector<1x32xf32> to vector<8x32xf32>
    %436 = arith.addf %434, %435 : vector<8x32xf32>
    %cst_70 = arith.constant 0.000000e+00 : f32
    %437 = vector.broadcast %cst_70 : f32 to vector<8x32xf32>
    %438 = arith.maximumf %436, %437 : vector<8x32xf32>
    %439 = arith.truncf %438 : vector<8x32xf32> to vector<8x32xbf16>
    %cst_71 = arith.constant dense<0.000000e+00> : vector<8x1xf32>
    %440 = tpu.matmul %439, %5, %cst_71 {dimension_numbers = #tpu.dot_dimension_numbers<[1], [0], [0], [1], [0, 0, 1, 1], [], []>} : vector<8x32xbf16>, vector<32x1xbf16>, vector<8x1xf32> -> vector<8x1xf32>
    %441 = vector.broadcast %7 : vector<1x1xf32> to vector<8x1xf32>
    %442 = arith.addf %440, %441 : vector<8x1xf32>
    %c0_72 = arith.constant 0 : index
    %c2_73 = arith.constant 2 : index
    %443 = vector.load %arg13[%c0_72, %c2_73] : memref<8x8xf32, #tpu.memory_space<vmem>>, vector<8x1xf32>
    tpu.vector_store %arg13[%c0_72, %c2_73], %442 {strides = array<i32>} : memref<8x8xf32, #tpu.memory_space<vmem>>, vector<8x1xf32>,
    %444 = vector.broadcast %442 : vector<8x1xf32> to vector<8x128xf32>
    %445 = vector.broadcast %12 : vector<1x128xf32> to vector<8x128xf32>
    %446 = arith.mulf %444, %445 : vector<8x128xf32>
    %447 = vector.broadcast %3 : vector<1x128xf32> to vector<8x128xf32>
    %448 = arith.addf %446, %447 : vector<8x128xf32>
    %449 = arith.truncf %430 : vector<8x32xf32> to vector<8x32xbf16>
    %cst_74 = arith.constant dense<0.000000e+00> : vector<8x128xf32>
    %450 = tpu.matmul %449, %1, %cst_74 {dimension_numbers = #tpu.dot_dimension_numbers<[1], [0], [0], [1], [0, 0, 1, 1], [], []>} : vector<8x32xbf16>, vector<32x128xbf16>, vector<8x128xf32> -> vector<8x128xf32>
    %451 = arith.addf %448, %450 : vector<8x128xf32>
    %452 = arith.negf %451 : vector<8x128xf32>
    %453 = math.exp %452 : vector<8x128xf32>
    %cst_75 = arith.constant 1.000000e+00 : f32
    %454 = vector.broadcast %cst_75 : f32 to vector<8x128xf32>
    %455 = arith.addf %454, %453 : vector<8x128xf32>
    %456 = arith.divf %454, %455 : vector<8x128xf32>
    %457 = math.tanh %451 : vector<8x128xf32>
    %458 = vector.extract_strided_slice %456 {offsets = [0, 0], sizes = [8, 32], strides = [1, 1]} : vector<8x128xf32> to vector<8x32xf32>
    %459 = vector.extract_strided_slice %456 {offsets = [0, 32], sizes = [8, 32], strides = [1, 1]} : vector<8x128xf32> to vector<8x32xf32>
    %460 = vector.extract_strided_slice %456 {offsets = [0, 64], sizes = [8, 32], strides = [1, 1]} : vector<8x128xf32> to vector<8x32xf32>
    %461 = vector.extract_strided_slice %457 {offsets = [0, 96], sizes = [8, 32], strides = [1, 1]} : vector<8x128xf32> to vector<8x32xf32>
    %462 = arith.mulf %459, %428 : vector<8x32xf32>
    %463 = arith.mulf %458, %461 : vector<8x32xf32>
    %464 = arith.addf %462, %463 : vector<8x32xf32>
    %465 = math.tanh %464 : vector<8x32xf32>
    %466 = arith.mulf %460, %465 : vector<8x32xf32>
    %cst_76 = arith.constant 0.000000e+00 : f32
    %467 = vector.broadcast %cst_76 : f32 to vector<8x32xf32>
    %468 = arith.maximumf %466, %467 : vector<8x32xf32>
    %469 = arith.truncf %468 : vector<8x32xf32> to vector<8x32xbf16>
    %cst_77 = arith.constant dense<0.000000e+00> : vector<8x32xf32>
    %470 = tpu.matmul %469, %4, %cst_77 {dimension_numbers = #tpu.dot_dimension_numbers<[1], [0], [0], [1], [0, 0, 1, 1], [], []>} : vector<8x32xbf16>, vector<32x32xbf16>, vector<8x32xf32> -> vector<8x32xf32>
    %471 = vector.broadcast %6 : vector<1x32xf32> to vector<8x32xf32>
    %472 = arith.addf %470, %471 : vector<8x32xf32>
    %cst_78 = arith.constant 0.000000e+00 : f32
    %473 = vector.broadcast %cst_78 : f32 to vector<8x32xf32>
    %474 = arith.maximumf %472, %473 : vector<8x32xf32>
    %475 = arith.truncf %474 : vector<8x32xf32> to vector<8x32xbf16>
    %cst_79 = arith.constant dense<0.000000e+00> : vector<8x1xf32>
    %476 = tpu.matmul %475, %5, %cst_79 {dimension_numbers = #tpu.dot_dimension_numbers<[1], [0], [0], [1], [0, 0, 1, 1], [], []>} : vector<8x32xbf16>, vector<32x1xbf16>, vector<8x1xf32> -> vector<8x1xf32>
    %477 = vector.broadcast %7 : vector<1x1xf32> to vector<8x1xf32>
    %478 = arith.addf %476, %477 : vector<8x1xf32>
    %c0_80 = arith.constant 0 : index
    %c3_81 = arith.constant 3 : index
    %479 = vector.load %arg13[%c0_80, %c3_81] : memref<8x8xf32, #tpu.memory_space<vmem>>, vector<8x1xf32>
    tpu.vector_store %arg13[%c0_80, %c3_81], %478 {strides = array<i32>} : memref<8x8xf32, #tpu.memory_space<vmem>>, vector<8x1xf32>,
    %480 = vector.broadcast %478 : vector<8x1xf32> to vector<8x128xf32>
    %481 = vector.broadcast %12 : vector<1x128xf32> to vector<8x128xf32>
    %482 = arith.mulf %480, %481 : vector<8x128xf32>
    %483 = vector.broadcast %3 : vector<1x128xf32> to vector<8x128xf32>
    %484 = arith.addf %482, %483 : vector<8x128xf32>
    %485 = arith.truncf %466 : vector<8x32xf32> to vector<8x32xbf16>
    %cst_82 = arith.constant dense<0.000000e+00> : vector<8x128xf32>
    %486 = tpu.matmul %485, %1, %cst_82 {dimension_numbers = #tpu.dot_dimension_numbers<[1], [0], [0], [1], [0, 0, 1, 1], [], []>} : vector<8x32xbf16>, vector<32x128xbf16>, vector<8x128xf32> -> vector<8x128xf32>
    %487 = arith.addf %484, %486 : vector<8x128xf32>
    %488 = arith.negf %487 : vector<8x128xf32>
    %489 = math.exp %488 : vector<8x128xf32>
    %cst_83 = arith.constant 1.000000e+00 : f32
    %490 = vector.broadcast %cst_83 : f32 to vector<8x128xf32>
    %491 = arith.addf %490, %489 : vector<8x128xf32>
    %492 = arith.divf %490, %491 : vector<8x128xf32>
    %493 = math.tanh %487 : vector<8x128xf32>
    %494 = vector.extract_strided_slice %492 {offsets = [0, 0], sizes = [8, 32], strides = [1, 1]} : vector<8x128xf32> to vector<8x32xf32>
    %495 = vector.extract_strided_slice %492 {offsets = [0, 32], sizes = [8, 32], strides = [1, 1]} : vector<8x128xf32> to vector<8x32xf32>
    %496 = vector.extract_strided_slice %492 {offsets = [0, 64], sizes = [8, 32], strides = [1, 1]} : vector<8x128xf32> to vector<8x32xf32>
    %497 = vector.extract_strided_slice %493 {offsets = [0, 96], sizes = [8, 32], strides = [1, 1]} : vector<8x128xf32> to vector<8x32xf32>
    %498 = arith.mulf %495, %464 : vector<8x32xf32>
    %499 = arith.mulf %494, %497 : vector<8x32xf32>
    %500 = arith.addf %498, %499 : vector<8x32xf32>
    %501 = math.tanh %500 : vector<8x32xf32>
    %502 = arith.mulf %496, %501 : vector<8x32xf32>
    %cst_84 = arith.constant 0.000000e+00 : f32
    %503 = vector.broadcast %cst_84 : f32 to vector<8x32xf32>
    %504 = arith.maximumf %502, %503 : vector<8x32xf32>
    %505 = arith.truncf %504 : vector<8x32xf32> to vector<8x32xbf16>
    %cst_85 = arith.constant dense<0.000000e+00> : vector<8x32xf32>
    %506 = tpu.matmul %505, %4, %cst_85 {dimension_numbers = #tpu.dot_dimension_numbers<[1], [0], [0], [1], [0, 0, 1, 1], [], []>} : vector<8x32xbf16>, vector<32x32xbf16>, vector<8x32xf32> -> vector<8x32xf32>
    %507 = vector.broadcast %6 : vector<1x32xf32> to vector<8x32xf32>
    %508 = arith.addf %506, %507 : vector<8x32xf32>
    %cst_86 = arith.constant 0.000000e+00 : f32
    %509 = vector.broadcast %cst_86 : f32 to vector<8x32xf32>
    %510 = arith.maximumf %508, %509 : vector<8x32xf32>
    %511 = arith.truncf %510 : vector<8x32xf32> to vector<8x32xbf16>
    %cst_87 = arith.constant dense<0.000000e+00> : vector<8x1xf32>
    %512 = tpu.matmul %511, %5, %cst_87 {dimension_numbers = #tpu.dot_dimension_numbers<[1], [0], [0], [1], [0, 0, 1, 1], [], []>} : vector<8x32xbf16>, vector<32x1xbf16>, vector<8x1xf32> -> vector<8x1xf32>
    %513 = vector.broadcast %7 : vector<1x1xf32> to vector<8x1xf32>
    %514 = arith.addf %512, %513 : vector<8x1xf32>
    %c0_88 = arith.constant 0 : index
    %c4_89 = arith.constant 4 : index
    %515 = vector.load %arg13[%c0_88, %c4_89] : memref<8x8xf32, #tpu.memory_space<vmem>>, vector<8x1xf32>
    tpu.vector_store %arg13[%c0_88, %c4_89], %514 {strides = array<i32>} : memref<8x8xf32, #tpu.memory_space<vmem>>, vector<8x1xf32>,
    %516 = vector.broadcast %514 : vector<8x1xf32> to vector<8x128xf32>
    %517 = vector.broadcast %12 : vector<1x128xf32> to vector<8x128xf32>
    %518 = arith.mulf %516, %517 : vector<8x128xf32>
    %519 = vector.broadcast %3 : vector<1x128xf32> to vector<8x128xf32>
    %520 = arith.addf %518, %519 : vector<8x128xf32>
    %521 = arith.truncf %502 : vector<8x32xf32> to vector<8x32xbf16>
    %cst_90 = arith.constant dense<0.000000e+00> : vector<8x128xf32>
    %522 = tpu.matmul %521, %1, %cst_90 {dimension_numbers = #tpu.dot_dimension_numbers<[1], [0], [0], [1], [0, 0, 1, 1], [], []>} : vector<8x32xbf16>, vector<32x128xbf16>, vector<8x128xf32> -> vector<8x128xf32>
    %523 = arith.addf %520, %522 : vector<8x128xf32>
    %524 = arith.negf %523 : vector<8x128xf32>
    %525 = math.exp %524 : vector<8x128xf32>
    %cst_91 = arith.constant 1.000000e+00 : f32
    %526 = vector.broadcast %cst_91 : f32 to vector<8x128xf32>
    %527 = arith.addf %526, %525 : vector<8x128xf32>
    %528 = arith.divf %526, %527 : vector<8x128xf32>
    %529 = math.tanh %523 : vector<8x128xf32>
    %530 = vector.extract_strided_slice %528 {offsets = [0, 0], sizes = [8, 32], strides = [1, 1]} : vector<8x128xf32> to vector<8x32xf32>
    %531 = vector.extract_strided_slice %528 {offsets = [0, 32], sizes = [8, 32], strides = [1, 1]} : vector<8x128xf32> to vector<8x32xf32>
    %532 = vector.extract_strided_slice %528 {offsets = [0, 64], sizes = [8, 32], strides = [1, 1]} : vector<8x128xf32> to vector<8x32xf32>
    %533 = vector.extract_strided_slice %529 {offsets = [0, 96], sizes = [8, 32], strides = [1, 1]} : vector<8x128xf32> to vector<8x32xf32>
    %534 = arith.mulf %531, %500 : vector<8x32xf32>
    %535 = arith.mulf %530, %533 : vector<8x32xf32>
    %536 = arith.addf %534, %535 : vector<8x32xf32>
    %537 = math.tanh %536 : vector<8x32xf32>
    %538 = arith.mulf %532, %537 : vector<8x32xf32>
    %cst_92 = arith.constant 0.000000e+00 : f32
    %539 = vector.broadcast %cst_92 : f32 to vector<8x32xf32>
    %540 = arith.maximumf %538, %539 : vector<8x32xf32>
    %541 = arith.truncf %540 : vector<8x32xf32> to vector<8x32xbf16>
    %cst_93 = arith.constant dense<0.000000e+00> : vector<8x32xf32>
    %542 = tpu.matmul %541, %4, %cst_93 {dimension_numbers = #tpu.dot_dimension_numbers<[1], [0], [0], [1], [0, 0, 1, 1], [], []>} : vector<8x32xbf16>, vector<32x32xbf16>, vector<8x32xf32> -> vector<8x32xf32>
    %543 = vector.broadcast %6 : vector<1x32xf32> to vector<8x32xf32>
    %544 = arith.addf %542, %543 : vector<8x32xf32>
    %cst_94 = arith.constant 0.000000e+00 : f32
    %545 = vector.broadcast %cst_94 : f32 to vector<8x32xf32>
    %546 = arith.maximumf %544, %545 : vector<8x32xf32>
    %547 = arith.truncf %546 : vector<8x32xf32> to vector<8x32xbf16>
    %cst_95 = arith.constant dense<0.000000e+00> : vector<8x1xf32>
    %548 = tpu.matmul %547, %5, %cst_95 {dimension_numbers = #tpu.dot_dimension_numbers<[1], [0], [0], [1], [0, 0, 1, 1], [], []>} : vector<8x32xbf16>, vector<32x1xbf16>, vector<8x1xf32> -> vector<8x1xf32>
    %549 = vector.broadcast %7 : vector<1x1xf32> to vector<8x1xf32>
    %550 = arith.addf %548, %549 : vector<8x1xf32>
    %c0_96 = arith.constant 0 : index
    %c5 = arith.constant 5 : index
    %551 = vector.load %arg13[%c0_96, %c5] : memref<8x8xf32, #tpu.memory_space<vmem>>, vector<8x1xf32>
    tpu.vector_store %arg13[%c0_96, %c5], %550 {strides = array<i32>} : memref<8x8xf32, #tpu.memory_space<vmem>>, vector<8x1xf32>,
    %552 = vector.broadcast %550 : vector<8x1xf32> to vector<8x128xf32>
    %553 = vector.broadcast %12 : vector<1x128xf32> to vector<8x128xf32>
    %554 = arith.mulf %552, %553 : vector<8x128xf32>
    %555 = vector.broadcast %3 : vector<1x128xf32> to vector<8x128xf32>
    %556 = arith.addf %554, %555 : vector<8x128xf32>
    %557 = arith.truncf %538 : vector<8x32xf32> to vector<8x32xbf16>
    %cst_97 = arith.constant dense<0.000000e+00> : vector<8x128xf32>
    %558 = tpu.matmul %557, %1, %cst_97 {dimension_numbers = #tpu.dot_dimension_numbers<[1], [0], [0], [1], [0, 0, 1, 1], [], []>} : vector<8x32xbf16>, vector<32x128xbf16>, vector<8x128xf32> -> vector<8x128xf32>
    %559 = arith.addf %556, %558 : vector<8x128xf32>
    %560 = arith.negf %559 : vector<8x128xf32>
    %561 = math.exp %560 : vector<8x128xf32>
    %cst_98 = arith.constant 1.000000e+00 : f32
    %562 = vector.broadcast %cst_98 : f32 to vector<8x128xf32>
    %563 = arith.addf %562, %561 : vector<8x128xf32>
    %564 = arith.divf %562, %563 : vector<8x128xf32>
    %565 = math.tanh %559 : vector<8x128xf32>
    %566 = vector.extract_strided_slice %564 {offsets = [0, 0], sizes = [8, 32], strides = [1, 1]} : vector<8x128xf32> to vector<8x32xf32>
    %567 = vector.extract_strided_slice %564 {offsets = [0, 32], sizes = [8, 32], strides = [1, 1]} : vector<8x128xf32> to vector<8x32xf32>
    %568 = vector.extract_strided_slice %564 {offsets = [0, 64], sizes = [8, 32], strides = [1, 1]} : vector<8x128xf32> to vector<8x32xf32>
    %569 = vector.extract_strided_slice %565 {offsets = [0, 96], sizes = [8, 32], strides = [1, 1]} : vector<8x128xf32> to vector<8x32xf32>
    %570 = arith.mulf %567, %536 : vector<8x32xf32>
    %571 = arith.mulf %566, %569 : vector<8x32xf32>
    %572 = arith.addf %570, %571 : vector<8x32xf32>
    %573 = math.tanh %572 : vector<8x32xf32>
    %574 = arith.mulf %568, %573 : vector<8x32xf32>
    %cst_99 = arith.constant 0.000000e+00 : f32
    %575 = vector.broadcast %cst_99 : f32 to vector<8x32xf32>
    %576 = arith.maximumf %574, %575 : vector<8x32xf32>
    %577 = arith.truncf %576 : vector<8x32xf32> to vector<8x32xbf16>
    %cst_100 = arith.constant dense<0.000000e+00> : vector<8x32xf32>
    %578 = tpu.matmul %577, %4, %cst_100 {dimension_numbers = #tpu.dot_dimension_numbers<[1], [0], [0], [1], [0, 0, 1, 1], [], []>} : vector<8x32xbf16>, vector<32x32xbf16>, vector<8x32xf32> -> vector<8x32xf32>
    %579 = vector.broadcast %6 : vector<1x32xf32> to vector<8x32xf32>
    %580 = arith.addf %578, %579 : vector<8x32xf32>
    %cst_101 = arith.constant 0.000000e+00 : f32
    %581 = vector.broadcast %cst_101 : f32 to vector<8x32xf32>
    %582 = arith.maximumf %580, %581 : vector<8x32xf32>
    %583 = arith.truncf %582 : vector<8x32xf32> to vector<8x32xbf16>
    %cst_102 = arith.constant dense<0.000000e+00> : vector<8x1xf32>
    %584 = tpu.matmul %583, %5, %cst_102 {dimension_numbers = #tpu.dot_dimension_numbers<[1], [0], [0], [1], [0, 0, 1, 1], [], []>} : vector<8x32xbf16>, vector<32x1xbf16>, vector<8x1xf32> -> vector<8x1xf32>
    %585 = vector.broadcast %7 : vector<1x1xf32> to vector<8x1xf32>
    %586 = arith.addf %584, %585 : vector<8x1xf32>
    %c0_103 = arith.constant 0 : index
    %c6 = arith.constant 6 : index
    %587 = vector.load %arg13[%c0_103, %c6] : memref<8x8xf32, #tpu.memory_space<vmem>>, vector<8x1xf32>
    tpu.vector_store %arg13[%c0_103, %c6], %586 {strides = array<i32>} : memref<8x8xf32, #tpu.memory_space<vmem>>, vector<8x1xf32>,
    %588 = vector.broadcast %586 : vector<8x1xf32> to vector<8x128xf32>
    %589 = vector.broadcast %12 : vector<1x128xf32> to vector<8x128xf32>
    %590 = arith.mulf %588, %589 : vector<8x128xf32>
    %591 = vector.broadcast %3 : vector<1x128xf32> to vector<8x128xf32>
    %592 = arith.addf %590, %591 : vector<8x128xf32>
    %593 = arith.truncf %574 : vector<8x32xf32> to vector<8x32xbf16>
    %cst_104 = arith.constant dense<0.000000e+00> : vector<8x128xf32>
    %594 = tpu.matmul %593, %1, %cst_104 {dimension_numbers = #tpu.dot_dimension_numbers<[1], [0], [0], [1], [0, 0, 1, 1], [], []>} : vector<8x32xbf16>, vector<32x128xbf16>, vector<8x128xf32> -> vector<8x128xf32>
    %595 = arith.addf %592, %594 : vector<8x128xf32>
    %596 = arith.negf %595 : vector<8x128xf32>
    %597 = math.exp %596 : vector<8x128xf32>
    %cst_105 = arith.constant 1.000000e+00 : f32
    %598 = vector.broadcast %cst_105 : f32 to vector<8x128xf32>
    %599 = arith.addf %598, %597 : vector<8x128xf32>
    %600 = arith.divf %598, %599 : vector<8x128xf32>
    %601 = math.tanh %595 : vector<8x128xf32>
    %602 = vector.extract_strided_slice %600 {offsets = [0, 0], sizes = [8, 32], strides = [1, 1]} : vector<8x128xf32> to vector<8x32xf32>
    %603 = vector.extract_strided_slice %600 {offsets = [0, 32], sizes = [8, 32], strides = [1, 1]} : vector<8x128xf32> to vector<8x32xf32>
    %604 = vector.extract_strided_slice %600 {offsets = [0, 64], sizes = [8, 32], strides = [1, 1]} : vector<8x128xf32> to vector<8x32xf32>
    %605 = vector.extract_strided_slice %601 {offsets = [0, 96], sizes = [8, 32], strides = [1, 1]} : vector<8x128xf32> to vector<8x32xf32>
    %606 = arith.mulf %603, %572 : vector<8x32xf32>
    %607 = arith.mulf %602, %605 : vector<8x32xf32>
    %608 = arith.addf %606, %607 : vector<8x32xf32>
    %609 = math.tanh %608 : vector<8x32xf32>
    %610 = arith.mulf %604, %609 : vector<8x32xf32>
    %cst_106 = arith.constant 0.000000e+00 : f32
    %611 = vector.broadcast %cst_106 : f32 to vector<8x32xf32>
    %612 = arith.maximumf %610, %611 : vector<8x32xf32>
    %613 = arith.truncf %612 : vector<8x32xf32> to vector<8x32xbf16>
    %cst_107 = arith.constant dense<0.000000e+00> : vector<8x32xf32>
    %614 = tpu.matmul %613, %4, %cst_107 {dimension_numbers = #tpu.dot_dimension_numbers<[1], [0], [0], [1], [0, 0, 1, 1], [], []>} : vector<8x32xbf16>, vector<32x32xbf16>, vector<8x32xf32> -> vector<8x32xf32>
    %615 = vector.broadcast %6 : vector<1x32xf32> to vector<8x32xf32>
    %616 = arith.addf %614, %615 : vector<8x32xf32>
    %cst_108 = arith.constant 0.000000e+00 : f32
    %617 = vector.broadcast %cst_108 : f32 to vector<8x32xf32>
    %618 = arith.maximumf %616, %617 : vector<8x32xf32>
    %619 = arith.truncf %618 : vector<8x32xf32> to vector<8x32xbf16>
    %cst_109 = arith.constant dense<0.000000e+00> : vector<8x1xf32>
    %620 = tpu.matmul %619, %5, %cst_109 {dimension_numbers = #tpu.dot_dimension_numbers<[1], [0], [0], [1], [0, 0, 1, 1], [], []>} : vector<8x32xbf16>, vector<32x1xbf16>, vector<8x1xf32> -> vector<8x1xf32>
    %621 = vector.broadcast %7 : vector<1x1xf32> to vector<8x1xf32>
    %622 = arith.addf %620, %621 : vector<8x1xf32>
    %c0_110 = arith.constant 0 : index
    %c7 = arith.constant 7 : index
    %623 = vector.load %arg13[%c0_110, %c7] : memref<8x8xf32, #tpu.memory_space<vmem>>, vector<8x1xf32>
    tpu.vector_store %arg13[%c0_110, %c7], %622 {strides = array<i32>} : memref<8x8xf32, #tpu.memory_space<vmem>>, vector<8x1xf32>,
    return
  }
  func.func @transform_0(%arg0: i32) -> (i32, i32) {
    %c0_i32 = arith.constant 0 : i32
    %c0_i32_0 = arith.constant 0 : i32
    return %arg0, %c0_i32 : i32, i32
  }
  func.func @transform_1(%arg0: i32) -> (i32, i32) {
    %c0_i32 = arith.constant 0 : i32
    %c0_i32_0 = arith.constant 0 : i32
    return %arg0, %c0_i32 : i32, i32
  }
  func.func @transform_2(%arg0: i32) -> (i32, i32) {
    %c0_i32 = arith.constant 0 : i32
    %c0_i32_0 = arith.constant 0 : i32
    %c0_i32_1 = arith.constant 0 : i32
    return %c0_i32, %c0_i32_0 : i32, i32
  }
  func.func @transform_3(%arg0: i32) -> (i32, i32) {
    %c0_i32 = arith.constant 0 : i32
    %c0_i32_0 = arith.constant 0 : i32
    %c0_i32_1 = arith.constant 0 : i32
    return %c0_i32, %c0_i32_0 : i32, i32
  }
  func.func @transform_4(%arg0: i32) -> (i32, i32) {
    %c0_i32 = arith.constant 0 : i32
    %c0_i32_0 = arith.constant 0 : i32
    %c0_i32_1 = arith.constant 0 : i32
    return %c0_i32, %c0_i32_0 : i32, i32
  }
  func.func @transform_5(%arg0: i32) -> (i32, i32) {
    %c0_i32 = arith.constant 0 : i32
    %c0_i32_0 = arith.constant 0 : i32
    %c0_i32_1 = arith.constant 0 : i32
    return %c0_i32, %c0_i32_0 : i32, i32
  }
  func.func @transform_6(%arg0: i32) -> (i32, i32) {
    %c0_i32 = arith.constant 0 : i32
    %c0_i32_0 = arith.constant 0 : i32
    %c0_i32_1 = arith.constant 0 : i32
    return %c0_i32, %c0_i32_0 : i32, i32
  }
  func.func @transform_7(%arg0: i32) -> (i32, i32) {
    %c0_i32 = arith.constant 0 : i32
    %c0_i32_0 = arith.constant 0 : i32
    %c0_i32_1 = arith.constant 0 : i32
    return %c0_i32, %c0_i32_0 : i32, i32
  }
  func.func @transform_8(%arg0: i32) -> (i32, i32) {
    %c0_i32 = arith.constant 0 : i32
    %c0_i32_0 = arith.constant 0 : i32
    %c0_i32_1 = arith.constant 0 : i32
    return %c0_i32, %c0_i32_0 : i32, i32
  }
  func.func @transform_9(%arg0: i32) -> (i32, i32) {
    %c0_i32 = arith.constant 0 : i32
    %c0_i32_0 = arith.constant 0 : i32
    %c0_i32_1 = arith.constant 0 : i32
    return %c0_i32, %c0_i32_0 : i32, i32
  }
  func.func @transform_10(%arg0: i32) -> (i32, i32) {
    %c0_i32 = arith.constant 0 : i32
    %c0_i32_0 = arith.constant 0 : i32
    %c0_i32_1 = arith.constant 0 : i32
    return %c0_i32, %c0_i32_0 : i32, i32
  }
  func.func @transform_11(%arg0: i32) -> (i32, i32) {
    %c0_i32 = arith.constant 0 : i32
    %c0_i32_0 = arith.constant 0 : i32
    %c0_i32_1 = arith.constant 0 : i32
    return %c0_i32, %c0_i32_0 : i32, i32
  }
  func.func @transform_12(%arg0: i32) -> (i32, i32) {
    %c0_i32 = arith.constant 0 : i32
    %c0_i32_0 = arith.constant 0 : i32
    return %arg0, %c0_i32 : i32, i32
  }
}

</mosaic_0001>

<llo_original>
// kernel: tpu_custom_call.1
$region0: #{tpu_custom_call.1}
  #allocation0 [shape = 'u32[]', space=smem, size = 0x4, offset = 0x4, fixed_abs, tag = 'smem constant byte address 0x4 - core index']
  #allocation1 [shape = 'u32[144,128]{1,0:T(1,128)}', space=vmem, size = 0x12000, scoped, tag = 'internal scratch']
  #allocation2 [shape = 'f32[1,1]{1,0:T(1,128)S(1)}', space=vmem, size = 0x200, scoped, tag = 'scoped memory for tpu_custom_call.1']
  %s0 = inlined_call_operand.vmem [shape: f32[8,32], index: 0, kind: input, shape index: {}]
  %s1 = inlined_call_operand.vmem [shape: f32[8,1], index: 1, kind: input, shape index: {}]
  %s2 = inlined_call_operand.hbm [shape: f32[4,128], index: 2, kind: input, shape index: {}]
  %s3 = inlined_call_operand.vmem [shape: bf16[32,128], index: 3, kind: input, shape index: {}]
  %s4 = inlined_call_operand.vmem [shape: f32[1,128], index: 4, kind: input, shape index: {}]
  %s5 = inlined_call_operand.vmem [shape: f32[1,128], index: 5, kind: input, shape index: {}]
  %s6 = inlined_call_operand.vmem [shape: bf16[32,128], index: 6, kind: input, shape index: {}]
  %s7 = inlined_call_operand.hbm [shape: f32[1,128], index: 7, kind: input, shape index: {}]
  %s8 = inlined_call_operand.vmem [shape: bf16[32,32], index: 8, kind: input, shape index: {}]
  %s9 = inlined_call_operand.vmem [shape: f32[1,32], index: 9, kind: input, shape index: {}]
  %s10 = inlined_call_operand.vmem [shape: bf16[32,1], index: 10, kind: input, shape index: {}]
  %s11 = inlined_call_operand.<no memory space> [shape: f32[1,1], index: 11, kind: input, shape index: {}]
  %s12 = inlined_call_operand.hbm [shape: f32[8,8], index: 12, kind: output, shape index: {}]
  %s13 = sld [smem:[#allocation0]]
  $region66: #{tpu_custom_call.1} parent=0
    _
  %s15 = ssub.s32 1, %s13
  %s16 = scalar_select 0, %s15, %s13
  %v17 = vstv %s11
  %18 = vst [vmem:[#allocation2] sm:$0x1] %v17
  $region1: #{tpu_custom_call.1} parent=0
    #allocation3 [shape = 'u8[2048]{0}', space=vmem, size = 0x800, scoped, tag = 'input window, operand 2, single buffered']
    #allocation4 [shape = 's32[1]{0}', space=sflag, size = 0x4, scoped, tag = 'scoped memory for tpu_custom_call.1']
    #allocation5 [shape = 's32[1]{0}', space=sflag, size = 0x4, scoped, tag = 'scoped memory for tpu_custom_call.1']
    #allocation6 [shape = 'u8[512]{0}', space=vmem, size = 0x400, scoped, tag = 'input window, operand 7, single buffered']
    #allocation7 [shape = 's32[1]{0}', space=sflag, size = 0x4, scoped, tag = 'scoped memory for tpu_custom_call.1']
    #allocation8 [shape = 'u8[4096]{0}', space=vmem, size = 0x1000, scoped, tag = 'output window, operand 0, single buffered']
    %19 = vsyncpa [#allocation4], 0
    %20 = vsyncpa [#allocation7], 0
    %21 = vsyncpa [#allocation5], 0
    // Predicated region
    $region2: #{tpu_custom_call.1} parent=1 // pred_check
      _
    $region3: #{tpu_custom_call.1} parent=1 // pred_check_branch
      %23 = sbr.rel (0) target = $region5
    $region4: #{tpu_custom_call.1} parent=1 // pred_region
      _
    $region5: #{tpu_custom_call.1} parent=1 // pred_fallthru
      _
    // Predicated region
    $region6: #{tpu_custom_call.1} parent=1 // pred_check
      _
    $region7: #{tpu_custom_call.1} parent=1 // pred_check_branch
      %25 = sbr.rel (0) target = $region9
    $region8: #{tpu_custom_call.1} parent=1 // pred_region
      _
    $region9: #{tpu_custom_call.1} parent=1 // pred_fallthru
      _
    // Predicated region
    $region10: #{tpu_custom_call.1} parent=1 // pred_check
      _
    $region11: #{tpu_custom_call.1} parent=1 // pred_check_branch
      %27 = sbr.rel (0) target = $region13
    $region12: #{tpu_custom_call.1} parent=1 // pred_region
      %s29 = ssub.s32 64, 64
      %30 = vsyncadd [#allocation4], %s29
      %s32 = sshll.u32 [#allocation3], 4
      %s33 = int_to_ptr.vmem [resolvable:$true] %s32
      %35 = dma.hbm_to_vmem [thread:$0]  %s2, 64, %s33, [#allocation4]
    $region13: #{tpu_custom_call.1} parent=1 // pred_fallthru
      _
    // Predicated region
    $region14: #{tpu_custom_call.1} parent=1 // pred_check
      _
    $region15: #{tpu_custom_call.1} parent=1 // pred_check_branch
      %37 = sbr.rel (0) target = $region17
    $region16: #{tpu_custom_call.1} parent=1 // pred_region
      _
    $region17: #{tpu_custom_call.1} parent=1 // pred_fallthru
      _
    // Predicated region
    $region18: #{tpu_custom_call.1} parent=1 // pred_check
      _
    $region19: #{tpu_custom_call.1} parent=1 // pred_check_branch
      %39 = sbr.rel (0) target = $region21
    $region20: #{tpu_custom_call.1} parent=1 // pred_region
      _
    $region21: #{tpu_custom_call.1} parent=1 // pred_fallthru
      _
    // Predicated region
    $region22: #{tpu_custom_call.1} parent=1 // pred_check
      _
    $region23: #{tpu_custom_call.1} parent=1 // pred_check_branch
      %41 = sbr.rel (0) target = $region25
    $region24: #{tpu_custom_call.1} parent=1 // pred_region
      _
    $region25: #{tpu_custom_call.1} parent=1 // pred_fallthru
      _
    // Predicated region
    $region26: #{tpu_custom_call.1} parent=1 // pred_check
      _
    $region27: #{tpu_custom_call.1} parent=1 // pred_check_branch
      %43 = sbr.rel (0) target = $region29
    $region28: #{tpu_custom_call.1} parent=1 // pred_region
      _
    $region29: #{tpu_custom_call.1} parent=1 // pred_fallthru
      _
    // Predicated region
    $region30: #{tpu_custom_call.1} parent=1 // pred_check
      _
    $region31: #{tpu_custom_call.1} parent=1 // pred_check_branch
      %45 = sbr.rel (0) target = $region33
    $region32: #{tpu_custom_call.1} parent=1 // pred_region
      %s47 = ssub.s32 16, 16
      %48 = vsyncadd [#allocation7], %s47
      %s50 = sshll.u32 [#allocation6], 4
      %s51 = int_to_ptr.vmem [resolvable:$true] %s50
      %53 = dma.hbm_to_vmem [thread:$0]  %s7, 16, %s51, [#allocation7]
    $region33: #{tpu_custom_call.1} parent=1 // pred_fallthru
      _
    // Predicated region
    $region34: #{tpu_custom_call.1} parent=1 // pred_check
      _
    $region35: #{tpu_custom_call.1} parent=1 // pred_check_branch
      %55 = sbr.rel (0) target = $region37
    $region36: #{tpu_custom_call.1} parent=1 // pred_region
      _
    $region37: #{tpu_custom_call.1} parent=1 // pred_fallthru
      _
    // Predicated region
    $region38: #{tpu_custom_call.1} parent=1 // pred_check
      _
    $region39: #{tpu_custom_call.1} parent=1 // pred_check_branch
      %57 = sbr.rel (0) target = $region41
    $region40: #{tpu_custom_call.1} parent=1 // pred_region
      _
    $region41: #{tpu_custom_call.1} parent=1 // pred_fallthru
      _
    // Predicated region
    $region42: #{tpu_custom_call.1} parent=1 // pred_check
      _
    $region43: #{tpu_custom_call.1} parent=1 // pred_check_branch
      %59 = sbr.rel (0) target = $region45
    $region44: #{tpu_custom_call.1} parent=1 // pred_region
      _
    $region45: #{tpu_custom_call.1} parent=1 // pred_fallthru
      _
    // Predicated region
    $region46: #{tpu_custom_call.1} parent=1 // pred_check
      _
    $region47: #{tpu_custom_call.1} parent=1 // pred_check_branch
      %61 = sbr.rel (0) target = $region49
    $region48: #{tpu_custom_call.1} parent=1 // pred_region
      _
    $region49: #{tpu_custom_call.1} parent=1 // pred_fallthru
      _
    // Predicated region
    $region50: #{tpu_custom_call.1} parent=1 // pred_check
      _
    $region51: #{tpu_custom_call.1} parent=1 // pred_check_branch
      %63 = sbr.rel (0) target = $region53
    $region52: #{tpu_custom_call.1} parent=1 // pred_region
      %64 = dma.done [#allocation4], 64
    $region53: #{tpu_custom_call.1} parent=1 // pred_fallthru
      _
    // Predicated region
    $region54: #{tpu_custom_call.1} parent=1 // pred_check
      _
    $region55: #{tpu_custom_call.1} parent=1 // pred_check_branch
      %66 = sbr.rel (0) target = $region57
    $region56: #{tpu_custom_call.1} parent=1 // pred_region
      %67 = dma.done [#allocation7], 16
    $region57: #{tpu_custom_call.1} parent=1 // pred_fallthru
      _
    %v69 = vld [vmem:[%s3] sm:$0xf]
    %v70 = vld [vmem:[%s3 + $0x4] sm:$0xf]
    %v71 = vld [vmem:[%s3 + $0x8] sm:$0xf]
    %v72 = vld [vmem:[%s3 + $0xc] sm:$0xf]
    %v73 = vld [vmem:[%s6] sm:$0xf]
    %v74 = vld [vmem:[%s6 + $0x4] sm:$0xf]
    %v75 = vld [vmem:[%s6 + $0x8] sm:$0xf]
    %v76 = vld [vmem:[%s6 + $0xc] sm:$0xf]
    %v77 = vld [vmem:[%s4] sm:$0x1]
    %v78 = vld [vmem:[#allocation6] sm:$0x1]
    %v79 = vld [vmem:[%s8] sm:$0xf]
    %v80 = vld [vmem:[%s8 + $0x4] sm:$0xf]
    %v81 = vld [vmem:[%s8 + $0x8] sm:$0xf]
    %v82 = vld [vmem:[%s8 + $0xc] sm:$0xf]
    %v83 = vld [vmem:[%s10] sm:$0xf]
    %v84 = vld [vmem:[%s10 + $0x4] sm:$0xf]
    %v85 = vld [vmem:[%s10 + $0x8] sm:$0xf]
    %v86 = vld [vmem:[%s10 + $0xc] sm:$0xf]
    %v87 = vld [vmem:[%s9] sm:$0x1]
    %v88 = vld [vmem:[#allocation2] sm:$0x1]
    %v89 = vld [vmem:[#allocation3] sm:$0x1]
    %v90 = vld [vmem:[#allocation3 + $0x1] sm:$0x1]
    %v91 = vld [vmem:[#allocation3 + $0x2] sm:$0x1]
    %v92 = vld [vmem:[#allocation3 + $0x3] sm:$0x1]
    %v93 = vld [vmem:[%s5] sm:$0x1]
    %v94 = vld [vmem:[%s0] sm:$0xff]
    %96 = vset.pattern.permute.xlu0 0
    %97 = vperm.xlu0 %96, %v94
    %v98 = vpop.permute.xlu0 %97
    %v100 = vlaneseq
    %v101 = vshrl.u32 %v100, 7
    %v102 = vsub.s32 0, %v101
    %v103 = vrot.slane %v89, %v102
    %v104 = vmul.f32 %v98, %v103
    %105 = vset.pattern.permute.xlu0 1
    %106 = vperm.xlu0 %105, %v94
    %v107 = vpop.permute.xlu0 %106
    %v109 = vlaneseq
    %v110 = vshrl.u32 %v109, 7
    %v111 = vsub.s32 0, %v110
    %v112 = vrot.slane %v90, %v111
    %v113 = vmul.f32 %v107, %v112
    %v114 = vadd.f32 %v104, %v113
    %115 = vset.pattern.permute.xlu0 2
    %116 = vperm.xlu0 %115, %v94
    %v117 = vpop.permute.xlu0 %116
    %v119 = vlaneseq
    %v120 = vshrl.u32 %v119, 7
    %v121 = vsub.s32 0, %v120
    %v122 = vrot.slane %v91, %v121
    %v123 = vmul.f32 %v117, %v122
    %v124 = vadd.f32 %v114, %v123
    %125 = vset.pattern.permute.xlu0 3
    %126 = vperm.xlu0 %125, %v94
    %v127 = vpop.permute.xlu0 %126
    %v129 = vlaneseq
    %v130 = vshrl.u32 %v129, 7
    %v131 = vsub.s32 0, %v130
    %v132 = vrot.slane %v92, %v131
    %v133 = vmul.f32 %v127, %v132
    %v134 = vadd.f32 %v124, %v133
    %v136 = vlaneseq
    %v137 = vshrl.u32 %v136, 7
    %v138 = vsub.s32 0, %v137
    %v139 = vrot.slane %v77, %v138
    %v141 = vadd.f32 %v134, %v139
    %v146 = vunpack.c.l.b16 %v69
    %v147 = vunpack.c.l.b16 %v70
    %v148 = vunpack.c.l.b16 %v71
    %v149 = vunpack.c.l.b16 %v72
    %v150 = vpack.c.b16 %v147, %v146
    %v151 = vpack.c.b16 %v149, %v148
    %vm154 = vcmask 261120
    %v156 = vsel %vm154, 0, 0
    %158 = vmatprep.subr.bf16.mxu0 0
    %159 = vmatpush1.bf16.msra.mxu0 %v150
    %160 = vmatprep.subr.bf16.mxu0 0
    %161 = vmatpush1.bf16.msra.mxu0 %v151
    %162 = vmatprep.subr.bf16.mxu0 0
    %163 = vmatpush1.bf16.msra.mxu0 0
    %164 = vmatprep.subr.bf16.mxu0 0
    %165 = vmatpush1.bf16.msra.mxu0 0
    %166 = vmatprep.subr.bf16.mxu0 0
    %167 = vmatpush1.bf16.msra.mxu0 0
    %168 = vmatprep.subr.bf16.mxu0 0
    %169 = vmatpush1.bf16.msra.mxu0 0
    %170 = vmatprep.subr.bf16.mxu0 0
    %171 = vmatpush1.bf16.msra.mxu0 0
    %172 = vmatprep.subr.bf16.mxu0 0
    %173 = vmatpush1.bf16.msra.mxu0 0
    %174 = vmatprep.subr.bf16.mxu0 0
    %175 = vmatpush1.bf16.msra.mxu0 0
    %176 = vmatprep.subr.bf16.mxu0 0
    %177 = vmatpush1.bf16.msra.mxu0 0
    %178 = vmatprep.subr.bf16.mxu0 0
    %179 = vmatpush1.bf16.msra.mxu0 0
    %180 = vmatprep.subr.bf16.mxu0 0
    %181 = vmatpush1.bf16.msra.mxu0 0
    %182 = vmatprep.subr.bf16.mxu0 0
    %183 = vmatpush1.bf16.msra.mxu0 0
    %184 = vmatprep.subr.bf16.mxu0 0
    %185 = vmatpush1.bf16.msra.mxu0 0
    %186 = vmatprep.subr.bf16.mxu0 0
    %187 = vmatpush1.bf16.msra.mxu0 0
    %188 = vmatprep.subr.bf16.mxu0 0
    %189 = vmatpush1.bf16.msra.mxu0 0
    %190 = vmatprep.mubr.bf16.mxu0 0
    %191 = vmatmul.mubr.bf16.gmra.mrb[0].mxu0 %v156
    %v192 = vpop.f32.mrb[0].mxu0
    %v193 = vadd.f32 0.0, %v192
    %v194 = vpop.f32.mrb[0].mxu0
    %v195 = vpop.f32.mrb[0].mxu0
    %v196 = vpop.f32.mrb[0].mxu0
    %197 = vdwg.mxu0
    %v198 = vadd.f32 %v141, %v193
    %v199 = vxor.u32 %v198, 2147483648
    %v200 = vmul.f32 %v199, 1.442695
    %v201 = vpow.pop %v200
    %v202 = vadd.f32 %v201, 1.0
    %v203 = vrcp.pop %v202
    %v204 = vmul.f32 1.0, %v203
    %v205 = vtanh.pop %v198
    %v206 = vmul.f32 %v204, 0.0
    %208 = vrot.lane.b32.xlu0 %v205, 32
    %v209 = vpop.permute.xlu0 %208
    %v211 = vmul.f32 %v204, %v209
    %213 = vrot.lane.b32.xlu0 %v211, 32
    %v214 = vpop.permute.xlu0 %213
    %v216 = vadd.f32 %v206, %v214
    %v217 = vtanh.pop %v216
    %219 = vrot.lane.b32.xlu0 %v217, 32
    %v220 = vpop.permute.xlu0 %219
    %v222 = vmul.f32 %v204, %v220
    %223 = vset.pattern.permute.xlu0 4
    %224 = vperm.xlu0 %223, %v94
    %v225 = vpop.permute.xlu0 %224
    %v227 = vmul.f32 %v225, %v103
    %228 = vset.pattern.permute.xlu0 5
    %229 = vperm.xlu0 %228, %v94
    %v230 = vpop.permute.xlu0 %229
    %v232 = vmul.f32 %v230, %v112
    %v233 = vadd.f32 %v227, %v232
    %234 = vset.pattern.permute.xlu0 6
    %235 = vperm.xlu0 %234, %v94
    %v236 = vpop.permute.xlu0 %235
    %v238 = vmul.f32 %v236, %v122
    %v239 = vadd.f32 %v233, %v238
    %240 = vset.pattern.permute.xlu0 7
    %241 = vperm.xlu0 %240, %v94
    %v242 = vpop.permute.xlu0 %241
    %v244 = vmul.f32 %v242, %v132
    %v245 = vadd.f32 %v239, %v244
    %v246 = vadd.f32 %v245, %v139
    %v247 = vpack.c.bf16 %v222, %v222
    %249 = vrot.lane.b32.xlu0 %v247, 64
    %v250 = vpop.permute.xlu0 %249
    %v252 = vsel %vm154, %v250, 0
    %254 = vmatprep.subr.bf16.mxu0 0
    %255 = vmatpush1.bf16.msra.mxu0 %v150
    %256 = vmatprep.subr.bf16.mxu0 0
    %257 = vmatpush1.bf16.msra.mxu0 %v151
    %258 = vmatprep.subr.bf16.mxu0 0
    %259 = vmatpush1.bf16.msra.mxu0 0
    %260 = vmatprep.subr.bf16.mxu0 0
    %261 = vmatpush1.bf16.msra.mxu0 0
    %262 = vmatprep.subr.bf16.mxu0 0
    %263 = vmatpush1.bf16.msra.mxu0 0
    %264 = vmatprep.subr.bf16.mxu0 0
    %265 = vmatpush1.bf16.msra.mxu0 0
    %266 = vmatprep.subr.bf16.mxu0 0
    %267 = vmatpush1.bf16.msra.mxu0 0
    %268 = vmatprep.subr.bf16.mxu0 0
    %269 = vmatpush1.bf16.msra.mxu0 0
    %270 = vmatprep.subr.bf16.mxu0 0
    %271 = vmatpush1.bf16.msra.mxu0 0
    %272 = vmatprep.subr.bf16.mxu0 0
    %273 = vmatpush1.bf16.msra.mxu0 0
    %274 = vmatprep.subr.bf16.mxu0 0
    %275 = vmatpush1.bf16.msra.mxu0 0
    %276 = vmatprep.subr.bf16.mxu0 0
    %277 = vmatpush1.bf16.msra.mxu0 0
    %278 = vmatprep.subr.bf16.mxu0 0
    %279 = vmatpush1.bf16.msra.mxu0 0
    %280 = vmatprep.subr.bf16.mxu0 0
    %281 = vmatpush1.bf16.msra.mxu0 0
    %282 = vmatprep.subr.bf16.mxu0 0
    %283 = vmatpush1.bf16.msra.mxu0 0
    %284 = vmatprep.subr.bf16.mxu0 0
    %285 = vmatpush1.bf16.msra.mxu0 0
    %286 = vmatprep.mubr.bf16.mxu0 0
    %287 = vmatmul.mubr.bf16.gmra.mrb[0].mxu0 %v252
    %v288 = vpop.f32.mrb[0].mxu0
    %v289 = vadd.f32 0.0, %v288
    %v290 = vpop.f32.mrb[0].mxu0
    %v291 = vpop.f32.mrb[0].mxu0
    %v292 = vpop.f32.mrb[0].mxu0
    %293 = vdwg.mxu0
    %v294 = vadd.f32 %v246, %v289
    %v295 = vxor.u32 %v294, 2147483648
    %v296 = vmul.f32 %v295, 1.442695
    %v297 = vpow.pop %v296
    %v298 = vadd.f32 %v297, 1.0
    %v299 = vrcp.pop %v298
    %v300 = vmul.f32 1.0, %v299
    %v301 = vtanh.pop %v294
    %v302 = vmul.f32 %v300, %v216
    %304 = vrot.lane.b32.xlu0 %v301, 32
    %v305 = vpop.permute.xlu0 %304
    %v307 = vmul.f32 %v300, %v305
    %309 = vrot.lane.b32.xlu0 %v307, 32
    %v310 = vpop.permute.xlu0 %309
    %v312 = vadd.f32 %v302, %v310
    %v313 = vtanh.pop %v312
    %315 = vrot.lane.b32.xlu0 %v313, 32
    %v316 = vpop.permute.xlu0 %315
    %v318 = vmul.f32 %v300, %v316
    %319 = vset.pattern.permute.xlu0 8
    %320 = vperm.xlu0 %319, %v94
    %v321 = vpop.permute.xlu0 %320
    %v323 = vmul.f32 %v321, %v103
    %324 = vset.pattern.permute.xlu0 9
    %325 = vperm.xlu0 %324, %v94
    %v326 = vpop.permute.xlu0 %325
    %v328 = vmul.f32 %v326, %v112
    %v329 = vadd.f32 %v323, %v328
    %330 = vset.pattern.permute.xlu0 10
    %331 = vperm.xlu0 %330, %v94
    %v332 = vpop.permute.xlu0 %331
    %v334 = vmul.f32 %v332, %v122
    %v335 = vadd.f32 %v329, %v334
    %336 = vset.pattern.permute.xlu0 11
    %337 = vperm.xlu0 %336, %v94
    %v338 = vpop.permute.xlu0 %337
    %v340 = vmul.f32 %v338, %v132
    %v341 = vadd.f32 %v335, %v340
    %v342 = vadd.f32 %v341, %v139
    %v343 = vpack.c.bf16 %v318, %v318
    %345 = vrot.lane.b32.xlu0 %v343, 64
    %v346 = vpop.permute.xlu0 %345
    %v348 = vsel %vm154, %v346, 0
    %350 = vmatprep.subr.bf16.mxu0 0
    %351 = vmatpush1.bf16.msra.mxu0 %v150
    %352 = vmatprep.subr.bf16.mxu0 0
    %353 = vmatpush1.bf16.msra.mxu0 %v151
    %354 = vmatprep.subr.bf16.mxu0 0
    %355 = vmatpush1.bf16.msra.mxu0 0
    %356 = vmatprep.subr.bf16.mxu0 0
    %357 = vmatpush1.bf16.msra.mxu0 0
    %358 = vmatprep.subr.bf16.mxu0 0
    %359 = vmatpush1.bf16.msra.mxu0 0
    %360 = vmatprep.subr.bf16.mxu0 0
    %361 = vmatpush1.bf16.msra.mxu0 0
    %362 = vmatprep.subr.bf16.mxu0 0
    %363 = vmatpush1.bf16.msra.mxu0 0
    %364 = vmatprep.subr.bf16.mxu0 0
    %365 = vmatpush1.bf16.msra.mxu0 0
    %366 = vmatprep.subr.bf16.mxu0 0
    %367 = vmatpush1.bf16.msra.mxu0 0
    %368 = vmatprep.subr.bf16.mxu0 0
    %369 = vmatpush1.bf16.msra.mxu0 0
    %370 = vmatprep.subr.bf16.mxu0 0
    %371 = vmatpush1.bf16.msra.mxu0 0
    %372 = vmatprep.subr.bf16.mxu0 0
    %373 = vmatpush1.bf16.msra.mxu0 0
    %374 = vmatprep.subr.bf16.mxu0 0
    %375 = vmatpush1.bf16.msra.mxu0 0
    %376 = vmatprep.subr.bf16.mxu0 0
    %377 = vmatpush1.bf16.msra.mxu0 0
    %378 = vmatprep.subr.bf16.mxu0 0
    %379 = vmatpush1.bf16.msra.mxu0 0
    %380 = vmatprep.subr.bf16.mxu0 0
    %381 = vmatpush1.bf16.msra.mxu0 0
    %382 = vmatprep.mubr.bf16.mxu0 0
    %383 = vmatmul.mubr.bf16.gmra.mrb[0].mxu0 %v348
    %v384 = vpop.f32.mrb[0].mxu0
    %v385 = vadd.f32 0.0, %v384
    %v386 = vpop.f32.mrb[0].mxu0
    %v387 = vpop.f32.mrb[0].mxu0
    %v388 = vpop.f32.mrb[0].mxu0
    %389 = vdwg.mxu0
    %v390 = vadd.f32 %v342, %v385
    %v391 = vxor.u32 %v390, 2147483648
    %v392 = vmul.f32 %v391, 1.442695
    %v393 = vpow.pop %v392
    %v394 = vadd.f32 %v393, 1.0
    %v395 = vrcp.pop %v394
    %v396 = vmul.f32 1.0, %v395
    %v397 = vtanh.pop %v390
    %v398 = vmul.f32 %v396, %v312
    %400 = vrot.lane.b32.xlu0 %v397, 32
    %v401 = vpop.permute.xlu0 %400
    %v403 = vmul.f32 %v396, %v401
    %405 = vrot.lane.b32.xlu0 %v403, 32
    %v406 = vpop.permute.xlu0 %405
    %v408 = vadd.f32 %v398, %v406
    %v409 = vtanh.pop %v408
    %411 = vrot.lane.b32.xlu0 %v409, 32
    %v412 = vpop.permute.xlu0 %411
    %v414 = vmul.f32 %v396, %v412
    %415 = vset.pattern.permute.xlu0 12
    %416 = vperm.xlu0 %415, %v94
    %v417 = vpop.permute.xlu0 %416
    %v419 = vmul.f32 %v417, %v103
    %420 = vset.pattern.permute.xlu0 13
    %421 = vperm.xlu0 %420, %v94
    %v422 = vpop.permute.xlu0 %421
    %v424 = vmul.f32 %v422, %v112
    %v425 = vadd.f32 %v419, %v424
    %426 = vset.pattern.permute.xlu0 14
    %427 = vperm.xlu0 %426, %v94
    %v428 = vpop.permute.xlu0 %427
    %v430 = vmul.f32 %v428, %v122
    %v431 = vadd.f32 %v425, %v430
    %432 = vset.pattern.permute.xlu0 15
    %433 = vperm.xlu0 %432, %v94
    %v434 = vpop.permute.xlu0 %433
    %v436 = vmul.f32 %v434, %v132
    %v437 = vadd.f32 %v431, %v436
    %v438 = vadd.f32 %v437, %v139
    %v439 = vpack.c.bf16 %v414, %v414
    %441 = vrot.lane.b32.xlu0 %v439, 64
    %v442 = vpop.permute.xlu0 %441
    %v444 = vsel %vm154, %v442, 0
    %446 = vmatprep.subr.bf16.mxu0 0
    %447 = vmatpush1.bf16.msra.mxu0 %v150
    %448 = vmatprep.subr.bf16.mxu0 0
    %449 = vmatpush1.bf16.msra.mxu0 %v151
    %450 = vmatprep.subr.bf16.mxu0 0
    %451 = vmatpush1.bf16.msra.mxu0 0
    %452 = vmatprep.subr.bf16.mxu0 0
    %453 = vmatpush1.bf16.msra.mxu0 0
    %454 = vmatprep.subr.bf16.mxu0 0
    %455 = vmatpush1.bf16.msra.mxu0 0
    %456 = vmatprep.subr.bf16.mxu0 0
    %457 = vmatpush1.bf16.msra.mxu0 0
    %458 = vmatprep.subr.bf16.mxu0 0
    %459 = vmatpush1.bf16.msra.mxu0 0
    %460 = vmatprep.subr.bf16.mxu0 0
    %461 = vmatpush1.bf16.msra.mxu0 0
    %462 = vmatprep.subr.bf16.mxu0 0
    %463 = vmatpush1.bf16.msra.mxu0 0
    %464 = vmatprep.subr.bf16.mxu0 0
    %465 = vmatpush1.bf16.msra.mxu0 0
    %466 = vmatprep.subr.bf16.mxu0 0
    %467 = vmatpush1.bf16.msra.mxu0 0
    %468 = vmatprep.subr.bf16.mxu0 0
    %469 = vmatpush1.bf16.msra.mxu0 0
    %470 = vmatprep.subr.bf16.mxu0 0
    %471 = vmatpush1.bf16.msra.mxu0 0
    %472 = vmatprep.subr.bf16.mxu0 0
    %473 = vmatpush1.bf16.msra.mxu0 0
    %474 = vmatprep.subr.bf16.mxu0 0
    %475 = vmatpush1.bf16.msra.mxu0 0
    %476 = vmatprep.subr.bf16.mxu0 0
    %477 = vmatpush1.bf16.msra.mxu0 0
    %478 = vmatprep.mubr.bf16.mxu0 0
    %479 = vmatmul.mubr.bf16.gmra.mrb[0].mxu0 %v444
    %v480 = vpop.f32.mrb[0].mxu0
    %v481 = vadd.f32 0.0, %v480
    %v482 = vpop.f32.mrb[0].mxu0
    %v483 = vpop.f32.mrb[0].mxu0
    %v484 = vpop.f32.mrb[0].mxu0
    %485 = vdwg.mxu0
    %v486 = vadd.f32 %v438, %v481
    %v487 = vxor.u32 %v486, 2147483648
    %v488 = vmul.f32 %v487, 1.442695
    %v489 = vpow.pop %v488
    %v490 = vadd.f32 %v489, 1.0
    %v491 = vrcp.pop %v490
    %v492 = vmul.f32 1.0, %v491
    %v493 = vtanh.pop %v486
    %v494 = vmul.f32 %v492, %v408
    %496 = vrot.lane.b32.xlu0 %v493, 32
    %v497 = vpop.permute.xlu0 %496
    %v499 = vmul.f32 %v492, %v497
    %501 = vrot.lane.b32.xlu0 %v499, 32
    %v502 = vpop.permute.xlu0 %501
    %v504 = vadd.f32 %v494, %v502
    %v505 = vtanh.pop %v504
    %507 = vrot.lane.b32.xlu0 %v505, 32
    %v508 = vpop.permute.xlu0 %507
    %v510 = vmul.f32 %v492, %v508
    %511 = vset.pattern.permute.xlu0 16
    %512 = vperm.xlu0 %511, %v94
    %v513 = vpop.permute.xlu0 %512
    %v515 = vmul.f32 %v513, %v103
    %516 = vset.pattern.permute.xlu0 17
    %517 = vperm.xlu0 %516, %v94
    %v518 = vpop.permute.xlu0 %517
    %v520 = vmul.f32 %v518, %v112
    %v521 = vadd.f32 %v515, %v520
    %522 = vset.pattern.permute.xlu0 18
    %523 = vperm.xlu0 %522, %v94
    %v524 = vpop.permute.xlu0 %523
    %v526 = vmul.f32 %v524, %v122
    %v527 = vadd.f32 %v521, %v526
    %528 = vset.pattern.permute.xlu0 19
    %529 = vperm.xlu0 %528, %v94
    %v530 = vpop.permute.xlu0 %529
    %v532 = vmul.f32 %v530, %v132
    %v533 = vadd.f32 %v527, %v532
    %v534 = vadd.f32 %v533, %v139
    %v535 = vpack.c.bf16 %v510, %v510
    %537 = vrot.lane.b32.xlu0 %v535, 64
    %v538 = vpop.permute.xlu0 %537
    %v540 = vsel %vm154, %v538, 0
    %542 = vmatprep.subr.bf16.mxu0 0
    %543 = vmatpush1.bf16.msra.mxu0 %v150
    %544 = vmatprep.subr.bf16.mxu0 0
    %545 = vmatpush1.bf16.msra.mxu0 %v151
    %546 = vmatprep.subr.bf16.mxu0 0
    %547 = vmatpush1.bf16.msra.mxu0 0
    %548 = vmatprep.subr.bf16.mxu0 0
    %549 = vmatpush1.bf16.msra.mxu0 0
    %550 = vmatprep.subr.bf16.mxu0 0
    %551 = vmatpush1.bf16.msra.mxu0 0
    %552 = vmatprep.subr.bf16.mxu0 0
    %553 = vmatpush1.bf16.msra.mxu0 0
    %554 = vmatprep.subr.bf16.mxu0 0
    %555 = vmatpush1.bf16.msra.mxu0 0
    %556 = vmatprep.subr.bf16.mxu0 0
    %557 = vmatpush1.bf16.msra.mxu0 0
    %558 = vmatprep.subr.bf16.mxu0 0
    %559 = vmatpush1.bf16.msra.mxu0 0
    %560 = vmatprep.subr.bf16.mxu0 0
    %561 = vmatpush1.bf16.msra.mxu0 0
    %562 = vmatprep.subr.bf16.mxu0 0
    %563 = vmatpush1.bf16.msra.mxu0 0
    %564 = vmatprep.subr.bf16.mxu0 0
    %565 = vmatpush1.bf16.msra.mxu0 0
    %566 = vmatprep.subr.bf16.mxu0 0
    %567 = vmatpush1.bf16.msra.mxu0 0
    %568 = vmatprep.subr.bf16.mxu0 0
    %569 = vmatpush1.bf16.msra.mxu0 0
    %570 = vmatprep.subr.bf16.mxu0 0
    %571 = vmatpush1.bf16.msra.mxu0 0
    %572 = vmatprep.subr.bf16.mxu0 0
    %573 = vmatpush1.bf16.msra.mxu0 0
    %574 = vmatprep.mubr.bf16.mxu0 0
    %575 = vmatmul.mubr.bf16.gmra.mrb[0].mxu0 %v540
    %v576 = vpop.f32.mrb[0].mxu0
    %v577 = vadd.f32 0.0, %v576
    %v578 = vpop.f32.mrb[0].mxu0
    %v579 = vpop.f32.mrb[0].mxu0
    %v580 = vpop.f32.mrb[0].mxu0
    %581 = vdwg.mxu0
    %v582 = vadd.f32 %v534, %v577
    %v583 = vxor.u32 %v582, 2147483648
    %v584 = vmul.f32 %v583, 1.442695
    %v585 = vpow.pop %v584
    %v586 = vadd.f32 %v585, 1.0
    %v587 = vrcp.pop %v586
    %v588 = vmul.f32 1.0, %v587
    %v589 = vtanh.pop %v582
    %v590 = vmul.f32 %v588, %v504
    %592 = vrot.lane.b32.xlu0 %v589, 32
    %v593 = vpop.permute.xlu0 %592
    %v595 = vmul.f32 %v588, %v593
    %597 = vrot.lane.b32.xlu0 %v595, 32
    %v598 = vpop.permute.xlu0 %597
    %v600 = vadd.f32 %v590, %v598
    %v601 = vtanh.pop %v600
    %603 = vrot.lane.b32.xlu0 %v601, 32
    %v604 = vpop.permute.xlu0 %603
    %v606 = vmul.f32 %v588, %v604
    %607 = vset.pattern.permute.xlu0 20
    %608 = vperm.xlu0 %607, %v94
    %v609 = vpop.permute.xlu0 %608
    %v611 = vmul.f32 %v609, %v103
    %612 = vset.pattern.permute.xlu0 21
    %613 = vperm.xlu0 %612, %v94
    %v614 = vpop.permute.xlu0 %613
    %v616 = vmul.f32 %v614, %v112
    %v617 = vadd.f32 %v611, %v616
    %618 = vset.pattern.permute.xlu0 22
    %619 = vperm.xlu0 %618, %v94
    %v620 = vpop.permute.xlu0 %619
    %v622 = vmul.f32 %v620, %v122
    %v623 = vadd.f32 %v617, %v622
    %624 = vset.pattern.permute.xlu0 23
    %625 = vperm.xlu0 %624, %v94
    %v626 = vpop.permute.xlu0 %625
    %v628 = vmul.f32 %v626, %v132
    %v629 = vadd.f32 %v623, %v628
    %v630 = vadd.f32 %v629, %v139
    %v631 = vpack.c.bf16 %v606, %v606
    %633 = vrot.lane.b32.xlu0 %v631, 64
    %v634 = vpop.permute.xlu0 %633
    %v636 = vsel %vm154, %v634, 0
    %638 = vmatprep.subr.bf16.mxu0 0
    %639 = vmatpush1.bf16.msra.mxu0 %v150
    %640 = vmatprep.subr.bf16.mxu0 0
    %641 = vmatpush1.bf16.msra.mxu0 %v151
    %642 = vmatprep.subr.bf16.mxu0 0
    %643 = vmatpush1.bf16.msra.mxu0 0
    %644 = vmatprep.subr.bf16.mxu0 0
    %645 = vmatpush1.bf16.msra.mxu0 0
    %646 = vmatprep.subr.bf16.mxu0 0
    %647 = vmatpush1.bf16.msra.mxu0 0
    %648 = vmatprep.subr.bf16.mxu0 0
    %649 = vmatpush1.bf16.msra.mxu0 0
    %650 = vmatprep.subr.bf16.mxu0 0
    %651 = vmatpush1.bf16.msra.mxu0 0
    %652 = vmatprep.subr.bf16.mxu0 0
    %653 = vmatpush1.bf16.msra.mxu0 0
    %654 = vmatprep.subr.bf16.mxu0 0
    %655 = vmatpush1.bf16.msra.mxu0 0
    %656 = vmatprep.subr.bf16.mxu0 0
    %657 = vmatpush1.bf16.msra.mxu0 0
    %658 = vmatprep.subr.bf16.mxu0 0
    %659 = vmatpush1.bf16.msra.mxu0 0
    %660 = vmatprep.subr.bf16.mxu0 0
    %661 = vmatpush1.bf16.msra.mxu0 0
    %662 = vmatprep.subr.bf16.mxu0 0
    %663 = vmatpush1.bf16.msra.mxu0 0
    %664 = vmatprep.subr.bf16.mxu0 0
    %665 = vmatpush1.bf16.msra.mxu0 0
    %666 = vmatprep.subr.bf16.mxu0 0
    %667 = vmatpush1.bf16.msra.mxu0 0
    %668 = vmatprep.subr.bf16.mxu0 0
    %669 = vmatpush1.bf16.msra.mxu0 0
    %670 = vmatprep.mubr.bf16.mxu0 0
    %671 = vmatmul.mubr.bf16.gmra.mrb[0].mxu0 %v636
    %v672 = vpop.f32.mrb[0].mxu0
    %v673 = vadd.f32 0.0, %v672
    %v674 = vpop.f32.mrb[0].mxu0
    %v675 = vpop.f32.mrb[0].mxu0
    %v676 = vpop.f32.mrb[0].mxu0
    %677 = vdwg.mxu0
    %v678 = vadd.f32 %v630, %v673
    %v679 = vxor.u32 %v678, 2147483648
    %v680 = vmul.f32 %v679, 1.442695
    %v681 = vpow.pop %v680
    %v682 = vadd.f32 %v681, 1.0
    %v683 = vrcp.pop %v682
    %v684 = vmul.f32 1.0, %v683
    %v685 = vtanh.pop %v678
    %v686 = vmul.f32 %v684, %v600
    %688 = vrot.lane.b32.xlu0 %v685, 32
    %v689 = vpop.permute.xlu0 %688
    %v691 = vmul.f32 %v684, %v689
    %693 = vrot.lane.b32.xlu0 %v691, 32
    %v694 = vpop.permute.xlu0 %693
    %v696 = vadd.f32 %v686, %v694
    %v697 = vtanh.pop %v696
    %699 = vrot.lane.b32.xlu0 %v697, 32
    %v700 = vpop.permute.xlu0 %699
    %v702 = vmul.f32 %v684, %v700
    %703 = vset.pattern.permute.xlu0 24
    %704 = vperm.xlu0 %703, %v94
    %v705 = vpop.permute.xlu0 %704
    %v707 = vmul.f32 %v705, %v103
    %708 = vset.pattern.permute.xlu0 25
    %709 = vperm.xlu0 %708, %v94
    %v710 = vpop.permute.xlu0 %709
    %v712 = vmul.f32 %v710, %v112
    %v713 = vadd.f32 %v707, %v712
    %714 = vset.pattern.permute.xlu0 26
    %715 = vperm.xlu0 %714, %v94
    %v716 = vpop.permute.xlu0 %715
    %v718 = vmul.f32 %v716, %v122
    %v719 = vadd.f32 %v713, %v718
    %720 = vset.pattern.permute.xlu0 27
    %721 = vperm.xlu0 %720, %v94
    %v722 = vpop.permute.xlu0 %721
    %v724 = vmul.f32 %v722, %v132
    %v725 = vadd.f32 %v719, %v724
    %v726 = vadd.f32 %v725, %v139
    %v727 = vpack.c.bf16 %v702, %v702
    %729 = vrot.lane.b32.xlu0 %v727, 64
    %v730 = vpop.permute.xlu0 %729
    %v732 = vsel %vm154, %v730, 0
    %734 = vmatprep.subr.bf16.mxu0 0
    %735 = vmatpush1.bf16.msra.mxu0 %v150
    %736 = vmatprep.subr.bf16.mxu0 0
    %737 = vmatpush1.bf16.msra.mxu0 %v151
    %738 = vmatprep.subr.bf16.mxu0 0
    %739 = vmatpush1.bf16.msra.mxu0 0
    %740 = vmatprep.subr.bf16.mxu0 0
    %741 = vmatpush1.bf16.msra.mxu0 0
    %742 = vmatprep.subr.bf16.mxu0 0
    %743 = vmatpush1.bf16.msra.mxu0 0
    %744 = vmatprep.subr.bf16.mxu0 0
    %745 = vmatpush1.bf16.msra.mxu0 0
    %746 = vmatprep.subr.bf16.mxu0 0
    %747 = vmatpush1.bf16.msra.mxu0 0
    %748 = vmatprep.subr.bf16.mxu0 0
    %749 = vmatpush1.bf16.msra.mxu0 0
    %750 = vmatprep.subr.bf16.mxu0 0
    %751 = vmatpush1.bf16.msra.mxu0 0
    %752 = vmatprep.subr.bf16.mxu0 0
    %753 = vmatpush1.bf16.msra.mxu0 0
    %754 = vmatprep.subr.bf16.mxu0 0
    %755 = vmatpush1.bf16.msra.mxu0 0
    %756 = vmatprep.subr.bf16.mxu0 0
    %757 = vmatpush1.bf16.msra.mxu0 0
    %758 = vmatprep.subr.bf16.mxu0 0
    %759 = vmatpush1.bf16.msra.mxu0 0
    %760 = vmatprep.subr.bf16.mxu0 0
    %761 = vmatpush1.bf16.msra.mxu0 0
    %762 = vmatprep.subr.bf16.mxu0 0
    %763 = vmatpush1.bf16.msra.mxu0 0
    %764 = vmatprep.subr.bf16.mxu0 0
    %765 = vmatpush1.bf16.msra.mxu0 0
    %766 = vmatprep.mubr.bf16.mxu0 0
    %767 = vmatmul.mubr.bf16.gmra.mrb[0].mxu0 %v732
    %v768 = vpop.f32.mrb[0].mxu0
    %v769 = vadd.f32 0.0, %v768
    %v770 = vpop.f32.mrb[0].mxu0
    %v771 = vpop.f32.mrb[0].mxu0
    %v772 = vpop.f32.mrb[0].mxu0
    %773 = vdwg.mxu0
    %v774 = vadd.f32 %v726, %v769
    %v775 = vxor.u32 %v774, 2147483648
    %v776 = vmul.f32 %v775, 1.442695
    %v777 = vpow.pop %v776
    %v778 = vadd.f32 %v777, 1.0
    %v779 = vrcp.pop %v778
    %v780 = vmul.f32 1.0, %v779
    %v781 = vtanh.pop %v774
    %v782 = vmul.f32 %v780, %v696
    %784 = vrot.lane.b32.xlu0 %v781, 32
    %v785 = vpop.permute.xlu0 %784
    %v787 = vmul.f32 %v780, %v785
    %789 = vrot.lane.b32.xlu0 %v787, 32
    %v790 = vpop.permute.xlu0 %789
    %v792 = vadd.f32 %v782, %v790
    %v793 = vtanh.pop %v792
    %795 = vrot.lane.b32.xlu0 %v793, 32
    %v796 = vpop.permute.xlu0 %795
    %v798 = vmul.f32 %v780, %v796
    %799 = vset.pattern.permute.xlu0 28
    %800 = vperm.xlu0 %799, %v94
    %v801 = vpop.permute.xlu0 %800
    %v803 = vmul.f32 %v801, %v103
    %804 = vset.pattern.permute.xlu0 29
    %805 = vperm.xlu0 %804, %v94
    %v806 = vpop.permute.xlu0 %805
    %v808 = vmul.f32 %v806, %v112
    %v809 = vadd.f32 %v803, %v808
    %810 = vset.pattern.permute.xlu0 30
    %811 = vperm.xlu0 %810, %v94
    %v812 = vpop.permute.xlu0 %811
    %v814 = vmul.f32 %v812, %v122
    %v815 = vadd.f32 %v809, %v814
    %816 = vset.pattern.permute.xlu0 31
    %817 = vperm.xlu0 %816, %v94
    %v818 = vpop.permute.xlu0 %817
    %v820 = vmul.f32 %v818, %v132
    %v821 = vadd.f32 %v815, %v820
    %v822 = vadd.f32 %v821, %v139
    %v823 = vpack.c.bf16 %v798, %v798
    %825 = vrot.lane.b32.xlu0 %v823, 64
    %v826 = vpop.permute.xlu0 %825
    %v828 = vsel %vm154, %v826, 0
    %830 = vmatprep.subr.bf16.mxu0 0
    %831 = vmatpush1.bf16.msra.mxu0 %v150
    %832 = vmatprep.subr.bf16.mxu0 0
    %833 = vmatpush1.bf16.msra.mxu0 %v151
    %834 = vmatprep.subr.bf16.mxu0 0
    %835 = vmatpush1.bf16.msra.mxu0 0
    %836 = vmatprep.subr.bf16.mxu0 0
    %837 = vmatpush1.bf16.msra.mxu0 0
    %838 = vmatprep.subr.bf16.mxu0 0
    %839 = vmatpush1.bf16.msra.mxu0 0
    %840 = vmatprep.subr.bf16.mxu0 0
    %841 = vmatpush1.bf16.msra.mxu0 0
    %842 = vmatprep.subr.bf16.mxu0 0
    %843 = vmatpush1.bf16.msra.mxu0 0
    %844 = vmatprep.subr.bf16.mxu0 0
    %845 = vmatpush1.bf16.msra.mxu0 0
    %846 = vmatprep.subr.bf16.mxu0 0
    %847 = vmatpush1.bf16.msra.mxu0 0
    %848 = vmatprep.subr.bf16.mxu0 0
    %849 = vmatpush1.bf16.msra.mxu0 0
    %850 = vmatprep.subr.bf16.mxu0 0
    %851 = vmatpush1.bf16.msra.mxu0 0
    %852 = vmatprep.subr.bf16.mxu0 0
    %853 = vmatpush1.bf16.msra.mxu0 0
    %854 = vmatprep.subr.bf16.mxu0 0
    %855 = vmatpush1.bf16.msra.mxu0 0
    %856 = vmatprep.subr.bf16.mxu0 0
    %857 = vmatpush1.bf16.msra.mxu0 0
    %858 = vmatprep.subr.bf16.mxu0 0
    %859 = vmatpush1.bf16.msra.mxu0 0
    %860 = vmatprep.subr.bf16.mxu0 0
    %861 = vmatpush1.bf16.msra.mxu0 0
    %862 = vmatprep.mubr.bf16.mxu0 0
    %863 = vmatmul.mubr.bf16.gmra.mrb[0].mxu0 %v828
    %v864 = vpop.f32.mrb[0].mxu0
    %v865 = vadd.f32 0.0, %v864
    %v866 = vpop.f32.mrb[0].mxu0
    %v867 = vpop.f32.mrb[0].mxu0
    %v868 = vpop.f32.mrb[0].mxu0
    %869 = vdwg.mxu0
    %v870 = vadd.f32 %v822, %v865
    %v871 = vxor.u32 %v870, 2147483648
    %v872 = vmul.f32 %v871, 1.442695
    %v873 = vpow.pop %v872
    %v874 = vadd.f32 %v873, 1.0
    %v875 = vrcp.pop %v874
    %v876 = vmul.f32 1.0, %v875
    %v877 = vtanh.pop %v870
    %v878 = vmul.f32 %v876, %v792
    %880 = vrot.lane.b32.xlu0 %v877, 32
    %v881 = vpop.permute.xlu0 %880
    %v883 = vmul.f32 %v876, %v881
    %885 = vrot.lane.b32.xlu0 %v883, 32
    %v886 = vpop.permute.xlu0 %885
    %v888 = vadd.f32 %v878, %v886
    %v889 = vtanh.pop %v888
    %891 = vrot.lane.b32.xlu0 %v889, 32
    %v892 = vpop.permute.xlu0 %891
    %v894 = vmul.f32 %v876, %v892
    %v895 = vld [vmem:[%s1] sm:$0xff]
    %897 = vset.pattern.permute.xlu0 0
    %898 = vperm.xlu0 %897, %v895
    %v899 = vpop.permute.xlu0 %898
    %v902 = vlaneseq
    %v903 = vshrl.u32 %v902, 7
    %v904 = vsub.s32 0, %v903
    %v905 = vrot.slane %v93, %v904
    %v907 = vmul.f32 %v899, %v905
    %v909 = vlaneseq
    %v910 = vshrl.u32 %v909, 7
    %v911 = vsub.s32 0, %v910
    %v912 = vrot.slane %v78, %v911
    %v914 = vadd.f32 %v907, %v912
    %v915 = vpack.c.bf16 %v894, %v894
    %917 = vrot.lane.b32.xlu0 %v915, 64
    %v918 = vpop.permute.xlu0 %917
    %v923 = vunpack.c.l.b16 %v73
    %v924 = vunpack.c.l.b16 %v74
    %v925 = vunpack.c.l.b16 %v75
    %v926 = vunpack.c.l.b16 %v76
    %v927 = vpack.c.b16 %v924, %v923
    %v928 = vpack.c.b16 %v926, %v925
    %v932 = vsel %vm154, %v918, 0
    %934 = vmatprep.subr.bf16.mxu0 0
    %935 = vmatpush1.bf16.msra.mxu0 %v927
    %936 = vmatprep.subr.bf16.mxu0 0
    %937 = vmatpush1.bf16.msra.mxu0 %v928
    %938 = vmatprep.subr.bf16.mxu0 0
    %939 = vmatpush1.bf16.msra.mxu0 0
    %940 = vmatprep.subr.bf16.mxu0 0
    %941 = vmatpush1.bf16.msra.mxu0 0
    %942 = vmatprep.subr.bf16.mxu0 0
    %943 = vmatpush1.bf16.msra.mxu0 0
    %944 = vmatprep.subr.bf16.mxu0 0
    %945 = vmatpush1.bf16.msra.mxu0 0
    %946 = vmatprep.subr.bf16.mxu0 0
    %947 = vmatpush1.bf16.msra.mxu0 0
    %948 = vmatprep.subr.bf16.mxu0 0
    %949 = vmatpush1.bf16.msra.mxu0 0
    %950 = vmatprep.subr.bf16.mxu0 0
    %951 = vmatpush1.bf16.msra.mxu0 0
    %952 = vmatprep.subr.bf16.mxu0 0
    %953 = vmatpush1.bf16.msra.mxu0 0
    %954 = vmatprep.subr.bf16.mxu0 0
    %955 = vmatpush1.bf16.msra.mxu0 0
    %956 = vmatprep.subr.bf16.mxu0 0
    %957 = vmatpush1.bf16.msra.mxu0 0
    %958 = vmatprep.subr.bf16.mxu0 0
    %959 = vmatpush1.bf16.msra.mxu0 0
    %960 = vmatprep.subr.bf16.mxu0 0
    %961 = vmatpush1.bf16.msra.mxu0 0
    %962 = vmatprep.subr.bf16.mxu0 0
    %963 = vmatpush1.bf16.msra.mxu0 0
    %964 = vmatprep.subr.bf16.mxu0 0
    %965 = vmatpush1.bf16.msra.mxu0 0
    %966 = vmatprep.mubr.bf16.mxu0 0
    %967 = vmatmul.mubr.bf16.gmra.mrb[0].mxu0 %v932
    %v968 = vpop.f32.mrb[0].mxu0
    %v969 = vadd.f32 0.0, %v968
    %v970 = vpop.f32.mrb[0].mxu0
    %v971 = vpop.f32.mrb[0].mxu0
    %v972 = vpop.f32.mrb[0].mxu0
    %973 = vdwg.mxu0
    %v974 = vadd.f32 %v914, %v969
    %v975 = vxor.u32 %v974, 2147483648
    %v976 = vmul.f32 %v975, 1.442695
    %v977 = vpow.pop %v976
    %v978 = vadd.f32 %v977, 1.0
    %v979 = vrcp.pop %v978
    %v980 = vmul.f32 1.0, %v979
    %v981 = vtanh.pop %v974
    %v982 = vmul.f32 %v980, %v888
    %984 = vrot.lane.b32.xlu0 %v981, 32
    %v985 = vpop.permute.xlu0 %984
    %v987 = vmul.f32 %v980, %v985
    %989 = vrot.lane.b32.xlu0 %v987, 32
    %v990 = vpop.permute.xlu0 %989
    %v992 = vadd.f32 %v982, %v990
    %v993 = vtanh.pop %v992
    %995 = vrot.lane.b32.xlu0 %v993, 32
    %v996 = vpop.permute.xlu0 %995
    %v998 = vmul.f32 %v980, %v996
    %v999 = vmax.f32 %v998, 0.0
    %v1000 = vpack.c.bf16 %v999, %v999
    %v1002 = vlaneseq
    %v1003 = vshrl.u32 %v1002, 7
    %v1004 = vsub.s32 0, %v1003
    %v1005 = vrot.slane %v87, %v1004
    %1008 = vrot.lane.b32.xlu0 %v1000, 64
    %v1009 = vpop.permute.xlu0 %1008
    %v1014 = vunpack.c.l.b16 %v79
    %v1015 = vunpack.c.l.b16 %v80
    %v1016 = vunpack.c.l.b16 %v81
    %v1017 = vunpack.c.l.b16 %v82
    %v1018 = vpack.c.b16 %v1015, %v1014
    %v1019 = vpack.c.b16 %v1017, %v1016
    %v1023 = vsel %vm154, %v1009, 0
    %1025 = vmatprep.subr.bf16.mxu0 0
    %1026 = vmatpush1.bf16.msra.mxu0 %v1018
    %1027 = vmatprep.subr.bf16.mxu0 0
    %1028 = vmatpush1.bf16.msra.mxu0 %v1019
    %1029 = vmatprep.subr.bf16.mxu0 0
    %1030 = vmatpush1.bf16.msra.mxu0 0
    %1031 = vmatprep.subr.bf16.mxu0 0
    %1032 = vmatpush1.bf16.msra.mxu0 0
    %1033 = vmatprep.subr.bf16.mxu0 0
    %1034 = vmatpush1.bf16.msra.mxu0 0
    %1035 = vmatprep.subr.bf16.mxu0 0
    %1036 = vmatpush1.bf16.msra.mxu0 0
    %1037 = vmatprep.subr.bf16.mxu0 0
    %1038 = vmatpush1.bf16.msra.mxu0 0
    %1039 = vmatprep.subr.bf16.mxu0 0
    %1040 = vmatpush1.bf16.msra.mxu0 0
    %1041 = vmatprep.subr.bf16.mxu0 0
    %1042 = vmatpush1.bf16.msra.mxu0 0
    %1043 = vmatprep.subr.bf16.mxu0 0
    %1044 = vmatpush1.bf16.msra.mxu0 0
    %1045 = vmatprep.subr.bf16.mxu0 0
    %1046 = vmatpush1.bf16.msra.mxu0 0
    %1047 = vmatprep.subr.bf16.mxu0 0
    %1048 = vmatpush1.bf16.msra.mxu0 0
    %1049 = vmatprep.subr.bf16.mxu0 0
    %1050 = vmatpush1.bf16.msra.mxu0 0
    %1051 = vmatprep.subr.bf16.mxu0 0
    %1052 = vmatpush1.bf16.msra.mxu0 0
    %1053 = vmatprep.subr.bf16.mxu0 0
    %1054 = vmatpush1.bf16.msra.mxu0 0
    %1055 = vmatprep.subr.bf16.mxu0 0
    %1056 = vmatpush1.bf16.msra.mxu0 0
    %1057 = vmatprep.mubr.bf16.mxu0 0
    %1058 = vmatmul.mubr.bf16.gmra.mrb[0].mxu0 %v1023
    %v1059 = vpop.f32.mrb[0].mxu0
    %v1060 = vadd.f32 %v1005, %v1059
    %v1061 = vpop.f32.mrb[0].mxu0
    %v1062 = vpop.f32.mrb[0].mxu0
    %v1063 = vpop.f32.mrb[0].mxu0
    %1064 = vdwg.mxu0
    %v1065 = vmax.f32 %v1060, 0.0
    %v1066 = vpack.c.bf16 %v1065, %v1065
    %v1068 = vlaneseq
    %v1069 = vshrl.u32 %v1068, 7
    %v1070 = vsub.s32 0, %v1069
    %v1071 = vrot.slane %v88, %v1070
    %v1077 = vunpack.c.l.b16 %v83
    %v1078 = vunpack.c.l.b16 %v84
    %v1079 = vunpack.c.l.b16 %v85
    %v1080 = vunpack.c.l.b16 %v86
    %v1081 = vpack.c.b16 %v1078, %v1077
    %v1082 = vpack.c.b16 %v1080, %v1079
    %v1086 = vsel %vm154, %v1066, 0
    %1088 = vmatprep.subr.bf16.mxu0 0
    %1089 = vmatpush1.bf16.msra.mxu0 %v1081
    %1090 = vmatprep.subr.bf16.mxu0 0
    %1091 = vmatpush1.bf16.msra.mxu0 %v1082
    %1092 = vmatprep.subr.bf16.mxu0 0
    %1093 = vmatpush1.bf16.msra.mxu0 0
    %1094 = vmatprep.subr.bf16.mxu0 0
    %1095 = vmatpush1.bf16.msra.mxu0 0
    %1096 = vmatprep.subr.bf16.mxu0 0
    %1097 = vmatpush1.bf16.msra.mxu0 0
    %1098 = vmatprep.subr.bf16.mxu0 0
    %1099 = vmatpush1.bf16.msra.mxu0 0
    %1100 = vmatprep.subr.bf16.mxu0 0
    %1101 = vmatpush1.bf16.msra.mxu0 0
    %1102 = vmatprep.subr.bf16.mxu0 0
    %1103 = vmatpush1.bf16.msra.mxu0 0
    %1104 = vmatprep.subr.bf16.mxu0 0
    %1105 = vmatpush1.bf16.msra.mxu0 0
    %1106 = vmatprep.subr.bf16.mxu0 0
    %1107 = vmatpush1.bf16.msra.mxu0 0
    %1108 = vmatprep.subr.bf16.mxu0 0
    %1109 = vmatpush1.bf16.msra.mxu0 0
    %1110 = vmatprep.subr.bf16.mxu0 0
    %1111 = vmatpush1.bf16.msra.mxu0 0
    %1112 = vmatprep.subr.bf16.mxu0 0
    %1113 = vmatpush1.bf16.msra.mxu0 0
    %1114 = vmatprep.subr.bf16.mxu0 0
    %1115 = vmatpush1.bf16.msra.mxu0 0
    %1116 = vmatprep.subr.bf16.mxu0 0
    %1117 = vmatpush1.bf16.msra.mxu0 0
    %1118 = vmatprep.subr.bf16.mxu0 0
    %1119 = vmatpush1.bf16.msra.mxu0 0
    %1120 = vmatprep.mubr.bf16.mxu0 0
    %1121 = vmatmul.mubr.bf16.gmra.mrb[0].mxu0 %v1086
    %v1122 = vpop.f32.mrb[0].mxu0
    %v1123 = vadd.f32 %v1071, %v1122
    %v1124 = vpop.f32.mrb[0].mxu0
    %v1125 = vpop.f32.mrb[0].mxu0
    %v1126 = vpop.f32.mrb[0].mxu0
    %1127 = vdwg.mxu0
    %vm1128 = vcmask 7168
    %1129 = vst.msk [vmem:[#allocation8] sm:$0xff] %vm1128, %v1123
    %1131 = vset.pattern.permute.xlu0 0
    %1132 = vperm.xlu0 %1131, %v1123
    %v1133 = vpop.permute.xlu0 %1132
    %v1135 = vmul.f32 %v1133, %v905
    %v1136 = vadd.f32 %v1135, %v912
    %v1137 = vpack.c.bf16 %v998, %v998
    %1139 = vrot.lane.b32.xlu0 %v1137, 64
    %v1140 = vpop.permute.xlu0 %1139
    %v1142 = vsel %vm154, %v1140, 0
    %1144 = vmatprep.subr.bf16.mxu0 0
    %1145 = vmatpush1.bf16.msra.mxu0 %v927
    %1146 = vmatprep.subr.bf16.mxu0 0
    %1147 = vmatpush1.bf16.msra.mxu0 %v928
    %1148 = vmatprep.subr.bf16.mxu0 0
    %1149 = vmatpush1.bf16.msra.mxu0 0
    %1150 = vmatprep.subr.bf16.mxu0 0
    %1151 = vmatpush1.bf16.msra.mxu0 0
    %1152 = vmatprep.subr.bf16.mxu0 0
    %1153 = vmatpush1.bf16.msra.mxu0 0
    %1154 = vmatprep.subr.bf16.mxu0 0
    %1155 = vmatpush1.bf16.msra.mxu0 0
    %1156 = vmatprep.subr.bf16.mxu0 0
    %1157 = vmatpush1.bf16.msra.mxu0 0
    %1158 = vmatprep.subr.bf16.mxu0 0
    %1159 = vmatpush1.bf16.msra.mxu0 0
    %1160 = vmatprep.subr.bf16.mxu0 0
    %1161 = vmatpush1.bf16.msra.mxu0 0
    %1162 = vmatprep.subr.bf16.mxu0 0
    %1163 = vmatpush1.bf16.msra.mxu0 0
    %1164 = vmatprep.subr.bf16.mxu0 0
    %1165 = vmatpush1.bf16.msra.mxu0 0
    %1166 = vmatprep.subr.bf16.mxu0 0
    %1167 = vmatpush1.bf16.msra.mxu0 0
    %1168 = vmatprep.subr.bf16.mxu0 0
    %1169 = vmatpush1.bf16.msra.mxu0 0
    %1170 = vmatprep.subr.bf16.mxu0 0
    %1171 = vmatpush1.bf16.msra.mxu0 0
    %1172 = vmatprep.subr.bf16.mxu0 0
    %1173 = vmatpush1.bf16.msra.mxu0 0
    %1174 = vmatprep.subr.bf16.mxu0 0
    %1175 = vmatpush1.bf16.msra.mxu0 0
    %1176 = vmatprep.mubr.bf16.mxu0 0
    %1177 = vmatmul.mubr.bf16.gmra.mrb[0].mxu0 %v1142
    %v1178 = vpop.f32.mrb[0].mxu0
    %v1179 = vadd.f32 0.0, %v1178
    %v1180 = vpop.f32.mrb[0].mxu0
    %v1181 = vpop.f32.mrb[0].mxu0
    %v1182 = vpop.f32.mrb[0].mxu0
    %1183 = vdwg.mxu0
    %v1184 = vadd.f32 %v1136, %v1179
    %v1185 = vxor.u32 %v1184, 2147483648
    %v1186 = vmul.f32 %v1185, 1.442695
    %v1187 = vpow.pop %v1186
    %v1188 = vadd.f32 %v1187, 1.0
    %v1189 = vrcp.pop %v1188
    %v1190 = vmul.f32 1.0, %v1189
    %v1191 = vtanh.pop %v1184
    %v1192 = vmul.f32 %v1190, %v992
    %1194 = vrot.lane.b32.xlu0 %v1191, 32
    %v1195 = vpop.permute.xlu0 %1194
    %v1197 = vmul.f32 %v1190, %v1195
    %1199 = vrot.lane.b32.xlu0 %v1197, 32
    %v1200 = vpop.permute.xlu0 %1199
    %v1202 = vadd.f32 %v1192, %v1200
    %v1203 = vtanh.pop %v1202
    %1205 = vrot.lane.b32.xlu0 %v1203, 32
    %v1206 = vpop.permute.xlu0 %1205
    %v1208 = vmul.f32 %v1190, %v1206
    %v1209 = vmax.f32 %v1208, 0.0
    %v1210 = vpack.c.bf16 %v1209, %v1209
    %1212 = vrot.lane.b32.xlu0 %v1210, 64
    %v1213 = vpop.permute.xlu0 %1212
    %v1215 = vsel %vm154, %v1213, 0
    %1217 = vmatprep.subr.bf16.mxu0 0
    %1218 = vmatpush1.bf16.msra.mxu0 %v1018
    %1219 = vmatprep.subr.bf16.mxu0 0
    %1220 = vmatpush1.bf16.msra.mxu0 %v1019
    %1221 = vmatprep.subr.bf16.mxu0 0
    %1222 = vmatpush1.bf16.msra.mxu0 0
    %1223 = vmatprep.subr.bf16.mxu0 0
    %1224 = vmatpush1.bf16.msra.mxu0 0
    %1225 = vmatprep.subr.bf16.mxu0 0
    %1226 = vmatpush1.bf16.msra.mxu0 0
    %1227 = vmatprep.subr.bf16.mxu0 0
    %1228 = vmatpush1.bf16.msra.mxu0 0
    %1229 = vmatprep.subr.bf16.mxu0 0
    %1230 = vmatpush1.bf16.msra.mxu0 0
    %1231 = vmatprep.subr.bf16.mxu0 0
    %1232 = vmatpush1.bf16.msra.mxu0 0
    %1233 = vmatprep.subr.bf16.mxu0 0
    %1234 = vmatpush1.bf16.msra.mxu0 0
    %1235 = vmatprep.subr.bf16.mxu0 0
    %1236 = vmatpush1.bf16.msra.mxu0 0
    %1237 = vmatprep.subr.bf16.mxu0 0
    %1238 = vmatpush1.bf16.msra.mxu0 0
    %1239 = vmatprep.subr.bf16.mxu0 0
    %1240 = vmatpush1.bf16.msra.mxu0 0
    %1241 = vmatprep.subr.bf16.mxu0 0
    %1242 = vmatpush1.bf16.msra.mxu0 0
    %1243 = vmatprep.subr.bf16.mxu0 0
    %1244 = vmatpush1.bf16.msra.mxu0 0
    %1245 = vmatprep.subr.bf16.mxu0 0
    %1246 = vmatpush1.bf16.msra.mxu0 0
    %1247 = vmatprep.subr.bf16.mxu0 0
    %1248 = vmatpush1.bf16.msra.mxu0 0
    %1249 = vmatprep.mubr.bf16.mxu0 0
    %1250 = vmatmul.mubr.bf16.gmra.mrb[0].mxu0 %v1215
    %v1251 = vpop.f32.mrb[0].mxu0
    %v1252 = vadd.f32 %v1005, %v1251
    %v1253 = vpop.f32.mrb[0].mxu0
    %v1254 = vpop.f32.mrb[0].mxu0
    %v1255 = vpop.f32.mrb[0].mxu0
    %1256 = vdwg.mxu0
    %v1257 = vmax.f32 %v1252, 0.0
    %v1258 = vpack.c.bf16 %v1257, %v1257
    %v1260 = vsel %vm154, %v1258, 0
    %1262 = vmatprep.subr.bf16.mxu0 0
    %1263 = vmatpush1.bf16.msra.mxu0 %v1081
    %1264 = vmatprep.subr.bf16.mxu0 0
    %1265 = vmatpush1.bf16.msra.mxu0 %v1082
    %1266 = vmatprep.subr.bf16.mxu0 0
    %1267 = vmatpush1.bf16.msra.mxu0 0
    %1268 = vmatprep.subr.bf16.mxu0 0
    %1269 = vmatpush1.bf16.msra.mxu0 0
    %1270 = vmatprep.subr.bf16.mxu0 0
    %1271 = vmatpush1.bf16.msra.mxu0 0
    %1272 = vmatprep.subr.bf16.mxu0 0
    %1273 = vmatpush1.bf16.msra.mxu0 0
    %1274 = vmatprep.subr.bf16.mxu0 0
    %1275 = vmatpush1.bf16.msra.mxu0 0
    %1276 = vmatprep.subr.bf16.mxu0 0
    %1277 = vmatpush1.bf16.msra.mxu0 0
    %1278 = vmatprep.subr.bf16.mxu0 0
    %1279 = vmatpush1.bf16.msra.mxu0 0
    %1280 = vmatprep.subr.bf16.mxu0 0
    %1281 = vmatpush1.bf16.msra.mxu0 0
    %1282 = vmatprep.subr.bf16.mxu0 0
    %1283 = vmatpush1.bf16.msra.mxu0 0
    %1284 = vmatprep.subr.bf16.mxu0 0
    %1285 = vmatpush1.bf16.msra.mxu0 0
    %1286 = vmatprep.subr.bf16.mxu0 0
    %1287 = vmatpush1.bf16.msra.mxu0 0
    %1288 = vmatprep.subr.bf16.mxu0 0
    %1289 = vmatpush1.bf16.msra.mxu0 0
    %1290 = vmatprep.subr.bf16.mxu0 0
    %1291 = vmatpush1.bf16.msra.mxu0 0
    %1292 = vmatprep.subr.bf16.mxu0 0
    %1293 = vmatpush1.bf16.msra.mxu0 0
    %1294 = vmatprep.mubr.bf16.mxu0 0
    %1295 = vmatmul.mubr.bf16.gmra.mrb[0].mxu0 %v1260
    %v1296 = vpop.f32.mrb[0].mxu0
    %v1297 = vadd.f32 %v1071, %v1296
    %v1298 = vpop.f32.mrb[0].mxu0
    %v1299 = vpop.f32.mrb[0].mxu0
    %v1300 = vpop.f32.mrb[0].mxu0
    %1301 = vdwg.mxu0
    %1303 = vrot.lane.b32.xlu0 %v1297, 1
    %v1304 = vpop.permute.xlu0 %1303
    %vm1306 = vcmask 15368
    %1307 = vst.msk [vmem:[#allocation8] sm:$0xff] %vm1306, %v1304
    %1308 = vset.pattern.permute.xlu0 0
    %1309 = vperm.xlu0 %1308, %v1297
    %v1310 = vpop.permute.xlu0 %1309
    %v1312 = vmul.f32 %v1310, %v905
    %v1313 = vadd.f32 %v1312, %v912
    %v1314 = vpack.c.bf16 %v1208, %v1208
    %1316 = vrot.lane.b32.xlu0 %v1314, 64
    %v1317 = vpop.permute.xlu0 %1316
    %v1319 = vsel %vm154, %v1317, 0
    %1321 = vmatprep.subr.bf16.mxu0 0
    %1322 = vmatpush1.bf16.msra.mxu0 %v927
    %1323 = vmatprep.subr.bf16.mxu0 0
    %1324 = vmatpush1.bf16.msra.mxu0 %v928
    %1325 = vmatprep.subr.bf16.mxu0 0
    %1326 = vmatpush1.bf16.msra.mxu0 0
    %1327 = vmatprep.subr.bf16.mxu0 0
    %1328 = vmatpush1.bf16.msra.mxu0 0
    %1329 = vmatprep.subr.bf16.mxu0 0
    %1330 = vmatpush1.bf16.msra.mxu0 0
    %1331 = vmatprep.subr.bf16.mxu0 0
    %1332 = vmatpush1.bf16.msra.mxu0 0
    %1333 = vmatprep.subr.bf16.mxu0 0
    %1334 = vmatpush1.bf16.msra.mxu0 0
    %1335 = vmatprep.subr.bf16.mxu0 0
    %1336 = vmatpush1.bf16.msra.mxu0 0
    %1337 = vmatprep.subr.bf16.mxu0 0
    %1338 = vmatpush1.bf16.msra.mxu0 0
    %1339 = vmatprep.subr.bf16.mxu0 0
    %1340 = vmatpush1.bf16.msra.mxu0 0
    %1341 = vmatprep.subr.bf16.mxu0 0
    %1342 = vmatpush1.bf16.msra.mxu0 0
    %1343 = vmatprep.subr.bf16.mxu0 0
    %1344 = vmatpush1.bf16.msra.mxu0 0
    %1345 = vmatprep.subr.bf16.mxu0 0
    %1346 = vmatpush1.bf16.msra.mxu0 0
    %1347 = vmatprep.subr.bf16.mxu0 0
    %1348 = vmatpush1.bf16.msra.mxu0 0
    %1349 = vmatprep.subr.bf16.mxu0 0
    %1350 = vmatpush1.bf16.msra.mxu0 0
    %1351 = vmatprep.subr.bf16.mxu0 0
    %1352 = vmatpush1.bf16.msra.mxu0 0
    %1353 = vmatprep.mubr.bf16.mxu0 0
    %1354 = vmatmul.mubr.bf16.gmra.mrb[0].mxu0 %v1319
    %v1355 = vpop.f32.mrb[0].mxu0
    %v1356 = vadd.f32 0.0, %v1355
    %v1357 = vpop.f32.mrb[0].mxu0
    %v1358 = vpop.f32.mrb[0].mxu0
    %v1359 = vpop.f32.mrb[0].mxu0
    %1360 = vdwg.mxu0
    %v1361 = vadd.f32 %v1313, %v1356
    %v1362 = vxor.u32 %v1361, 2147483648
    %v1363 = vmul.f32 %v1362, 1.442695
    %v1364 = vpow.pop %v1363
    %v1365 = vadd.f32 %v1364, 1.0
    %v1366 = vrcp.pop %v1365
    %v1367 = vmul.f32 1.0, %v1366
    %v1368 = vtanh.pop %v1361
    %v1369 = vmul.f32 %v1367, %v1202
    %1371 = vrot.lane.b32.xlu0 %v1368, 32
    %v1372 = vpop.permute.xlu0 %1371
    %v1374 = vmul.f32 %v1367, %v1372
    %1376 = vrot.lane.b32.xlu0 %v1374, 32
    %v1377 = vpop.permute.xlu0 %1376
    %v1379 = vadd.f32 %v1369, %v1377
    %v1380 = vtanh.pop %v1379
    %1382 = vrot.lane.b32.xlu0 %v1380, 32
    %v1383 = vpop.permute.xlu0 %1382
    %v1385 = vmul.f32 %v1367, %v1383
    %v1386 = vmax.f32 %v1385, 0.0
    %v1387 = vpack.c.bf16 %v1386, %v1386
    %1389 = vrot.lane.b32.xlu0 %v1387, 64
    %v1390 = vpop.permute.xlu0 %1389
    %v1392 = vsel %vm154, %v1390, 0
    %1394 = vmatprep.subr.bf16.mxu0 0
    %1395 = vmatpush1.bf16.msra.mxu0 %v1018
    %1396 = vmatprep.subr.bf16.mxu0 0
    %1397 = vmatpush1.bf16.msra.mxu0 %v1019
    %1398 = vmatprep.subr.bf16.mxu0 0
    %1399 = vmatpush1.bf16.msra.mxu0 0
    %1400 = vmatprep.subr.bf16.mxu0 0
    %1401 = vmatpush1.bf16.msra.mxu0 0
    %1402 = vmatprep.subr.bf16.mxu0 0
    %1403 = vmatpush1.bf16.msra.mxu0 0
    %1404 = vmatprep.subr.bf16.mxu0 0
    %1405 = vmatpush1.bf16.msra.mxu0 0
    %1406 = vmatprep.subr.bf16.mxu0 0
    %1407 = vmatpush1.bf16.msra.mxu0 0
    %1408 = vmatprep.subr.bf16.mxu0 0
    %1409 = vmatpush1.bf16.msra.mxu0 0
    %1410 = vmatprep.subr.bf16.mxu0 0
    %1411 = vmatpush1.bf16.msra.mxu0 0
    %1412 = vmatprep.subr.bf16.mxu0 0
    %1413 = vmatpush1.bf16.msra.mxu0 0
    %1414 = vmatprep.subr.bf16.mxu0 0
    %1415 = vmatpush1.bf16.msra.mxu0 0
    %1416 = vmatprep.subr.bf16.mxu0 0
    %1417 = vmatpush1.bf16.msra.mxu0 0
    %1418 = vmatprep.subr.bf16.mxu0 0
    %1419 = vmatpush1.bf16.msra.mxu0 0
    %1420 = vmatprep.subr.bf16.mxu0 0
    %1421 = vmatpush1.bf16.msra.mxu0 0
    %1422 = vmatprep.subr.bf16.mxu0 0
    %1423 = vmatpush1.bf16.msra.mxu0 0
    %1424 = vmatprep.subr.bf16.mxu0 0
    %1425 = vmatpush1.bf16.msra.mxu0 0
    %1426 = vmatprep.mubr.bf16.mxu0 0
    %1427 = vmatmul.mubr.bf16.gmra.mrb[0].mxu0 %v1392
    %v1428 = vpop.f32.mrb[0].mxu0
    %v1429 = vadd.f32 %v1005, %v1428
    %v1430 = vpop.f32.mrb[0].mxu0
    %v1431 = vpop.f32.mrb[0].mxu0
    %v1432 = vpop.f32.mrb[0].mxu0
    %1433 = vdwg.mxu0
    %v1434 = vmax.f32 %v1429, 0.0
    %v1435 = vpack.c.bf16 %v1434, %v1434
    %v1437 = vsel %vm154, %v1435, 0
    %1439 = vmatprep.subr.bf16.mxu0 0
    %1440 = vmatpush1.bf16.msra.mxu0 %v1081
    %1441 = vmatprep.subr.bf16.mxu0 0
    %1442 = vmatpush1.bf16.msra.mxu0 %v1082
    %1443 = vmatprep.subr.bf16.mxu0 0
    %1444 = vmatpush1.bf16.msra.mxu0 0
    %1445 = vmatprep.subr.bf16.mxu0 0
    %1446 = vmatpush1.bf16.msra.mxu0 0
    %1447 = vmatprep.subr.bf16.mxu0 0
    %1448 = vmatpush1.bf16.msra.mxu0 0
    %1449 = vmatprep.subr.bf16.mxu0 0
    %1450 = vmatpush1.bf16.msra.mxu0 0
    %1451 = vmatprep.subr.bf16.mxu0 0
    %1452 = vmatpush1.bf16.msra.mxu0 0
    %1453 = vmatprep.subr.bf16.mxu0 0
    %1454 = vmatpush1.bf16.msra.mxu0 0
    %1455 = vmatprep.subr.bf16.mxu0 0
    %1456 = vmatpush1.bf16.msra.mxu0 0
    %1457 = vmatprep.subr.bf16.mxu0 0
    %1458 = vmatpush1.bf16.msra.mxu0 0
    %1459 = vmatprep.subr.bf16.mxu0 0
    %1460 = vmatpush1.bf16.msra.mxu0 0
    %1461 = vmatprep.subr.bf16.mxu0 0
    %1462 = vmatpush1.bf16.msra.mxu0 0
    %1463 = vmatprep.subr.bf16.mxu0 0
    %1464 = vmatpush1.bf16.msra.mxu0 0
    %1465 = vmatprep.subr.bf16.mxu0 0
    %1466 = vmatpush1.bf16.msra.mxu0 0
    %1467 = vmatprep.subr.bf16.mxu0 0
    %1468 = vmatpush1.bf16.msra.mxu0 0
    %1469 = vmatprep.subr.bf16.mxu0 0
    %1470 = vmatpush1.bf16.msra.mxu0 0
    %1471 = vmatprep.mubr.bf16.mxu0 0
    %1472 = vmatmul.mubr.bf16.gmra.mrb[0].mxu0 %v1437
    %v1473 = vpop.f32.mrb[0].mxu0
    %v1474 = vadd.f32 %v1071, %v1473
    %v1475 = vpop.f32.mrb[0].mxu0
    %v1476 = vpop.f32.mrb[0].mxu0
    %v1477 = vpop.f32.mrb[0].mxu0
    %1478 = vdwg.mxu0
    %1480 = vrot.lane.b32.xlu0 %v1474, 2
    %v1481 = vpop.permute.xlu0 %1480
    %vm1483 = vcmask 23568
    %1484 = vst.msk [vmem:[#allocation8] sm:$0xff] %vm1483, %v1481
    %1485 = vset.pattern.permute.xlu0 0
    %1486 = vperm.xlu0 %1485, %v1474
    %v1487 = vpop.permute.xlu0 %1486
    %v1489 = vmul.f32 %v1487, %v905
    %v1490 = vadd.f32 %v1489, %v912
    %v1491 = vpack.c.bf16 %v1385, %v1385
    %1493 = vrot.lane.b32.xlu0 %v1491, 64
    %v1494 = vpop.permute.xlu0 %1493
    %v1496 = vsel %vm154, %v1494, 0
    %1498 = vmatprep.subr.bf16.mxu0 0
    %1499 = vmatpush1.bf16.msra.mxu0 %v927
    %1500 = vmatprep.subr.bf16.mxu0 0
    %1501 = vmatpush1.bf16.msra.mxu0 %v928
    %1502 = vmatprep.subr.bf16.mxu0 0
    %1503 = vmatpush1.bf16.msra.mxu0 0
    %1504 = vmatprep.subr.bf16.mxu0 0
    %1505 = vmatpush1.bf16.msra.mxu0 0
    %1506 = vmatprep.subr.bf16.mxu0 0
    %1507 = vmatpush1.bf16.msra.mxu0 0
    %1508 = vmatprep.subr.bf16.mxu0 0
    %1509 = vmatpush1.bf16.msra.mxu0 0
    %1510 = vmatprep.subr.bf16.mxu0 0
    %1511 = vmatpush1.bf16.msra.mxu0 0
    %1512 = vmatprep.subr.bf16.mxu0 0
    %1513 = vmatpush1.bf16.msra.mxu0 0
    %1514 = vmatprep.subr.bf16.mxu0 0
    %1515 = vmatpush1.bf16.msra.mxu0 0
    %1516 = vmatprep.subr.bf16.mxu0 0
    %1517 = vmatpush1.bf16.msra.mxu0 0
    %1518 = vmatprep.subr.bf16.mxu0 0
    %1519 = vmatpush1.bf16.msra.mxu0 0
    %1520 = vmatprep.subr.bf16.mxu0 0
    %1521 = vmatpush1.bf16.msra.mxu0 0
    %1522 = vmatprep.subr.bf16.mxu0 0
    %1523 = vmatpush1.bf16.msra.mxu0 0
    %1524 = vmatprep.subr.bf16.mxu0 0
    %1525 = vmatpush1.bf16.msra.mxu0 0
    %1526 = vmatprep.subr.bf16.mxu0 0
    %1527 = vmatpush1.bf16.msra.mxu0 0
    %1528 = vmatprep.subr.bf16.mxu0 0
    %1529 = vmatpush1.bf16.msra.mxu0 0
    %1530 = vmatprep.mubr.bf16.mxu0 0
    %1531 = vmatmul.mubr.bf16.gmra.mrb[0].mxu0 %v1496
    %v1532 = vpop.f32.mrb[0].mxu0
    %v1533 = vadd.f32 0.0, %v1532
    %v1534 = vpop.f32.mrb[0].mxu0
    %v1535 = vpop.f32.mrb[0].mxu0
    %v1536 = vpop.f32.mrb[0].mxu0
    %1537 = vdwg.mxu0
    %v1538 = vadd.f32 %v1490, %v1533
    %v1539 = vxor.u32 %v1538, 2147483648
    %v1540 = vmul.f32 %v1539, 1.442695
    %v1541 = vpow.pop %v1540
    %v1542 = vadd.f32 %v1541, 1.0
    %v1543 = vrcp.pop %v1542
    %v1544 = vmul.f32 1.0, %v1543
    %v1545 = vtanh.pop %v1538
    %v1546 = vmul.f32 %v1544, %v1379
    %1548 = vrot.lane.b32.xlu0 %v1545, 32
    %v1549 = vpop.permute.xlu0 %1548
    %v1551 = vmul.f32 %v1544, %v1549
    %1553 = vrot.lane.b32.xlu0 %v1551, 32
    %v1554 = vpop.permute.xlu0 %1553
    %v1556 = vadd.f32 %v1546, %v1554
    %v1557 = vtanh.pop %v1556
    %1559 = vrot.lane.b32.xlu0 %v1557, 32
    %v1560 = vpop.permute.xlu0 %1559
    %v1562 = vmul.f32 %v1544, %v1560
    %v1563 = vmax.f32 %v1562, 0.0
    %v1564 = vpack.c.bf16 %v1563, %v1563
    %1566 = vrot.lane.b32.xlu0 %v1564, 64
    %v1567 = vpop.permute.xlu0 %1566
    %v1569 = vsel %vm154, %v1567, 0
    %1571 = vmatprep.subr.bf16.mxu0 0
    %1572 = vmatpush1.bf16.msra.mxu0 %v1018
    %1573 = vmatprep.subr.bf16.mxu0 0
    %1574 = vmatpush1.bf16.msra.mxu0 %v1019
    %1575 = vmatprep.subr.bf16.mxu0 0
    %1576 = vmatpush1.bf16.msra.mxu0 0
    %1577 = vmatprep.subr.bf16.mxu0 0
    %1578 = vmatpush1.bf16.msra.mxu0 0
    %1579 = vmatprep.subr.bf16.mxu0 0
    %1580 = vmatpush1.bf16.msra.mxu0 0
    %1581 = vmatprep.subr.bf16.mxu0 0
    %1582 = vmatpush1.bf16.msra.mxu0 0
    %1583 = vmatprep.subr.bf16.mxu0 0
    %1584 = vmatpush1.bf16.msra.mxu0 0
    %1585 = vmatprep.subr.bf16.mxu0 0
    %1586 = vmatpush1.bf16.msra.mxu0 0
    %1587 = vmatprep.subr.bf16.mxu0 0
    %1588 = vmatpush1.bf16.msra.mxu0 0
    %1589 = vmatprep.subr.bf16.mxu0 0
    %1590 = vmatpush1.bf16.msra.mxu0 0
    %1591 = vmatprep.subr.bf16.mxu0 0
    %1592 = vmatpush1.bf16.msra.mxu0 0
    %1593 = vmatprep.subr.bf16.mxu0 0
    %1594 = vmatpush1.bf16.msra.mxu0 0
    %1595 = vmatprep.subr.bf16.mxu0 0
    %1596 = vmatpush1.bf16.msra.mxu0 0
    %1597 = vmatprep.subr.bf16.mxu0 0
    %1598 = vmatpush1.bf16.msra.mxu0 0
    %1599 = vmatprep.subr.bf16.mxu0 0
    %1600 = vmatpush1.bf16.msra.mxu0 0
    %1601 = vmatprep.subr.bf16.mxu0 0
    %1602 = vmatpush1.bf16.msra.mxu0 0
    %1603 = vmatprep.mubr.bf16.mxu0 0
    %1604 = vmatmul.mubr.bf16.gmra.mrb[0].mxu0 %v1569
    %v1605 = vpop.f32.mrb[0].mxu0
    %v1606 = vadd.f32 %v1005, %v1605
    %v1607 = vpop.f32.mrb[0].mxu0
    %v1608 = vpop.f32.mrb[0].mxu0
    %v1609 = vpop.f32.mrb[0].mxu0
    %1610 = vdwg.mxu0
    %v1611 = vmax.f32 %v1606, 0.0
    %v1612 = vpack.c.bf16 %v1611, %v1611
    %v1614 = vsel %vm154, %v1612, 0
    %1616 = vmatprep.subr.bf16.mxu0 0
    %1617 = vmatpush1.bf16.msra.mxu0 %v1081
    %1618 = vmatprep.subr.bf16.mxu0 0
    %1619 = vmatpush1.bf16.msra.mxu0 %v1082
    %1620 = vmatprep.subr.bf16.mxu0 0
    %1621 = vmatpush1.bf16.msra.mxu0 0
    %1622 = vmatprep.subr.bf16.mxu0 0
    %1623 = vmatpush1.bf16.msra.mxu0 0
    %1624 = vmatprep.subr.bf16.mxu0 0
    %1625 = vmatpush1.bf16.msra.mxu0 0
    %1626 = vmatprep.subr.bf16.mxu0 0
    %1627 = vmatpush1.bf16.msra.mxu0 0
    %1628 = vmatprep.subr.bf16.mxu0 0
    %1629 = vmatpush1.bf16.msra.mxu0 0
    %1630 = vmatprep.subr.bf16.mxu0 0
    %1631 = vmatpush1.bf16.msra.mxu0 0
    %1632 = vmatprep.subr.bf16.mxu0 0
    %1633 = vmatpush1.bf16.msra.mxu0 0
    %1634 = vmatprep.subr.bf16.mxu0 0
    %1635 = vmatpush1.bf16.msra.mxu0 0
    %1636 = vmatprep.subr.bf16.mxu0 0
    %1637 = vmatpush1.bf16.msra.mxu0 0
    %1638 = vmatprep.subr.bf16.mxu0 0
    %1639 = vmatpush1.bf16.msra.mxu0 0
    %1640 = vmatprep.subr.bf16.mxu0 0
    %1641 = vmatpush1.bf16.msra.mxu0 0
    %1642 = vmatprep.subr.bf16.mxu0 0
    %1643 = vmatpush1.bf16.msra.mxu0 0
    %1644 = vmatprep.subr.bf16.mxu0 0
    %1645 = vmatpush1.bf16.msra.mxu0 0
    %1646 = vmatprep.subr.bf16.mxu0 0
    %1647 = vmatpush1.bf16.msra.mxu0 0
    %1648 = vmatprep.mubr.bf16.mxu0 0
    %1649 = vmatmul.mubr.bf16.gmra.mrb[0].mxu0 %v1614
    %v1650 = vpop.f32.mrb[0].mxu0
    %v1651 = vadd.f32 %v1071, %v1650
    %v1652 = vpop.f32.mrb[0].mxu0
    %v1653 = vpop.f32.mrb[0].mxu0
    %v1654 = vpop.f32.mrb[0].mxu0
    %1655 = vdwg.mxu0
    %1657 = vrot.lane.b32.xlu0 %v1651, 3
    %v1658 = vpop.permute.xlu0 %1657
    %vm1660 = vcmask 31768
    %1661 = vst.msk [vmem:[#allocation8] sm:$0xff] %vm1660, %v1658
    %1662 = vset.pattern.permute.xlu0 0
    %1663 = vperm.xlu0 %1662, %v1651
    %v1664 = vpop.permute.xlu0 %1663
    %v1666 = vmul.f32 %v1664, %v905
    %v1667 = vadd.f32 %v1666, %v912
    %v1668 = vpack.c.bf16 %v1562, %v1562
    %1670 = vrot.lane.b32.xlu0 %v1668, 64
    %v1671 = vpop.permute.xlu0 %1670
    %v1673 = vsel %vm154, %v1671, 0
    %1675 = vmatprep.subr.bf16.mxu0 0
    %1676 = vmatpush1.bf16.msra.mxu0 %v927
    %1677 = vmatprep.subr.bf16.mxu0 0
    %1678 = vmatpush1.bf16.msra.mxu0 %v928
    %1679 = vmatprep.subr.bf16.mxu0 0
    %1680 = vmatpush1.bf16.msra.mxu0 0
    %1681 = vmatprep.subr.bf16.mxu0 0
    %1682 = vmatpush1.bf16.msra.mxu0 0
    %1683 = vmatprep.subr.bf16.mxu0 0
    %1684 = vmatpush1.bf16.msra.mxu0 0
    %1685 = vmatprep.subr.bf16.mxu0 0
    %1686 = vmatpush1.bf16.msra.mxu0 0
    %1687 = vmatprep.subr.bf16.mxu0 0
    %1688 = vmatpush1.bf16.msra.mxu0 0
    %1689 = vmatprep.subr.bf16.mxu0 0
    %1690 = vmatpush1.bf16.msra.mxu0 0
    %1691 = vmatprep.subr.bf16.mxu0 0
    %1692 = vmatpush1.bf16.msra.mxu0 0
    %1693 = vmatprep.subr.bf16.mxu0 0
    %1694 = vmatpush1.bf16.msra.mxu0 0
    %1695 = vmatprep.subr.bf16.mxu0 0
    %1696 = vmatpush1.bf16.msra.mxu0 0
    %1697 = vmatprep.subr.bf16.mxu0 0
    %1698 = vmatpush1.bf16.msra.mxu0 0
    %1699 = vmatprep.subr.bf16.mxu0 0
    %1700 = vmatpush1.bf16.msra.mxu0 0
    %1701 = vmatprep.subr.bf16.mxu0 0
    %1702 = vmatpush1.bf16.msra.mxu0 0
    %1703 = vmatprep.subr.bf16.mxu0 0
    %1704 = vmatpush1.bf16.msra.mxu0 0
    %1705 = vmatprep.subr.bf16.mxu0 0
    %1706 = vmatpush1.bf16.msra.mxu0 0
    %1707 = vmatprep.mubr.bf16.mxu0 0
    %1708 = vmatmul.mubr.bf16.gmra.mrb[0].mxu0 %v1673
    %v1709 = vpop.f32.mrb[0].mxu0
    %v1710 = vadd.f32 0.0, %v1709
    %v1711 = vpop.f32.mrb[0].mxu0
    %v1712 = vpop.f32.mrb[0].mxu0
    %v1713 = vpop.f32.mrb[0].mxu0
    %1714 = vdwg.mxu0
    %v1715 = vadd.f32 %v1667, %v1710
    %v1716 = vxor.u32 %v1715, 2147483648
    %v1717 = vmul.f32 %v1716, 1.442695
    %v1718 = vpow.pop %v1717
    %v1719 = vadd.f32 %v1718, 1.0
    %v1720 = vrcp.pop %v1719
    %v1721 = vmul.f32 1.0, %v1720
    %v1722 = vtanh.pop %v1715
    %v1723 = vmul.f32 %v1721, %v1556
    %1725 = vrot.lane.b32.xlu0 %v1722, 32
    %v1726 = vpop.permute.xlu0 %1725
    %v1728 = vmul.f32 %v1721, %v1726
    %1730 = vrot.lane.b32.xlu0 %v1728, 32
    %v1731 = vpop.permute.xlu0 %1730
    %v1733 = vadd.f32 %v1723, %v1731
    %v1734 = vtanh.pop %v1733
    %1736 = vrot.lane.b32.xlu0 %v1734, 32
    %v1737 = vpop.permute.xlu0 %1736
    %v1739 = vmul.f32 %v1721, %v1737
    %v1740 = vmax.f32 %v1739, 0.0
    %v1741 = vpack.c.bf16 %v1740, %v1740
    %1743 = vrot.lane.b32.xlu0 %v1741, 64
    %v1744 = vpop.permute.xlu0 %1743
    %v1746 = vsel %vm154, %v1744, 0
    %1748 = vmatprep.subr.bf16.mxu0 0
    %1749 = vmatpush1.bf16.msra.mxu0 %v1018
    %1750 = vmatprep.subr.bf16.mxu0 0
    %1751 = vmatpush1.bf16.msra.mxu0 %v1019
    %1752 = vmatprep.subr.bf16.mxu0 0
    %1753 = vmatpush1.bf16.msra.mxu0 0
    %1754 = vmatprep.subr.bf16.mxu0 0
    %1755 = vmatpush1.bf16.msra.mxu0 0
    %1756 = vmatprep.subr.bf16.mxu0 0
    %1757 = vmatpush1.bf16.msra.mxu0 0
    %1758 = vmatprep.subr.bf16.mxu0 0
    %1759 = vmatpush1.bf16.msra.mxu0 0
    %1760 = vmatprep.subr.bf16.mxu0 0
    %1761 = vmatpush1.bf16.msra.mxu0 0
    %1762 = vmatprep.subr.bf16.mxu0 0
    %1763 = vmatpush1.bf16.msra.mxu0 0
    %1764 = vmatprep.subr.bf16.mxu0 0
    %1765 = vmatpush1.bf16.msra.mxu0 0
    %1766 = vmatprep.subr.bf16.mxu0 0
    %1767 = vmatpush1.bf16.msra.mxu0 0
    %1768 = vmatprep.subr.bf16.mxu0 0
    %1769 = vmatpush1.bf16.msra.mxu0 0
    %1770 = vmatprep.subr.bf16.mxu0 0
    %1771 = vmatpush1.bf16.msra.mxu0 0
    %1772 = vmatprep.subr.bf16.mxu0 0
    %1773 = vmatpush1.bf16.msra.mxu0 0
    %1774 = vmatprep.subr.bf16.mxu0 0
    %1775 = vmatpush1.bf16.msra.mxu0 0
    %1776 = vmatprep.subr.bf16.mxu0 0
    %1777 = vmatpush1.bf16.msra.mxu0 0
    %1778 = vmatprep.subr.bf16.mxu0 0
    %1779 = vmatpush1.bf16.msra.mxu0 0
    %1780 = vmatprep.mubr.bf16.mxu0 0
    %1781 = vmatmul.mubr.bf16.gmra.mrb[0].mxu0 %v1746
    %v1782 = vpop.f32.mrb[0].mxu0
    %v1783 = vadd.f32 %v1005, %v1782
    %v1784 = vpop.f32.mrb[0].mxu0
    %v1785 = vpop.f32.mrb[0].mxu0
    %v1786 = vpop.f32.mrb[0].mxu0
    %1787 = vdwg.mxu0
    %v1788 = vmax.f32 %v1783, 0.0
    %v1789 = vpack.c.bf16 %v1788, %v1788
    %v1791 = vsel %vm154, %v1789, 0
    %1793 = vmatprep.subr.bf16.mxu0 0
    %1794 = vmatpush1.bf16.msra.mxu0 %v1081
    %1795 = vmatprep.subr.bf16.mxu0 0
    %1796 = vmatpush1.bf16.msra.mxu0 %v1082
    %1797 = vmatprep.subr.bf16.mxu0 0
    %1798 = vmatpush1.bf16.msra.mxu0 0
    %1799 = vmatprep.subr.bf16.mxu0 0
    %1800 = vmatpush1.bf16.msra.mxu0 0
    %1801 = vmatprep.subr.bf16.mxu0 0
    %1802 = vmatpush1.bf16.msra.mxu0 0
    %1803 = vmatprep.subr.bf16.mxu0 0
    %1804 = vmatpush1.bf16.msra.mxu0 0
    %1805 = vmatprep.subr.bf16.mxu0 0
    %1806 = vmatpush1.bf16.msra.mxu0 0
    %1807 = vmatprep.subr.bf16.mxu0 0
    %1808 = vmatpush1.bf16.msra.mxu0 0
    %1809 = vmatprep.subr.bf16.mxu0 0
    %1810 = vmatpush1.bf16.msra.mxu0 0
    %1811 = vmatprep.subr.bf16.mxu0 0
    %1812 = vmatpush1.bf16.msra.mxu0 0
    %1813 = vmatprep.subr.bf16.mxu0 0
    %1814 = vmatpush1.bf16.msra.mxu0 0
    %1815 = vmatprep.subr.bf16.mxu0 0
    %1816 = vmatpush1.bf16.msra.mxu0 0
    %1817 = vmatprep.subr.bf16.mxu0 0
    %1818 = vmatpush1.bf16.msra.mxu0 0
    %1819 = vmatprep.subr.bf16.mxu0 0
    %1820 = vmatpush1.bf16.msra.mxu0 0
    %1821 = vmatprep.subr.bf16.mxu0 0
    %1822 = vmatpush1.bf16.msra.mxu0 0
    %1823 = vmatprep.subr.bf16.mxu0 0
    %1824 = vmatpush1.bf16.msra.mxu0 0
    %1825 = vmatprep.mubr.bf16.mxu0 0
    %1826 = vmatmul.mubr.bf16.gmra.mrb[0].mxu0 %v1791
    %v1827 = vpop.f32.mrb[0].mxu0
    %v1828 = vadd.f32 %v1071, %v1827
    %v1829 = vpop.f32.mrb[0].mxu0
    %v1830 = vpop.f32.mrb[0].mxu0
    %v1831 = vpop.f32.mrb[0].mxu0
    %1832 = vdwg.mxu0
    %1834 = vrot.lane.b32.xlu0 %v1828, 4
    %v1835 = vpop.permute.xlu0 %1834
    %vm1837 = vcmask 39968
    %1838 = vst.msk [vmem:[#allocation8] sm:$0xff] %vm1837, %v1835
    %1839 = vset.pattern.permute.xlu0 0
    %1840 = vperm.xlu0 %1839, %v1828
    %v1841 = vpop.permute.xlu0 %1840
    %v1843 = vmul.f32 %v1841, %v905
    %v1844 = vadd.f32 %v1843, %v912
    %v1845 = vpack.c.bf16 %v1739, %v1739
    %1847 = vrot.lane.b32.xlu0 %v1845, 64
    %v1848 = vpop.permute.xlu0 %1847
    %v1850 = vsel %vm154, %v1848, 0
    %1852 = vmatprep.subr.bf16.mxu0 0
    %1853 = vmatpush1.bf16.msra.mxu0 %v927
    %1854 = vmatprep.subr.bf16.mxu0 0
    %1855 = vmatpush1.bf16.msra.mxu0 %v928
    %1856 = vmatprep.subr.bf16.mxu0 0
    %1857 = vmatpush1.bf16.msra.mxu0 0
    %1858 = vmatprep.subr.bf16.mxu0 0
    %1859 = vmatpush1.bf16.msra.mxu0 0
    %1860 = vmatprep.subr.bf16.mxu0 0
    %1861 = vmatpush1.bf16.msra.mxu0 0
    %1862 = vmatprep.subr.bf16.mxu0 0
    %1863 = vmatpush1.bf16.msra.mxu0 0
    %1864 = vmatprep.subr.bf16.mxu0 0
    %1865 = vmatpush1.bf16.msra.mxu0 0
    %1866 = vmatprep.subr.bf16.mxu0 0
    %1867 = vmatpush1.bf16.msra.mxu0 0
    %1868 = vmatprep.subr.bf16.mxu0 0
    %1869 = vmatpush1.bf16.msra.mxu0 0
    %1870 = vmatprep.subr.bf16.mxu0 0
    %1871 = vmatpush1.bf16.msra.mxu0 0
    %1872 = vmatprep.subr.bf16.mxu0 0
    %1873 = vmatpush1.bf16.msra.mxu0 0
    %1874 = vmatprep.subr.bf16.mxu0 0
    %1875 = vmatpush1.bf16.msra.mxu0 0
    %1876 = vmatprep.subr.bf16.mxu0 0
    %1877 = vmatpush1.bf16.msra.mxu0 0
    %1878 = vmatprep.subr.bf16.mxu0 0
    %1879 = vmatpush1.bf16.msra.mxu0 0
    %1880 = vmatprep.subr.bf16.mxu0 0
    %1881 = vmatpush1.bf16.msra.mxu0 0
    %1882 = vmatprep.subr.bf16.mxu0 0
    %1883 = vmatpush1.bf16.msra.mxu0 0
    %1884 = vmatprep.mubr.bf16.mxu0 0
    %1885 = vmatmul.mubr.bf16.gmra.mrb[0].mxu0 %v1850
    %v1886 = vpop.f32.mrb[0].mxu0
    %v1887 = vadd.f32 0.0, %v1886
    %v1888 = vpop.f32.mrb[0].mxu0
    %v1889 = vpop.f32.mrb[0].mxu0
    %v1890 = vpop.f32.mrb[0].mxu0
    %1891 = vdwg.mxu0
    %v1892 = vadd.f32 %v1844, %v1887
    %v1893 = vxor.u32 %v1892, 2147483648
    %v1894 = vmul.f32 %v1893, 1.442695
    %v1895 = vpow.pop %v1894
    %v1896 = vadd.f32 %v1895, 1.0
    %v1897 = vrcp.pop %v1896
    %v1898 = vmul.f32 1.0, %v1897
    %v1899 = vtanh.pop %v1892
    %v1900 = vmul.f32 %v1898, %v1733
    %1902 = vrot.lane.b32.xlu0 %v1899, 32
    %v1903 = vpop.permute.xlu0 %1902
    %v1905 = vmul.f32 %v1898, %v1903
    %1907 = vrot.lane.b32.xlu0 %v1905, 32
    %v1908 = vpop.permute.xlu0 %1907
    %v1910 = vadd.f32 %v1900, %v1908
    %v1911 = vtanh.pop %v1910
    %1913 = vrot.lane.b32.xlu0 %v1911, 32
    %v1914 = vpop.permute.xlu0 %1913
    %v1916 = vmul.f32 %v1898, %v1914
    %v1917 = vmax.f32 %v1916, 0.0
    %v1918 = vpack.c.bf16 %v1917, %v1917
    %1920 = vrot.lane.b32.xlu0 %v1918, 64
    %v1921 = vpop.permute.xlu0 %1920
    %v1923 = vsel %vm154, %v1921, 0
    %1925 = vmatprep.subr.bf16.mxu0 0
    %1926 = vmatpush1.bf16.msra.mxu0 %v1018
    %1927 = vmatprep.subr.bf16.mxu0 0
    %1928 = vmatpush1.bf16.msra.mxu0 %v1019
    %1929 = vmatprep.subr.bf16.mxu0 0
    %1930 = vmatpush1.bf16.msra.mxu0 0
    %1931 = vmatprep.subr.bf16.mxu0 0
    %1932 = vmatpush1.bf16.msra.mxu0 0
    %1933 = vmatprep.subr.bf16.mxu0 0
    %1934 = vmatpush1.bf16.msra.mxu0 0
    %1935 = vmatprep.subr.bf16.mxu0 0
    %1936 = vmatpush1.bf16.msra.mxu0 0
    %1937 = vmatprep.subr.bf16.mxu0 0
    %1938 = vmatpush1.bf16.msra.mxu0 0
    %1939 = vmatprep.subr.bf16.mxu0 0
    %1940 = vmatpush1.bf16.msra.mxu0 0
    %1941 = vmatprep.subr.bf16.mxu0 0
    %1942 = vmatpush1.bf16.msra.mxu0 0
    %1943 = vmatprep.subr.bf16.mxu0 0
    %1944 = vmatpush1.bf16.msra.mxu0 0
    %1945 = vmatprep.subr.bf16.mxu0 0
    %1946 = vmatpush1.bf16.msra.mxu0 0
    %1947 = vmatprep.subr.bf16.mxu0 0
    %1948 = vmatpush1.bf16.msra.mxu0 0
    %1949 = vmatprep.subr.bf16.mxu0 0
    %1950 = vmatpush1.bf16.msra.mxu0 0
    %1951 = vmatprep.subr.bf16.mxu0 0
    %1952 = vmatpush1.bf16.msra.mxu0 0
    %1953 = vmatprep.subr.bf16.mxu0 0
    %1954 = vmatpush1.bf16.msra.mxu0 0
    %1955 = vmatprep.subr.bf16.mxu0 0
    %1956 = vmatpush1.bf16.msra.mxu0 0
    %1957 = vmatprep.mubr.bf16.mxu0 0
    %1958 = vmatmul.mubr.bf16.gmra.mrb[0].mxu0 %v1923
    %v1959 = vpop.f32.mrb[0].mxu0
    %v1960 = vadd.f32 %v1005, %v1959
    %v1961 = vpop.f32.mrb[0].mxu0
    %v1962 = vpop.f32.mrb[0].mxu0
    %v1963 = vpop.f32.mrb[0].mxu0
    %1964 = vdwg.mxu0
    %v1965 = vmax.f32 %v1960, 0.0
    %v1966 = vpack.c.bf16 %v1965, %v1965
    %v1968 = vsel %vm154, %v1966, 0
    %1970 = vmatprep.subr.bf16.mxu0 0
    %1971 = vmatpush1.bf16.msra.mxu0 %v1081
    %1972 = vmatprep.subr.bf16.mxu0 0
    %1973 = vmatpush1.bf16.msra.mxu0 %v1082
    %1974 = vmatprep.subr.bf16.mxu0 0
    %1975 = vmatpush1.bf16.msra.mxu0 0
    %1976 = vmatprep.subr.bf16.mxu0 0
    %1977 = vmatpush1.bf16.msra.mxu0 0
    %1978 = vmatprep.subr.bf16.mxu0 0
    %1979 = vmatpush1.bf16.msra.mxu0 0
    %1980 = vmatprep.subr.bf16.mxu0 0
    %1981 = vmatpush1.bf16.msra.mxu0 0
    %1982 = vmatprep.subr.bf16.mxu0 0
    %1983 = vmatpush1.bf16.msra.mxu0 0
    %1984 = vmatprep.subr.bf16.mxu0 0
    %1985 = vmatpush1.bf16.msra.mxu0 0
    %1986 = vmatprep.subr.bf16.mxu0 0
    %1987 = vmatpush1.bf16.msra.mxu0 0
    %1988 = vmatprep.subr.bf16.mxu0 0
    %1989 = vmatpush1.bf16.msra.mxu0 0
    %1990 = vmatprep.subr.bf16.mxu0 0
    %1991 = vmatpush1.bf16.msra.mxu0 0
    %1992 = vmatprep.subr.bf16.mxu0 0
    %1993 = vmatpush1.bf16.msra.mxu0 0
    %1994 = vmatprep.subr.bf16.mxu0 0
    %1995 = vmatpush1.bf16.msra.mxu0 0
    %1996 = vmatprep.subr.bf16.mxu0 0
    %1997 = vmatpush1.bf16.msra.mxu0 0
    %1998 = vmatprep.subr.bf16.mxu0 0
    %1999 = vmatpush1.bf16.msra.mxu0 0
    %2000 = vmatprep.subr.bf16.mxu0 0
    %2001 = vmatpush1.bf16.msra.mxu0 0
    %2002 = vmatprep.mubr.bf16.mxu0 0
    %2003 = vmatmul.mubr.bf16.gmra.mrb[0].mxu0 %v1968
    %v2004 = vpop.f32.mrb[0].mxu0
    %v2005 = vadd.f32 %v1071, %v2004
    %v2006 = vpop.f32.mrb[0].mxu0
    %v2007 = vpop.f32.mrb[0].mxu0
    %v2008 = vpop.f32.mrb[0].mxu0
    %2009 = vdwg.mxu0
    %2011 = vrot.lane.b32.xlu0 %v2005, 5
    %v2012 = vpop.permute.xlu0 %2011
    %vm2014 = vcmask 48168
    %2015 = vst.msk [vmem:[#allocation8] sm:$0xff] %vm2014, %v2012
    %2016 = vset.pattern.permute.xlu0 0
    %2017 = vperm.xlu0 %2016, %v2005
    %v2018 = vpop.permute.xlu0 %2017
    %v2020 = vmul.f32 %v2018, %v905
    %v2021 = vadd.f32 %v2020, %v912
    %v2022 = vpack.c.bf16 %v1916, %v1916
    %2024 = vrot.lane.b32.xlu0 %v2022, 64
    %v2025 = vpop.permute.xlu0 %2024
    %v2027 = vsel %vm154, %v2025, 0
    %2029 = vmatprep.subr.bf16.mxu0 0
    %2030 = vmatpush1.bf16.msra.mxu0 %v927
    %2031 = vmatprep.subr.bf16.mxu0 0
    %2032 = vmatpush1.bf16.msra.mxu0 %v928
    %2033 = vmatprep.subr.bf16.mxu0 0
    %2034 = vmatpush1.bf16.msra.mxu0 0
    %2035 = vmatprep.subr.bf16.mxu0 0
    %2036 = vmatpush1.bf16.msra.mxu0 0
    %2037 = vmatprep.subr.bf16.mxu0 0
    %2038 = vmatpush1.bf16.msra.mxu0 0
    %2039 = vmatprep.subr.bf16.mxu0 0
    %2040 = vmatpush1.bf16.msra.mxu0 0
    %2041 = vmatprep.subr.bf16.mxu0 0
    %2042 = vmatpush1.bf16.msra.mxu0 0
    %2043 = vmatprep.subr.bf16.mxu0 0
    %2044 = vmatpush1.bf16.msra.mxu0 0
    %2045 = vmatprep.subr.bf16.mxu0 0
    %2046 = vmatpush1.bf16.msra.mxu0 0
    %2047 = vmatprep.subr.bf16.mxu0 0
    %2048 = vmatpush1.bf16.msra.mxu0 0
    %2049 = vmatprep.subr.bf16.mxu0 0
    %2050 = vmatpush1.bf16.msra.mxu0 0
    %2051 = vmatprep.subr.bf16.mxu0 0
    %2052 = vmatpush1.bf16.msra.mxu0 0
    %2053 = vmatprep.subr.bf16.mxu0 0
    %2054 = vmatpush1.bf16.msra.mxu0 0
    %2055 = vmatprep.subr.bf16.mxu0 0
    %2056 = vmatpush1.bf16.msra.mxu0 0
    %2057 = vmatprep.subr.bf16.mxu0 0
    %2058 = vmatpush1.bf16.msra.mxu0 0
    %2059 = vmatprep.subr.bf16.mxu0 0
    %2060 = vmatpush1.bf16.msra.mxu0 0
    %2061 = vmatprep.mubr.bf16.mxu0 0
    %2062 = vmatmul.mubr.bf16.gmra.mrb[0].mxu0 %v2027
    %v2063 = vpop.f32.mrb[0].mxu0
    %v2064 = vadd.f32 0.0, %v2063
    %v2065 = vpop.f32.mrb[0].mxu0
    %v2066 = vpop.f32.mrb[0].mxu0
    %v2067 = vpop.f32.mrb[0].mxu0
    %2068 = vdwg.mxu0
    %v2069 = vadd.f32 %v2021, %v2064
    %v2070 = vxor.u32 %v2069, 2147483648
    %v2071 = vmul.f32 %v2070, 1.442695
    %v2072 = vpow.pop %v2071
    %v2073 = vadd.f32 %v2072, 1.0
    %v2074 = vrcp.pop %v2073
    %v2075 = vmul.f32 1.0, %v2074
    %v2076 = vtanh.pop %v2069
    %v2077 = vmul.f32 %v2075, %v1910
    %2079 = vrot.lane.b32.xlu0 %v2076, 32
    %v2080 = vpop.permute.xlu0 %2079
    %v2082 = vmul.f32 %v2075, %v2080
    %2084 = vrot.lane.b32.xlu0 %v2082, 32
    %v2085 = vpop.permute.xlu0 %2084
    %v2087 = vadd.f32 %v2077, %v2085
    %v2088 = vtanh.pop %v2087
    %2090 = vrot.lane.b32.xlu0 %v2088, 32
    %v2091 = vpop.permute.xlu0 %2090
    %v2093 = vmul.f32 %v2075, %v2091
    %v2094 = vmax.f32 %v2093, 0.0
    %v2095 = vpack.c.bf16 %v2094, %v2094
    %2097 = vrot.lane.b32.xlu0 %v2095, 64
    %v2098 = vpop.permute.xlu0 %2097
    %v2100 = vsel %vm154, %v2098, 0
    %2102 = vmatprep.subr.bf16.mxu0 0
    %2103 = vmatpush1.bf16.msra.mxu0 %v1018
    %2104 = vmatprep.subr.bf16.mxu0 0
    %2105 = vmatpush1.bf16.msra.mxu0 %v1019
    %2106 = vmatprep.subr.bf16.mxu0 0
    %2107 = vmatpush1.bf16.msra.mxu0 0
    %2108 = vmatprep.subr.bf16.mxu0 0
    %2109 = vmatpush1.bf16.msra.mxu0 0
    %2110 = vmatprep.subr.bf16.mxu0 0
    %2111 = vmatpush1.bf16.msra.mxu0 0
    %2112 = vmatprep.subr.bf16.mxu0 0
    %2113 = vmatpush1.bf16.msra.mxu0 0
    %2114 = vmatprep.subr.bf16.mxu0 0
    %2115 = vmatpush1.bf16.msra.mxu0 0
    %2116 = vmatprep.subr.bf16.mxu0 0
    %2117 = vmatpush1.bf16.msra.mxu0 0
    %2118 = vmatprep.subr.bf16.mxu0 0
    %2119 = vmatpush1.bf16.msra.mxu0 0
    %2120 = vmatprep.subr.bf16.mxu0 0
    %2121 = vmatpush1.bf16.msra.mxu0 0
    %2122 = vmatprep.subr.bf16.mxu0 0
    %2123 = vmatpush1.bf16.msra.mxu0 0
    %2124 = vmatprep.subr.bf16.mxu0 0
    %2125 = vmatpush1.bf16.msra.mxu0 0
    %2126 = vmatprep.subr.bf16.mxu0 0
    %2127 = vmatpush1.bf16.msra.mxu0 0
    %2128 = vmatprep.subr.bf16.mxu0 0
    %2129 = vmatpush1.bf16.msra.mxu0 0
    %2130 = vmatprep.subr.bf16.mxu0 0
    %2131 = vmatpush1.bf16.msra.mxu0 0
    %2132 = vmatprep.subr.bf16.mxu0 0
    %2133 = vmatpush1.bf16.msra.mxu0 0
    %2134 = vmatprep.mubr.bf16.mxu0 0
    %2135 = vmatmul.mubr.bf16.gmra.mrb[0].mxu0 %v2100
    %v2136 = vpop.f32.mrb[0].mxu0
    %v2137 = vadd.f32 %v1005, %v2136
    %v2138 = vpop.f32.mrb[0].mxu0
    %v2139 = vpop.f32.mrb[0].mxu0
    %v2140 = vpop.f32.mrb[0].mxu0
    %2141 = vdwg.mxu0
    %v2142 = vmax.f32 %v2137, 0.0
    %v2143 = vpack.c.bf16 %v2142, %v2142
    %v2145 = vsel %vm154, %v2143, 0
    %2147 = vmatprep.subr.bf16.mxu0 0
    %2148 = vmatpush1.bf16.msra.mxu0 %v1081
    %2149 = vmatprep.subr.bf16.mxu0 0
    %2150 = vmatpush1.bf16.msra.mxu0 %v1082
    %2151 = vmatprep.subr.bf16.mxu0 0
    %2152 = vmatpush1.bf16.msra.mxu0 0
    %2153 = vmatprep.subr.bf16.mxu0 0
    %2154 = vmatpush1.bf16.msra.mxu0 0
    %2155 = vmatprep.subr.bf16.mxu0 0
    %2156 = vmatpush1.bf16.msra.mxu0 0
    %2157 = vmatprep.subr.bf16.mxu0 0
    %2158 = vmatpush1.bf16.msra.mxu0 0
    %2159 = vmatprep.subr.bf16.mxu0 0
    %2160 = vmatpush1.bf16.msra.mxu0 0
    %2161 = vmatprep.subr.bf16.mxu0 0
    %2162 = vmatpush1.bf16.msra.mxu0 0
    %2163 = vmatprep.subr.bf16.mxu0 0
    %2164 = vmatpush1.bf16.msra.mxu0 0
    %2165 = vmatprep.subr.bf16.mxu0 0
    %2166 = vmatpush1.bf16.msra.mxu0 0
    %2167 = vmatprep.subr.bf16.mxu0 0
    %2168 = vmatpush1.bf16.msra.mxu0 0
    %2169 = vmatprep.subr.bf16.mxu0 0
    %2170 = vmatpush1.bf16.msra.mxu0 0
    %2171 = vmatprep.subr.bf16.mxu0 0
    %2172 = vmatpush1.bf16.msra.mxu0 0
    %2173 = vmatprep.subr.bf16.mxu0 0
    %2174 = vmatpush1.bf16.msra.mxu0 0
    %2175 = vmatprep.subr.bf16.mxu0 0
    %2176 = vmatpush1.bf16.msra.mxu0 0
    %2177 = vmatprep.subr.bf16.mxu0 0
    %2178 = vmatpush1.bf16.msra.mxu0 0
    %2179 = vmatprep.mubr.bf16.mxu0 0
    %2180 = vmatmul.mubr.bf16.gmra.mrb[0].mxu0 %v2145
    %v2181 = vpop.f32.mrb[0].mxu0
    %v2182 = vadd.f32 %v1071, %v2181
    %v2183 = vpop.f32.mrb[0].mxu0
    %v2184 = vpop.f32.mrb[0].mxu0
    %v2185 = vpop.f32.mrb[0].mxu0
    %2186 = vdwg.mxu0
    %2188 = vrot.lane.b32.xlu0 %v2182, 6
    %v2189 = vpop.permute.xlu0 %2188
    %vm2191 = vcmask 56368
    %2192 = vst.msk [vmem:[#allocation8] sm:$0xff] %vm2191, %v2189
    %2193 = vset.pattern.permute.xlu0 0
    %2194 = vperm.xlu0 %2193, %v2182
    %v2195 = vpop.permute.xlu0 %2194
    %v2197 = vmul.f32 %v2195, %v905
    %v2198 = vadd.f32 %v2197, %v912
    %v2199 = vpack.c.bf16 %v2093, %v2093
    %2201 = vrot.lane.b32.xlu0 %v2199, 64
    %v2202 = vpop.permute.xlu0 %2201
    %v2204 = vsel %vm154, %v2202, 0
    %2206 = vmatprep.subr.bf16.mxu0 0
    %2207 = vmatpush1.bf16.msra.mxu0 %v927
    %2208 = vmatprep.subr.bf16.mxu0 0
    %2209 = vmatpush1.bf16.msra.mxu0 %v928
    %2210 = vmatprep.subr.bf16.mxu0 0
    %2211 = vmatpush1.bf16.msra.mxu0 0
    %2212 = vmatprep.subr.bf16.mxu0 0
    %2213 = vmatpush1.bf16.msra.mxu0 0
    %2214 = vmatprep.subr.bf16.mxu0 0
    %2215 = vmatpush1.bf16.msra.mxu0 0
    %2216 = vmatprep.subr.bf16.mxu0 0
    %2217 = vmatpush1.bf16.msra.mxu0 0
    %2218 = vmatprep.subr.bf16.mxu0 0
    %2219 = vmatpush1.bf16.msra.mxu0 0
    %2220 = vmatprep.subr.bf16.mxu0 0
    %2221 = vmatpush1.bf16.msra.mxu0 0
    %2222 = vmatprep.subr.bf16.mxu0 0
    %2223 = vmatpush1.bf16.msra.mxu0 0
    %2224 = vmatprep.subr.bf16.mxu0 0
    %2225 = vmatpush1.bf16.msra.mxu0 0
    %2226 = vmatprep.subr.bf16.mxu0 0
    %2227 = vmatpush1.bf16.msra.mxu0 0
    %2228 = vmatprep.subr.bf16.mxu0 0
    %2229 = vmatpush1.bf16.msra.mxu0 0
    %2230 = vmatprep.subr.bf16.mxu0 0
    %2231 = vmatpush1.bf16.msra.mxu0 0
    %2232 = vmatprep.subr.bf16.mxu0 0
    %2233 = vmatpush1.bf16.msra.mxu0 0
    %2234 = vmatprep.subr.bf16.mxu0 0
    %2235 = vmatpush1.bf16.msra.mxu0 0
    %2236 = vmatprep.subr.bf16.mxu0 0
    %2237 = vmatpush1.bf16.msra.mxu0 0
    %2238 = vmatprep.mubr.bf16.mxu0 0
    %2239 = vmatmul.mubr.bf16.gmra.mrb[0].mxu0 %v2204
    %v2240 = vpop.f32.mrb[0].mxu0
    %v2241 = vadd.f32 0.0, %v2240
    %v2242 = vpop.f32.mrb[0].mxu0
    %v2243 = vpop.f32.mrb[0].mxu0
    %v2244 = vpop.f32.mrb[0].mxu0
    %2245 = vdwg.mxu0
    %v2246 = vadd.f32 %v2198, %v2241
    %v2247 = vxor.u32 %v2246, 2147483648
    %v2248 = vmul.f32 %v2247, 1.442695
    %v2249 = vpow.pop %v2248
    %v2250 = vadd.f32 %v2249, 1.0
    %v2251 = vrcp.pop %v2250
    %v2252 = vmul.f32 1.0, %v2251
    %v2253 = vtanh.pop %v2246
    %v2254 = vmul.f32 %v2252, %v2087
    %2256 = vrot.lane.b32.xlu0 %v2253, 32
    %v2257 = vpop.permute.xlu0 %2256
    %v2259 = vmul.f32 %v2252, %v2257
    %2261 = vrot.lane.b32.xlu0 %v2259, 32
    %v2262 = vpop.permute.xlu0 %2261
    %v2264 = vadd.f32 %v2254, %v2262
    %v2265 = vtanh.pop %v2264
    %2267 = vrot.lane.b32.xlu0 %v2265, 32
    %v2268 = vpop.permute.xlu0 %2267
    %v2270 = vmul.f32 %v2252, %v2268
    %v2271 = vmax.f32 %v2270, 0.0
    %v2272 = vpack.c.bf16 %v2271, %v2271
    %2274 = vrot.lane.b32.xlu0 %v2272, 64
    %v2275 = vpop.permute.xlu0 %2274
    %v2277 = vsel %vm154, %v2275, 0
    %2279 = vmatprep.subr.bf16.mxu0 0
    %2280 = vmatpush1.bf16.msra.mxu0 %v1018
    %2281 = vmatprep.subr.bf16.mxu0 0
    %2282 = vmatpush1.bf16.msra.mxu0 %v1019
    %2283 = vmatprep.subr.bf16.mxu0 0
    %2284 = vmatpush1.bf16.msra.mxu0 0
    %2285 = vmatprep.subr.bf16.mxu0 0
    %2286 = vmatpush1.bf16.msra.mxu0 0
    %2287 = vmatprep.subr.bf16.mxu0 0
    %2288 = vmatpush1.bf16.msra.mxu0 0
    %2289 = vmatprep.subr.bf16.mxu0 0
    %2290 = vmatpush1.bf16.msra.mxu0 0
    %2291 = vmatprep.subr.bf16.mxu0 0
    %2292 = vmatpush1.bf16.msra.mxu0 0
    %2293 = vmatprep.subr.bf16.mxu0 0
    %2294 = vmatpush1.bf16.msra.mxu0 0
    %2295 = vmatprep.subr.bf16.mxu0 0
    %2296 = vmatpush1.bf16.msra.mxu0 0
    %2297 = vmatprep.subr.bf16.mxu0 0
    %2298 = vmatpush1.bf16.msra.mxu0 0
    %2299 = vmatprep.subr.bf16.mxu0 0
    %2300 = vmatpush1.bf16.msra.mxu0 0
    %2301 = vmatprep.subr.bf16.mxu0 0
    %2302 = vmatpush1.bf16.msra.mxu0 0
    %2303 = vmatprep.subr.bf16.mxu0 0
    %2304 = vmatpush1.bf16.msra.mxu0 0
    %2305 = vmatprep.subr.bf16.mxu0 0
    %2306 = vmatpush1.bf16.msra.mxu0 0
    %2307 = vmatprep.subr.bf16.mxu0 0
    %2308 = vmatpush1.bf16.msra.mxu0 0
    %2309 = vmatprep.subr.bf16.mxu0 0
    %2310 = vmatpush1.bf16.msra.mxu0 0
    %2311 = vmatprep.mubr.bf16.mxu0 0
    %2312 = vmatmul.mubr.bf16.gmra.mrb[0].mxu0 %v2277
    %v2313 = vpop.f32.mrb[0].mxu0
    %v2314 = vadd.f32 %v1005, %v2313
    %v2315 = vpop.f32.mrb[0].mxu0
    %v2316 = vpop.f32.mrb[0].mxu0
    %v2317 = vpop.f32.mrb[0].mxu0
    %2318 = vdwg.mxu0
    %v2319 = vmax.f32 %v2314, 0.0
    %v2320 = vpack.c.bf16 %v2319, %v2319
    %v2322 = vsel %vm154, %v2320, 0
    %2324 = vmatprep.subr.bf16.mxu0 0
    %2325 = vmatpush1.bf16.msra.mxu0 %v1081
    %2326 = vmatprep.subr.bf16.mxu0 0
    %2327 = vmatpush1.bf16.msra.mxu0 %v1082
    %2328 = vmatprep.subr.bf16.mxu0 0
    %2329 = vmatpush1.bf16.msra.mxu0 0
    %2330 = vmatprep.subr.bf16.mxu0 0
    %2331 = vmatpush1.bf16.msra.mxu0 0
    %2332 = vmatprep.subr.bf16.mxu0 0
    %2333 = vmatpush1.bf16.msra.mxu0 0
    %2334 = vmatprep.subr.bf16.mxu0 0
    %2335 = vmatpush1.bf16.msra.mxu0 0
    %2336 = vmatprep.subr.bf16.mxu0 0
    %2337 = vmatpush1.bf16.msra.mxu0 0
    %2338 = vmatprep.subr.bf16.mxu0 0
    %2339 = vmatpush1.bf16.msra.mxu0 0
    %2340 = vmatprep.subr.bf16.mxu0 0
    %2341 = vmatpush1.bf16.msra.mxu0 0
    %2342 = vmatprep.subr.bf16.mxu0 0
    %2343 = vmatpush1.bf16.msra.mxu0 0
    %2344 = vmatprep.subr.bf16.mxu0 0
    %2345 = vmatpush1.bf16.msra.mxu0 0
    %2346 = vmatprep.subr.bf16.mxu0 0
    %2347 = vmatpush1.bf16.msra.mxu0 0
    %2348 = vmatprep.subr.bf16.mxu0 0
    %2349 = vmatpush1.bf16.msra.mxu0 0
    %2350 = vmatprep.subr.bf16.mxu0 0
    %2351 = vmatpush1.bf16.msra.mxu0 0
    %2352 = vmatprep.subr.bf16.mxu0 0
    %2353 = vmatpush1.bf16.msra.mxu0 0
    %2354 = vmatprep.subr.bf16.mxu0 0
    %2355 = vmatpush1.bf16.msra.mxu0 0
    %2356 = vmatprep.mubr.bf16.mxu0 0
    %2357 = vmatmul.mubr.bf16.gmra.mrb[0].mxu0 %v2322
    %v2358 = vpop.f32.mrb[0].mxu0
    %v2359 = vadd.f32 %v1071, %v2358
    %v2360 = vpop.f32.mrb[0].mxu0
    %v2361 = vpop.f32.mrb[0].mxu0
    %v2362 = vpop.f32.mrb[0].mxu0
    %2363 = vdwg.mxu0
    %2365 = vrot.lane.b32.xlu0 %v2359, 7
    %v2366 = vpop.permute.xlu0 %2365
    %vm2368 = vcmask 64568
    %2369 = vst.msk [vmem:[#allocation8] sm:$0xff] %vm2368, %v2366
    // Predicated region
    $region58: #{tpu_custom_call.1} parent=1 // pred_check
      _
    $region59: #{tpu_custom_call.1} parent=1 // pred_check_branch
      %2371 = sbr.rel (0) target = $region61
    $region60: #{tpu_custom_call.1} parent=1 // pred_region
      %s2373 = ssub.s32 128, 128
      %2374 = vsyncadd [#allocation5], %s2373
      %s2376 = sshll.u32 [#allocation8], 4
      %s2377 = int_to_ptr.vmem [resolvable:$true] %s2376
      %2379 = dma.vmem_to_hbm [thread:$0]  %s2377, 128, %s12, [#allocation5]
    $region61: #{tpu_custom_call.1} parent=1 // pred_fallthru
      _
    // Predicated region
    $region62: #{tpu_custom_call.1} parent=1 // pred_check
      _
    $region63: #{tpu_custom_call.1} parent=1 // pred_check_branch
      %2381 = sbr.rel (0) target = $region65
    $region64: #{tpu_custom_call.1} parent=1 // pred_region
      %2382 = dma.done [#allocation5], 128
    $region65: #{tpu_custom_call.1} parent=1 // pred_fallthru
      _
    %2383 = vsyncpa [#allocation4], 1
    %2384 = vsyncpa [#allocation7], 1
    %2385 = vsyncpa [#allocation5], 1

</llo_original>
